<compile_context>
chip_gen: v7x
topology: tpu7x:2x2x1
jax: 0.10.0
libtpu: 0.0.40
codegen_flags: <defaults>
</compile_context>

<pallas_src>
import jax
import jax.numpy as jnp
from jax.experimental import pallas as pl
from jax.experimental.pallas import tpu as pltpu


# ----------------------------------------------------------------------------
# Fused kernel
# ----------------------------------------------------------------------------
def _make_rnn_kernel(seq, bp, H, num_layers):
    """Builds the fused kernel body for static (seq, padded batch, H, layers)."""
    H2, H4, H8 = 2 * H, 4 * H, 8 * H

    def kernel(*refs):
        it = iter(refs)
        x0_ref = next(it)                                  # (seq*bp, E)  bf16
        layers = []
        for _ in range(num_layers):
            # (w_ih_fwd, w_ih_bwd, bias_fwd, bias_bwd, w_hh_blockdiag)
            layers.append(tuple(next(it) for _ in range(5)))
        dec_w_ref = next(it)                               # (2H, n_out) bf16
        dec_b_ref = next(it)                               # (1, n_out)  f32
        out_ref = next(it)                                 # (bp, n_out) f32
        gin_ref = next(it)                                 # (seq*bp, 8H) f32 scratch
        hseq_refs = (next(it), next(it))                   # 2x (seq*bp, 2H) f32 ping-pong

        h_f = h_b = None
        for l in range(num_layers):
            wih_f_ref, wih_b_ref, b_f_ref, b_b_ref, whh_ref = layers[l]

            # ---- hoisted input projection: one big matmul per direction ----
            if l == 0:
                x = x0_ref[...]                                        # bf16
            else:
                x = hseq_refs[(l - 1) % 2][...].astype(jnp.bfloat16)   # (seq*bp, 2H)
            gin_f = b_f_ref[...] + jnp.dot(x, wih_f_ref[...],
                                           preferred_element_type=jnp.float32)
            gin_b = b_b_ref[...] + jnp.dot(x, wih_b_ref[...],
                                           preferred_element_type=jnp.float32)
            # fwd half stored in time order, bwd half time-reversed, so the
            # recurrence reads one aligned (bp, 8H) tile per step.
            gin_ref[:, :H4] = gin_f
            for t in range(seq):
                gin_ref[pl.ds((seq - 1 - t) * bp, bp), H4:] = \
                    gin_b[t * bp:(t + 1) * bp]

            # ---- fused fwd+bwd recurrence, fully unrolled -------------------
            # TODO(synk): switch to lax.fori_loop(..., unroll=4..8) once seq
            # grows beyond ~16 to bound code size / vreg pressure.
            whh = whh_ref[...]                 # (2H, 8H) bf16 block-diagonal
            last = l == num_layers - 1
            h_f = jnp.zeros((bp, H), jnp.float32)
            h_b = jnp.zeros((bp, H), jnp.float32)
            c_f = jnp.zeros((bp, H), jnp.float32)
            c_b = jnp.zeros((bp, H), jnp.float32)
            for t in range(seq):
                tb = seq - 1 - t
                h_comb = jnp.concatenate([h_f, h_b], axis=-1).astype(jnp.bfloat16)
                gates = gin_ref[pl.ds(t * bp, bp), :] + jnp.dot(
                    h_comb, whh, preferred_element_type=jnp.float32)   # (bp, 8H)
                sg = jax.nn.sigmoid(gates)     # one full-width EUP pass
                th = jnp.tanh(gates)           # one full-width EUP pass
                # gate layout per direction: [i, f, g, o], bwd at offset 4H
                c_f = sg[:, H:H2] * c_f + sg[:, :H] * th[:, H2:H2 + H]
                c_b = (sg[:, H4 + H:H4 + H2] * c_b
                       + sg[:, H4:H4 + H] * th[:, H4 + H2:H4 + H2 + H])
                h_f = sg[:, H2 + H:H4] * jnp.tanh(c_f)
                h_b = sg[:, H8 - H:] * jnp.tanh(c_b)
                if not last:   # last layer's per-step outputs are never consumed
                    hseq_refs[l % 2][pl.ds(t * bp, bp), :H] = h_f
                    hseq_refs[l % 2][pl.ds(tb * bp, bp), H:] = h_b

        # ---- decoder: encoding = cat(h[-1]=bwd final, h[-2]=fwd final) ------
        hc = jnp.concatenate([h_f, h_b], axis=-1).astype(jnp.bfloat16)
        out_ref[...] = (
            jnp.dot(hc, dec_w_ref[...], preferred_element_type=jnp.float32)
            + dec_b_ref[...]
        )

    return kernel


# ----------------------------------------------------------------------------
# Wrapper
# ----------------------------------------------------------------------------
def rnn_classifier_forward(params, inputs, num_layers):
    """inputs: (batch, seq) int32 token ids -> (batch, num_outputs) float32."""
    # embedding(inputs.permute(1, 0)) -> (seq, batch, embed), time-major.
    # TODO(synk): fuse the data-dependent embedding gather into the kernel
    # (scalar-prefetch ids + per-row DMA) at larger shapes; kept in XLA here.
    emb = jnp.take(params["embedding"], inputs.T, axis=0)
    seq, batch, embed = emb.shape
    H = params["l0_fwd"]["w_hh"].shape[0]
    num_outputs = params["dec_w"].shape[1]

    # Pad batch to a full f32 sublane group (8) -> unmasked whole-vreg accesses
    # in the kernel. Padded rows are row-independent garbage, sliced off below.
    bp = max(8, -(-batch // 8) * 8)
    if bp != batch:
        emb = jnp.pad(emb, ((0, 0), (0, bp - batch), (0, 0)))
    x0 = emb.reshape(seq * bp, embed).astype(jnp.bfloat16)

    args = [x0]
    for l in range(num_layers):
        pf, pb = params[f"l{l}_fwd"], params[f"l{l}_bwd"]
        # Block-diagonal recurrent weight so both directions share one matmul.
        whh_blk = jnp.zeros((2 * H, 8 * H), jnp.float32)
        whh_blk = whh_blk.at[:H, :4 * H].set(pf["w_hh"])
        whh_blk = whh_blk.at[H:, 4 * H:].set(pb["w_hh"])
        args += [
            pf["w_ih"].astype(jnp.bfloat16),
            pb["w_ih"].astype(jnp.bfloat16),
            pf["b"],
            pb["b"],
            whh_blk.astype(jnp.bfloat16),
        ]
    # Kernel hidden layout is [fwd | bwd]; torch encoding is cat(h[-1]=bwd,
    # h[-2]=fwd), so reorder decoder weight rows to [fwd rows; bwd rows].
    dec_w = params["dec_w"]
    args += [
        jnp.concatenate([dec_w[H:], dec_w[:H]], axis=0).astype(jnp.bfloat16),
        params["dec_b"],
    ]

    kernel = _make_rnn_kernel(seq, bp, H, num_layers)
    out = pl.pallas_call(
        kernel,
        out_shape=jax.ShapeDtypeStruct((bp, num_outputs), jnp.float32),
        in_specs=[pl.BlockSpec(memory_space=pltpu.MemorySpace.VMEM)] * len(args),
        out_specs=pl.BlockSpec(memory_space=pltpu.MemorySpace.VMEM),
        scratch_shapes=[
            pltpu.VMEM((seq * bp, 8 * H), jnp.float32),   # hoisted projections
            pltpu.VMEM((seq * bp, 2 * H), jnp.float32),   # layer I/O ping
            pltpu.VMEM((seq * bp, 2 * H), jnp.float32),   # layer I/O pong
        ],
        # TODO(synk): on v7x (2 TensorCores) add a batch-tiled "parallel" grid
        # axis once batch has >=2 sublane tiles, and re-derive the VMEM budget
        # (64 MiB vs 128 MiB on v5e/v6e) when scaling H / seq.
    )(*args)
    return out[:batch]


# ----------------------------------------------------------------------------
# Parameters
# ----------------------------------------------------------------------------
def init_params(key, vocab_size, embed_size, num_hiddens, num_layers, num_outputs):
    """Deterministic synthetic parameter init (uniform +-0.1)."""
    params = {}
    keys = iter(jax.random.split(key, 4 + num_layers * 2 * 3))

    def u(k, shape):
        return jax.random.uniform(k, shape, jnp.float32, -0.1, 0.1)

    params["embedding"] = u(next(keys), (vocab_size, embed_size))

    H = num_hiddens
    for layer in range(num_layers):
        in_size = embed_size if layer == 0 else 2 * H
        for direction in ("fwd", "bwd"):
            name = f"l{layer}_{direction}"
            params[name] = {
                "w_ih": u(next(keys), (in_size, 4 * H)),   # torch weight_ih.T
                "w_hh": u(next(keys), (H, 4 * H)),          # torch weight_hh.T
                "b": u(next(keys), (1, 4 * H)),             # bias_ih + bias_hh
            }

    params["dec_w"] = u(next(keys), (2 * H, num_outputs))   # torch decoder.weight.T
    params["dec_b"] = u(next(keys), (1, num_outputs))
    return params


# ----------------------------------------------------------------------------
if __name__ == "__main__":
    vocab_size = 50
    embed_size = 16
    num_hiddens = 32
    num_layers = 2
    num_outputs = 4
    batch = 2
    seq_len = 8

    key = jax.random.PRNGKey(0)
    k_param, k_inp = jax.random.split(key)

    params = init_params(
        k_param, vocab_size, embed_size, num_hiddens, num_layers, num_outputs
    )
    inputs = jax.random.randint(k_inp, (batch, seq_len), 0, vocab_size, jnp.int32)

    fwd = jax.jit(lambda p, x: rnn_classifier_forward(p, x, num_layers))
    outs = fwd(params, inputs)
    jax.block_until_ready(outs)

    assert outs.shape == (batch, num_outputs), outs.shape
    assert outs.dtype == jnp.float32
    print("KERNEL_OK")
</pallas_src>

<mosaic_0001>
module attributes {stable_mosaic.version = 11 : i64} {
  func.func @kernel(%arg0: memref<64x16xbf16, #tpu.memory_space<vmem>>, %arg1: memref<16x128xbf16, #tpu.memory_space<vmem>>, %arg2: memref<16x128xbf16, #tpu.memory_space<vmem>>, %arg3: memref<1x128xf32, #tpu.memory_space<vmem>>, %arg4: memref<1x128xf32, #tpu.memory_space<vmem>>, %arg5: memref<64x256xbf16, #tpu.memory_space<vmem>>, %arg6: memref<64x128xbf16, #tpu.memory_space<vmem>>, %arg7: memref<64x128xbf16, #tpu.memory_space<vmem>>, %arg8: memref<1x128xf32, #tpu.memory_space<vmem>>, %arg9: memref<1x128xf32, #tpu.memory_space<vmem>>, %arg10: memref<64x256xbf16, #tpu.memory_space<vmem>>, %arg11: memref<64x4xbf16, #tpu.memory_space<vmem>>, %arg12: memref<1x4xf32, #tpu.memory_space<vmem>>, %arg13: memref<8x4xf32, #tpu.memory_space<vmem>>, %arg14: memref<64x256xf32, #tpu.memory_space<vmem>>, %arg15: memref<64x64xf32, #tpu.memory_space<vmem>>, %arg16: memref<64x64xf32, #tpu.memory_space<vmem>>) attributes {dimension_semantics = [], scalar_prefetch = 0 : i64, scratch_operands = 3 : i64, tpu.core_type = #tpu.core_type<tc>} {
    %c0 = arith.constant 0 : index
    %c0_0 = arith.constant 0 : index
    %0 = vector.load %arg0[%c0, %c0_0] : memref<64x16xbf16, #tpu.memory_space<vmem>>, vector<64x16xbf16>
    %c0_1 = arith.constant 0 : index
    %c0_2 = arith.constant 0 : index
    %1 = vector.load %arg3[%c0_1, %c0_2] : memref<1x128xf32, #tpu.memory_space<vmem>>, vector<1x128xf32>
    %c0_3 = arith.constant 0 : index
    %c0_4 = arith.constant 0 : index
    %2 = vector.load %arg1[%c0_3, %c0_4] : memref<16x128xbf16, #tpu.memory_space<vmem>>, vector<16x128xbf16>
    %cst = arith.constant dense<0.000000e+00> : vector<64x128xf32>
    %3 = tpu.matmul %0, %2, %cst {dimension_numbers = #tpu.dot_dimension_numbers<[1], [0], [0], [1], [0, 0, 1, 1], [], []>} : vector<64x16xbf16>, vector<16x128xbf16>, vector<64x128xf32> -> vector<64x128xf32>
    %4 = vector.broadcast %1 : vector<1x128xf32> to vector<64x128xf32>
    %5 = arith.addf %4, %3 : vector<64x128xf32>
    %c0_5 = arith.constant 0 : index
    %c0_6 = arith.constant 0 : index
    %6 = vector.load %arg4[%c0_5, %c0_6] : memref<1x128xf32, #tpu.memory_space<vmem>>, vector<1x128xf32>
    %c0_7 = arith.constant 0 : index
    %c0_8 = arith.constant 0 : index
    %7 = vector.load %arg2[%c0_7, %c0_8] : memref<16x128xbf16, #tpu.memory_space<vmem>>, vector<16x128xbf16>
    %cst_9 = arith.constant dense<0.000000e+00> : vector<64x128xf32>
    %8 = tpu.matmul %0, %7, %cst_9 {dimension_numbers = #tpu.dot_dimension_numbers<[1], [0], [0], [1], [0, 0, 1, 1], [], []>} : vector<64x16xbf16>, vector<16x128xbf16>, vector<64x128xf32> -> vector<64x128xf32>
    %9 = vector.broadcast %6 : vector<1x128xf32> to vector<64x128xf32>
    %10 = arith.addf %9, %8 : vector<64x128xf32>
    %c0_10 = arith.constant 0 : index
    %c0_11 = arith.constant 0 : index
    %11 = vector.load %arg14[%c0_10, %c0_11] : memref<64x256xf32, #tpu.memory_space<vmem>>, vector<64x128xf32>
    tpu.vector_store %arg14[%c0_10, %c0_11], %5 {strides = array<i32>} : memref<64x256xf32, #tpu.memory_space<vmem>>, vector<64x128xf32>,
    %12 = vector.extract_strided_slice %10 {offsets = [0, 0], sizes = [8, 128], strides = [1, 1]} : vector<64x128xf32> to vector<8x128xf32>
    %c56 = arith.constant 56 : index
    %c128 = arith.constant 128 : index
    %13 = vector.load %arg14[%c56, %c128] : memref<64x256xf32, #tpu.memory_space<vmem>>, vector<8x128xf32>
    tpu.vector_store %arg14[%c56, %c128], %12 {strides = array<i32>} : memref<64x256xf32, #tpu.memory_space<vmem>>, vector<8x128xf32>,
    %14 = vector.extract_strided_slice %10 {offsets = [8, 0], sizes = [8, 128], strides = [1, 1]} : vector<64x128xf32> to vector<8x128xf32>
    %c48 = arith.constant 48 : index
    %c128_12 = arith.constant 128 : index
    %15 = vector.load %arg14[%c48, %c128_12] : memref<64x256xf32, #tpu.memory_space<vmem>>, vector<8x128xf32>
    tpu.vector_store %arg14[%c48, %c128_12], %14 {strides = array<i32>} : memref<64x256xf32, #tpu.memory_space<vmem>>, vector<8x128xf32>,
    %16 = vector.extract_strided_slice %10 {offsets = [16, 0], sizes = [8, 128], strides = [1, 1]} : vector<64x128xf32> to vector<8x128xf32>
    %c40 = arith.constant 40 : index
    %c128_13 = arith.constant 128 : index
    %17 = vector.load %arg14[%c40, %c128_13] : memref<64x256xf32, #tpu.memory_space<vmem>>, vector<8x128xf32>
    tpu.vector_store %arg14[%c40, %c128_13], %16 {strides = array<i32>} : memref<64x256xf32, #tpu.memory_space<vmem>>, vector<8x128xf32>,
    %18 = vector.extract_strided_slice %10 {offsets = [24, 0], sizes = [8, 128], strides = [1, 1]} : vector<64x128xf32> to vector<8x128xf32>
    %c32 = arith.constant 32 : index
    %c128_14 = arith.constant 128 : index
    %19 = vector.load %arg14[%c32, %c128_14] : memref<64x256xf32, #tpu.memory_space<vmem>>, vector<8x128xf32>
    tpu.vector_store %arg14[%c32, %c128_14], %18 {strides = array<i32>} : memref<64x256xf32, #tpu.memory_space<vmem>>, vector<8x128xf32>,
    %20 = vector.extract_strided_slice %10 {offsets = [32, 0], sizes = [8, 128], strides = [1, 1]} : vector<64x128xf32> to vector<8x128xf32>
    %c24 = arith.constant 24 : index
    %c128_15 = arith.constant 128 : index
    %21 = vector.load %arg14[%c24, %c128_15] : memref<64x256xf32, #tpu.memory_space<vmem>>, vector<8x128xf32>
    tpu.vector_store %arg14[%c24, %c128_15], %20 {strides = array<i32>} : memref<64x256xf32, #tpu.memory_space<vmem>>, vector<8x128xf32>,
    %22 = vector.extract_strided_slice %10 {offsets = [40, 0], sizes = [8, 128], strides = [1, 1]} : vector<64x128xf32> to vector<8x128xf32>
    %c16 = arith.constant 16 : index
    %c128_16 = arith.constant 128 : index
    %23 = vector.load %arg14[%c16, %c128_16] : memref<64x256xf32, #tpu.memory_space<vmem>>, vector<8x128xf32>
    tpu.vector_store %arg14[%c16, %c128_16], %22 {strides = array<i32>} : memref<64x256xf32, #tpu.memory_space<vmem>>, vector<8x128xf32>,
    %24 = vector.extract_strided_slice %10 {offsets = [48, 0], sizes = [8, 128], strides = [1, 1]} : vector<64x128xf32> to vector<8x128xf32>
    %c8 = arith.constant 8 : index
    %c128_17 = arith.constant 128 : index
    %25 = vector.load %arg14[%c8, %c128_17] : memref<64x256xf32, #tpu.memory_space<vmem>>, vector<8x128xf32>
    tpu.vector_store %arg14[%c8, %c128_17], %24 {strides = array<i32>} : memref<64x256xf32, #tpu.memory_space<vmem>>, vector<8x128xf32>,
    %26 = vector.extract_strided_slice %10 {offsets = [56, 0], sizes = [8, 128], strides = [1, 1]} : vector<64x128xf32> to vector<8x128xf32>
    %c0_18 = arith.constant 0 : index
    %c128_19 = arith.constant 128 : index
    %27 = vector.load %arg14[%c0_18, %c128_19] : memref<64x256xf32, #tpu.memory_space<vmem>>, vector<8x128xf32>
    tpu.vector_store %arg14[%c0_18, %c128_19], %26 {strides = array<i32>} : memref<64x256xf32, #tpu.memory_space<vmem>>, vector<8x128xf32>,
    %c0_20 = arith.constant 0 : index
    %c0_21 = arith.constant 0 : index
    %28 = vector.load %arg5[%c0_20, %c0_21] : memref<64x256xbf16, #tpu.memory_space<vmem>>, vector<64x256xbf16>
    %cst_22 = arith.constant 0.000000e+00 : f32
    %29 = vector.broadcast %cst_22 : f32 to vector<8x32xf32>
    %cst_23 = arith.constant 0.000000e+00 : f32
    %30 = vector.broadcast %cst_23 : f32 to vector<8x32xf32>
    %cst_24 = arith.constant 0.000000e+00 : f32
    %31 = vector.broadcast %cst_24 : f32 to vector<8x32xf32>
    %cst_25 = arith.constant 0.000000e+00 : f32
    %32 = vector.broadcast %cst_25 : f32 to vector<8x32xf32>
    %33 = tpu.concatenate %29, %30 in 1 : vector<8x32xf32>, vector<8x32xf32> -> vector<8x64xf32>
    %34 = arith.truncf %33 : vector<8x64xf32> to vector<8x64xbf16>
    %c0_26 = arith.constant 0 : index
    %c0_27 = arith.constant 0 : index
    %35 = vector.load %arg14[%c0_26, %c0_27] : memref<64x256xf32, #tpu.memory_space<vmem>>, vector<8x256xf32>
    %cst_28 = arith.constant dense<0.000000e+00> : vector<8x256xf32>
    %36 = tpu.matmul %34, %28, %cst_28 {dimension_numbers = #tpu.dot_dimension_numbers<[1], [0], [0], [1], [0, 0, 1, 1], [], []>} : vector<8x64xbf16>, vector<64x256xbf16>, vector<8x256xf32> -> vector<8x256xf32>
    %37 = arith.addf %35, %36 : vector<8x256xf32>
    %38 = arith.negf %37 : vector<8x256xf32>
    %39 = math.exp %38 : vector<8x256xf32>
    %cst_29 = arith.constant 1.000000e+00 : f32
    %40 = vector.broadcast %cst_29 : f32 to vector<8x256xf32>
    %41 = arith.addf %40, %39 : vector<8x256xf32>
    %42 = arith.divf %40, %41 : vector<8x256xf32>
    %43 = math.tanh %37 : vector<8x256xf32>
    %44 = vector.extract_strided_slice %42 {offsets = [0, 32], sizes = [8, 32], strides = [1, 1]} : vector<8x256xf32> to vector<8x32xf32>
    %45 = arith.mulf %44, %31 : vector<8x32xf32>
    %46 = vector.extract_strided_slice %42 {offsets = [0, 0], sizes = [8, 32], strides = [1, 1]} : vector<8x256xf32> to vector<8x32xf32>
    %47 = vector.extract_strided_slice %43 {offsets = [0, 64], sizes = [8, 32], strides = [1, 1]} : vector<8x256xf32> to vector<8x32xf32>
    %48 = arith.mulf %46, %47 : vector<8x32xf32>
    %49 = arith.addf %45, %48 : vector<8x32xf32>
    %50 = vector.extract_strided_slice %42 {offsets = [0, 160], sizes = [8, 32], strides = [1, 1]} : vector<8x256xf32> to vector<8x32xf32>
    %51 = arith.mulf %50, %32 : vector<8x32xf32>
    %52 = vector.extract_strided_slice %42 {offsets = [0, 128], sizes = [8, 32], strides = [1, 1]} : vector<8x256xf32> to vector<8x32xf32>
    %53 = vector.extract_strided_slice %43 {offsets = [0, 192], sizes = [8, 32], strides = [1, 1]} : vector<8x256xf32> to vector<8x32xf32>
    %54 = arith.mulf %52, %53 : vector<8x32xf32>
    %55 = arith.addf %51, %54 : vector<8x32xf32>
    %56 = vector.extract_strided_slice %42 {offsets = [0, 96], sizes = [8, 32], strides = [1, 1]} : vector<8x256xf32> to vector<8x32xf32>
    %57 = math.tanh %49 : vector<8x32xf32>
    %58 = arith.mulf %56, %57 : vector<8x32xf32>
    %59 = vector.extract_strided_slice %42 {offsets = [0, 224], sizes = [8, 32], strides = [1, 1]} : vector<8x256xf32> to vector<8x32xf32>
    %60 = math.tanh %55 : vector<8x32xf32>
    %61 = arith.mulf %59, %60 : vector<8x32xf32>
    %c0_30 = arith.constant 0 : index
    %c0_31 = arith.constant 0 : index
    %62 = vector.load %arg15[%c0_30, %c0_31] : memref<64x64xf32, #tpu.memory_space<vmem>>, vector<8x32xf32>
    tpu.vector_store %arg15[%c0_30, %c0_31], %58 {strides = array<i32>} : memref<64x64xf32, #tpu.memory_space<vmem>>, vector<8x32xf32>,
    %c56_32 = arith.constant 56 : index
    %c32_33 = arith.constant 32 : index
    %63 = vector.load %arg15[%c56_32, %c32_33] : memref<64x64xf32, #tpu.memory_space<vmem>>, vector<8x32xf32>
    tpu.vector_store %arg15[%c56_32, %c32_33], %61 {strides = array<i32>} : memref<64x64xf32, #tpu.memory_space<vmem>>, vector<8x32xf32>,
    %64 = tpu.concatenate %58, %61 in 1 : vector<8x32xf32>, vector<8x32xf32> -> vector<8x64xf32>
    %65 = arith.truncf %64 : vector<8x64xf32> to vector<8x64xbf16>
    %c8_34 = arith.constant 8 : index
    %c0_35 = arith.constant 0 : index
    %66 = vector.load %arg14[%c8_34, %c0_35] : memref<64x256xf32, #tpu.memory_space<vmem>>, vector<8x256xf32>
    %cst_36 = arith.constant dense<0.000000e+00> : vector<8x256xf32>
    %67 = tpu.matmul %65, %28, %cst_36 {dimension_numbers = #tpu.dot_dimension_numbers<[1], [0], [0], [1], [0, 0, 1, 1], [], []>} : vector<8x64xbf16>, vector<64x256xbf16>, vector<8x256xf32> -> vector<8x256xf32>
    %68 = arith.addf %66, %67 : vector<8x256xf32>
    %69 = arith.negf %68 : vector<8x256xf32>
    %70 = math.exp %69 : vector<8x256xf32>
    %cst_37 = arith.constant 1.000000e+00 : f32
    %71 = vector.broadcast %cst_37 : f32 to vector<8x256xf32>
    %72 = arith.addf %71, %70 : vector<8x256xf32>
    %73 = arith.divf %71, %72 : vector<8x256xf32>
    %74 = math.tanh %68 : vector<8x256xf32>
    %75 = vector.extract_strided_slice %73 {offsets = [0, 32], sizes = [8, 32], strides = [1, 1]} : vector<8x256xf32> to vector<8x32xf32>
    %76 = arith.mulf %75, %49 : vector<8x32xf32>
    %77 = vector.extract_strided_slice %73 {offsets = [0, 0], sizes = [8, 32], strides = [1, 1]} : vector<8x256xf32> to vector<8x32xf32>
    %78 = vector.extract_strided_slice %74 {offsets = [0, 64], sizes = [8, 32], strides = [1, 1]} : vector<8x256xf32> to vector<8x32xf32>
    %79 = arith.mulf %77, %78 : vector<8x32xf32>
    %80 = arith.addf %76, %79 : vector<8x32xf32>
    %81 = vector.extract_strided_slice %73 {offsets = [0, 160], sizes = [8, 32], strides = [1, 1]} : vector<8x256xf32> to vector<8x32xf32>
    %82 = arith.mulf %81, %55 : vector<8x32xf32>
    %83 = vector.extract_strided_slice %73 {offsets = [0, 128], sizes = [8, 32], strides = [1, 1]} : vector<8x256xf32> to vector<8x32xf32>
    %84 = vector.extract_strided_slice %74 {offsets = [0, 192], sizes = [8, 32], strides = [1, 1]} : vector<8x256xf32> to vector<8x32xf32>
    %85 = arith.mulf %83, %84 : vector<8x32xf32>
    %86 = arith.addf %82, %85 : vector<8x32xf32>
    %87 = vector.extract_strided_slice %73 {offsets = [0, 96], sizes = [8, 32], strides = [1, 1]} : vector<8x256xf32> to vector<8x32xf32>
    %88 = math.tanh %80 : vector<8x32xf32>
    %89 = arith.mulf %87, %88 : vector<8x32xf32>
    %90 = vector.extract_strided_slice %73 {offsets = [0, 224], sizes = [8, 32], strides = [1, 1]} : vector<8x256xf32> to vector<8x32xf32>
    %91 = math.tanh %86 : vector<8x32xf32>
    %92 = arith.mulf %90, %91 : vector<8x32xf32>
    %c8_38 = arith.constant 8 : index
    %c0_39 = arith.constant 0 : index
    %93 = vector.load %arg15[%c8_38, %c0_39] : memref<64x64xf32, #tpu.memory_space<vmem>>, vector<8x32xf32>
    tpu.vector_store %arg15[%c8_38, %c0_39], %89 {strides = array<i32>} : memref<64x64xf32, #tpu.memory_space<vmem>>, vector<8x32xf32>,
    %c48_40 = arith.constant 48 : index
    %c32_41 = arith.constant 32 : index
    %94 = vector.load %arg15[%c48_40, %c32_41] : memref<64x64xf32, #tpu.memory_space<vmem>>, vector<8x32xf32>
    tpu.vector_store %arg15[%c48_40, %c32_41], %92 {strides = array<i32>} : memref<64x64xf32, #tpu.memory_space<vmem>>, vector<8x32xf32>,
    %95 = tpu.concatenate %89, %92 in 1 : vector<8x32xf32>, vector<8x32xf32> -> vector<8x64xf32>
    %96 = arith.truncf %95 : vector<8x64xf32> to vector<8x64xbf16>
    %c16_42 = arith.constant 16 : index
    %c0_43 = arith.constant 0 : index
    %97 = vector.load %arg14[%c16_42, %c0_43] : memref<64x256xf32, #tpu.memory_space<vmem>>, vector<8x256xf32>
    %cst_44 = arith.constant dense<0.000000e+00> : vector<8x256xf32>
    %98 = tpu.matmul %96, %28, %cst_44 {dimension_numbers = #tpu.dot_dimension_numbers<[1], [0], [0], [1], [0, 0, 1, 1], [], []>} : vector<8x64xbf16>, vector<64x256xbf16>, vector<8x256xf32> -> vector<8x256xf32>
    %99 = arith.addf %97, %98 : vector<8x256xf32>
    %100 = arith.negf %99 : vector<8x256xf32>
    %101 = math.exp %100 : vector<8x256xf32>
    %cst_45 = arith.constant 1.000000e+00 : f32
    %102 = vector.broadcast %cst_45 : f32 to vector<8x256xf32>
    %103 = arith.addf %102, %101 : vector<8x256xf32>
    %104 = arith.divf %102, %103 : vector<8x256xf32>
    %105 = math.tanh %99 : vector<8x256xf32>
    %106 = vector.extract_strided_slice %104 {offsets = [0, 32], sizes = [8, 32], strides = [1, 1]} : vector<8x256xf32> to vector<8x32xf32>
    %107 = arith.mulf %106, %80 : vector<8x32xf32>
    %108 = vector.extract_strided_slice %104 {offsets = [0, 0], sizes = [8, 32], strides = [1, 1]} : vector<8x256xf32> to vector<8x32xf32>
    %109 = vector.extract_strided_slice %105 {offsets = [0, 64], sizes = [8, 32], strides = [1, 1]} : vector<8x256xf32> to vector<8x32xf32>
    %110 = arith.mulf %108, %109 : vector<8x32xf32>
    %111 = arith.addf %107, %110 : vector<8x32xf32>
    %112 = vector.extract_strided_slice %104 {offsets = [0, 160], sizes = [8, 32], strides = [1, 1]} : vector<8x256xf32> to vector<8x32xf32>
    %113 = arith.mulf %112, %86 : vector<8x32xf32>
    %114 = vector.extract_strided_slice %104 {offsets = [0, 128], sizes = [8, 32], strides = [1, 1]} : vector<8x256xf32> to vector<8x32xf32>
    %115 = vector.extract_strided_slice %105 {offsets = [0, 192], sizes = [8, 32], strides = [1, 1]} : vector<8x256xf32> to vector<8x32xf32>
    %116 = arith.mulf %114, %115 : vector<8x32xf32>
    %117 = arith.addf %113, %116 : vector<8x32xf32>
    %118 = vector.extract_strided_slice %104 {offsets = [0, 96], sizes = [8, 32], strides = [1, 1]} : vector<8x256xf32> to vector<8x32xf32>
    %119 = math.tanh %111 : vector<8x32xf32>
    %120 = arith.mulf %118, %119 : vector<8x32xf32>
    %121 = vector.extract_strided_slice %104 {offsets = [0, 224], sizes = [8, 32], strides = [1, 1]} : vector<8x256xf32> to vector<8x32xf32>
    %122 = math.tanh %117 : vector<8x32xf32>
    %123 = arith.mulf %121, %122 : vector<8x32xf32>
    %c16_46 = arith.constant 16 : index
    %c0_47 = arith.constant 0 : index
    %124 = vector.load %arg15[%c16_46, %c0_47] : memref<64x64xf32, #tpu.memory_space<vmem>>, vector<8x32xf32>
    tpu.vector_store %arg15[%c16_46, %c0_47], %120 {strides = array<i32>} : memref<64x64xf32, #tpu.memory_space<vmem>>, vector<8x32xf32>,
    %c40_48 = arith.constant 40 : index
    %c32_49 = arith.constant 32 : index
    %125 = vector.load %arg15[%c40_48, %c32_49] : memref<64x64xf32, #tpu.memory_space<vmem>>, vector<8x32xf32>
    tpu.vector_store %arg15[%c40_48, %c32_49], %123 {strides = array<i32>} : memref<64x64xf32, #tpu.memory_space<vmem>>, vector<8x32xf32>,
    %126 = tpu.concatenate %120, %123 in 1 : vector<8x32xf32>, vector<8x32xf32> -> vector<8x64xf32>
    %127 = arith.truncf %126 : vector<8x64xf32> to vector<8x64xbf16>
    %c24_50 = arith.constant 24 : index
    %c0_51 = arith.constant 0 : index
    %128 = vector.load %arg14[%c24_50, %c0_51] : memref<64x256xf32, #tpu.memory_space<vmem>>, vector<8x256xf32>
    %cst_52 = arith.constant dense<0.000000e+00> : vector<8x256xf32>
    %129 = tpu.matmul %127, %28, %cst_52 {dimension_numbers = #tpu.dot_dimension_numbers<[1], [0], [0], [1], [0, 0, 1, 1], [], []>} : vector<8x64xbf16>, vector<64x256xbf16>, vector<8x256xf32> -> vector<8x256xf32>
    %130 = arith.addf %128, %129 : vector<8x256xf32>
    %131 = arith.negf %130 : vector<8x256xf32>
    %132 = math.exp %131 : vector<8x256xf32>
    %cst_53 = arith.constant 1.000000e+00 : f32
    %133 = vector.broadcast %cst_53 : f32 to vector<8x256xf32>
    %134 = arith.addf %133, %132 : vector<8x256xf32>
    %135 = arith.divf %133, %134 : vector<8x256xf32>
    %136 = math.tanh %130 : vector<8x256xf32>
    %137 = vector.extract_strided_slice %135 {offsets = [0, 32], sizes = [8, 32], strides = [1, 1]} : vector<8x256xf32> to vector<8x32xf32>
    %138 = arith.mulf %137, %111 : vector<8x32xf32>
    %139 = vector.extract_strided_slice %135 {offsets = [0, 0], sizes = [8, 32], strides = [1, 1]} : vector<8x256xf32> to vector<8x32xf32>
    %140 = vector.extract_strided_slice %136 {offsets = [0, 64], sizes = [8, 32], strides = [1, 1]} : vector<8x256xf32> to vector<8x32xf32>
    %141 = arith.mulf %139, %140 : vector<8x32xf32>
    %142 = arith.addf %138, %141 : vector<8x32xf32>
    %143 = vector.extract_strided_slice %135 {offsets = [0, 160], sizes = [8, 32], strides = [1, 1]} : vector<8x256xf32> to vector<8x32xf32>
    %144 = arith.mulf %143, %117 : vector<8x32xf32>
    %145 = vector.extract_strided_slice %135 {offsets = [0, 128], sizes = [8, 32], strides = [1, 1]} : vector<8x256xf32> to vector<8x32xf32>
    %146 = vector.extract_strided_slice %136 {offsets = [0, 192], sizes = [8, 32], strides = [1, 1]} : vector<8x256xf32> to vector<8x32xf32>
    %147 = arith.mulf %145, %146 : vector<8x32xf32>
    %148 = arith.addf %144, %147 : vector<8x32xf32>
    %149 = vector.extract_strided_slice %135 {offsets = [0, 96], sizes = [8, 32], strides = [1, 1]} : vector<8x256xf32> to vector<8x32xf32>
    %150 = math.tanh %142 : vector<8x32xf32>
    %151 = arith.mulf %149, %150 : vector<8x32xf32>
    %152 = vector.extract_strided_slice %135 {offsets = [0, 224], sizes = [8, 32], strides = [1, 1]} : vector<8x256xf32> to vector<8x32xf32>
    %153 = math.tanh %148 : vector<8x32xf32>
    %154 = arith.mulf %152, %153 : vector<8x32xf32>
    %c24_54 = arith.constant 24 : index
    %c0_55 = arith.constant 0 : index
    %155 = vector.load %arg15[%c24_54, %c0_55] : memref<64x64xf32, #tpu.memory_space<vmem>>, vector<8x32xf32>
    tpu.vector_store %arg15[%c24_54, %c0_55], %151 {strides = array<i32>} : memref<64x64xf32, #tpu.memory_space<vmem>>, vector<8x32xf32>,
    %c32_56 = arith.constant 32 : index
    %c32_57 = arith.constant 32 : index
    %156 = vector.load %arg15[%c32_56, %c32_57] : memref<64x64xf32, #tpu.memory_space<vmem>>, vector<8x32xf32>
    tpu.vector_store %arg15[%c32_56, %c32_57], %154 {strides = array<i32>} : memref<64x64xf32, #tpu.memory_space<vmem>>, vector<8x32xf32>,
    %157 = tpu.concatenate %151, %154 in 1 : vector<8x32xf32>, vector<8x32xf32> -> vector<8x64xf32>
    %158 = arith.truncf %157 : vector<8x64xf32> to vector<8x64xbf16>
    %c32_58 = arith.constant 32 : index
    %c0_59 = arith.constant 0 : index
    %159 = vector.load %arg14[%c32_58, %c0_59] : memref<64x256xf32, #tpu.memory_space<vmem>>, vector<8x256xf32>
    %cst_60 = arith.constant dense<0.000000e+00> : vector<8x256xf32>
    %160 = tpu.matmul %158, %28, %cst_60 {dimension_numbers = #tpu.dot_dimension_numbers<[1], [0], [0], [1], [0, 0, 1, 1], [], []>} : vector<8x64xbf16>, vector<64x256xbf16>, vector<8x256xf32> -> vector<8x256xf32>
    %161 = arith.addf %159, %160 : vector<8x256xf32>
    %162 = arith.negf %161 : vector<8x256xf32>
    %163 = math.exp %162 : vector<8x256xf32>
    %cst_61 = arith.constant 1.000000e+00 : f32
    %164 = vector.broadcast %cst_61 : f32 to vector<8x256xf32>
    %165 = arith.addf %164, %163 : vector<8x256xf32>
    %166 = arith.divf %164, %165 : vector<8x256xf32>
    %167 = math.tanh %161 : vector<8x256xf32>
    %168 = vector.extract_strided_slice %166 {offsets = [0, 32], sizes = [8, 32], strides = [1, 1]} : vector<8x256xf32> to vector<8x32xf32>
    %169 = arith.mulf %168, %142 : vector<8x32xf32>
    %170 = vector.extract_strided_slice %166 {offsets = [0, 0], sizes = [8, 32], strides = [1, 1]} : vector<8x256xf32> to vector<8x32xf32>
    %171 = vector.extract_strided_slice %167 {offsets = [0, 64], sizes = [8, 32], strides = [1, 1]} : vector<8x256xf32> to vector<8x32xf32>
    %172 = arith.mulf %170, %171 : vector<8x32xf32>
    %173 = arith.addf %169, %172 : vector<8x32xf32>
    %174 = vector.extract_strided_slice %166 {offsets = [0, 160], sizes = [8, 32], strides = [1, 1]} : vector<8x256xf32> to vector<8x32xf32>
    %175 = arith.mulf %174, %148 : vector<8x32xf32>
    %176 = vector.extract_strided_slice %166 {offsets = [0, 128], sizes = [8, 32], strides = [1, 1]} : vector<8x256xf32> to vector<8x32xf32>
    %177 = vector.extract_strided_slice %167 {offsets = [0, 192], sizes = [8, 32], strides = [1, 1]} : vector<8x256xf32> to vector<8x32xf32>
    %178 = arith.mulf %176, %177 : vector<8x32xf32>
    %179 = arith.addf %175, %178 : vector<8x32xf32>
    %180 = vector.extract_strided_slice %166 {offsets = [0, 96], sizes = [8, 32], strides = [1, 1]} : vector<8x256xf32> to vector<8x32xf32>
    %181 = math.tanh %173 : vector<8x32xf32>
    %182 = arith.mulf %180, %181 : vector<8x32xf32>
    %183 = vector.extract_strided_slice %166 {offsets = [0, 224], sizes = [8, 32], strides = [1, 1]} : vector<8x256xf32> to vector<8x32xf32>
    %184 = math.tanh %179 : vector<8x32xf32>
    %185 = arith.mulf %183, %184 : vector<8x32xf32>
    %c32_62 = arith.constant 32 : index
    %c0_63 = arith.constant 0 : index
    %186 = vector.load %arg15[%c32_62, %c0_63] : memref<64x64xf32, #tpu.memory_space<vmem>>, vector<8x32xf32>
    tpu.vector_store %arg15[%c32_62, %c0_63], %182 {strides = array<i32>} : memref<64x64xf32, #tpu.memory_space<vmem>>, vector<8x32xf32>,
    %c24_64 = arith.constant 24 : index
    %c32_65 = arith.constant 32 : index
    %187 = vector.load %arg15[%c24_64, %c32_65] : memref<64x64xf32, #tpu.memory_space<vmem>>, vector<8x32xf32>
    tpu.vector_store %arg15[%c24_64, %c32_65], %185 {strides = array<i32>} : memref<64x64xf32, #tpu.memory_space<vmem>>, vector<8x32xf32>,
    %188 = tpu.concatenate %182, %185 in 1 : vector<8x32xf32>, vector<8x32xf32> -> vector<8x64xf32>
    %189 = arith.truncf %188 : vector<8x64xf32> to vector<8x64xbf16>
    %c40_66 = arith.constant 40 : index
    %c0_67 = arith.constant 0 : index
    %190 = vector.load %arg14[%c40_66, %c0_67] : memref<64x256xf32, #tpu.memory_space<vmem>>, vector<8x256xf32>
    %cst_68 = arith.constant dense<0.000000e+00> : vector<8x256xf32>
    %191 = tpu.matmul %189, %28, %cst_68 {dimension_numbers = #tpu.dot_dimension_numbers<[1], [0], [0], [1], [0, 0, 1, 1], [], []>} : vector<8x64xbf16>, vector<64x256xbf16>, vector<8x256xf32> -> vector<8x256xf32>
    %192 = arith.addf %190, %191 : vector<8x256xf32>
    %193 = arith.negf %192 : vector<8x256xf32>
    %194 = math.exp %193 : vector<8x256xf32>
    %cst_69 = arith.constant 1.000000e+00 : f32
    %195 = vector.broadcast %cst_69 : f32 to vector<8x256xf32>
    %196 = arith.addf %195, %194 : vector<8x256xf32>
    %197 = arith.divf %195, %196 : vector<8x256xf32>
    %198 = math.tanh %192 : vector<8x256xf32>
    %199 = vector.extract_strided_slice %197 {offsets = [0, 32], sizes = [8, 32], strides = [1, 1]} : vector<8x256xf32> to vector<8x32xf32>
    %200 = arith.mulf %199, %173 : vector<8x32xf32>
    %201 = vector.extract_strided_slice %197 {offsets = [0, 0], sizes = [8, 32], strides = [1, 1]} : vector<8x256xf32> to vector<8x32xf32>
    %202 = vector.extract_strided_slice %198 {offsets = [0, 64], sizes = [8, 32], strides = [1, 1]} : vector<8x256xf32> to vector<8x32xf32>
    %203 = arith.mulf %201, %202 : vector<8x32xf32>
    %204 = arith.addf %200, %203 : vector<8x32xf32>
    %205 = vector.extract_strided_slice %197 {offsets = [0, 160], sizes = [8, 32], strides = [1, 1]} : vector<8x256xf32> to vector<8x32xf32>
    %206 = arith.mulf %205, %179 : vector<8x32xf32>
    %207 = vector.extract_strided_slice %197 {offsets = [0, 128], sizes = [8, 32], strides = [1, 1]} : vector<8x256xf32> to vector<8x32xf32>
    %208 = vector.extract_strided_slice %198 {offsets = [0, 192], sizes = [8, 32], strides = [1, 1]} : vector<8x256xf32> to vector<8x32xf32>
    %209 = arith.mulf %207, %208 : vector<8x32xf32>
    %210 = arith.addf %206, %209 : vector<8x32xf32>
    %211 = vector.extract_strided_slice %197 {offsets = [0, 96], sizes = [8, 32], strides = [1, 1]} : vector<8x256xf32> to vector<8x32xf32>
    %212 = math.tanh %204 : vector<8x32xf32>
    %213 = arith.mulf %211, %212 : vector<8x32xf32>
    %214 = vector.extract_strided_slice %197 {offsets = [0, 224], sizes = [8, 32], strides = [1, 1]} : vector<8x256xf32> to vector<8x32xf32>
    %215 = math.tanh %210 : vector<8x32xf32>
    %216 = arith.mulf %214, %215 : vector<8x32xf32>
    %c40_70 = arith.constant 40 : index
    %c0_71 = arith.constant 0 : index
    %217 = vector.load %arg15[%c40_70, %c0_71] : memref<64x64xf32, #tpu.memory_space<vmem>>, vector<8x32xf32>
    tpu.vector_store %arg15[%c40_70, %c0_71], %213 {strides = array<i32>} : memref<64x64xf32, #tpu.memory_space<vmem>>, vector<8x32xf32>,
    %c16_72 = arith.constant 16 : index
    %c32_73 = arith.constant 32 : index
    %218 = vector.load %arg15[%c16_72, %c32_73] : memref<64x64xf32, #tpu.memory_space<vmem>>, vector<8x32xf32>
    tpu.vector_store %arg15[%c16_72, %c32_73], %216 {strides = array<i32>} : memref<64x64xf32, #tpu.memory_space<vmem>>, vector<8x32xf32>,
    %219 = tpu.concatenate %213, %216 in 1 : vector<8x32xf32>, vector<8x32xf32> -> vector<8x64xf32>
    %220 = arith.truncf %219 : vector<8x64xf32> to vector<8x64xbf16>
    %c48_74 = arith.constant 48 : index
    %c0_75 = arith.constant 0 : index
    %221 = vector.load %arg14[%c48_74, %c0_75] : memref<64x256xf32, #tpu.memory_space<vmem>>, vector<8x256xf32>
    %cst_76 = arith.constant dense<0.000000e+00> : vector<8x256xf32>
    %222 = tpu.matmul %220, %28, %cst_76 {dimension_numbers = #tpu.dot_dimension_numbers<[1], [0], [0], [1], [0, 0, 1, 1], [], []>} : vector<8x64xbf16>, vector<64x256xbf16>, vector<8x256xf32> -> vector<8x256xf32>
    %223 = arith.addf %221, %222 : vector<8x256xf32>
    %224 = arith.negf %223 : vector<8x256xf32>
    %225 = math.exp %224 : vector<8x256xf32>
    %cst_77 = arith.constant 1.000000e+00 : f32
    %226 = vector.broadcast %cst_77 : f32 to vector<8x256xf32>
    %227 = arith.addf %226, %225 : vector<8x256xf32>
    %228 = arith.divf %226, %227 : vector<8x256xf32>
    %229 = math.tanh %223 : vector<8x256xf32>
    %230 = vector.extract_strided_slice %228 {offsets = [0, 32], sizes = [8, 32], strides = [1, 1]} : vector<8x256xf32> to vector<8x32xf32>
    %231 = arith.mulf %230, %204 : vector<8x32xf32>
    %232 = vector.extract_strided_slice %228 {offsets = [0, 0], sizes = [8, 32], strides = [1, 1]} : vector<8x256xf32> to vector<8x32xf32>
    %233 = vector.extract_strided_slice %229 {offsets = [0, 64], sizes = [8, 32], strides = [1, 1]} : vector<8x256xf32> to vector<8x32xf32>
    %234 = arith.mulf %232, %233 : vector<8x32xf32>
    %235 = arith.addf %231, %234 : vector<8x32xf32>
    %236 = vector.extract_strided_slice %228 {offsets = [0, 160], sizes = [8, 32], strides = [1, 1]} : vector<8x256xf32> to vector<8x32xf32>
    %237 = arith.mulf %236, %210 : vector<8x32xf32>
    %238 = vector.extract_strided_slice %228 {offsets = [0, 128], sizes = [8, 32], strides = [1, 1]} : vector<8x256xf32> to vector<8x32xf32>
    %239 = vector.extract_strided_slice %229 {offsets = [0, 192], sizes = [8, 32], strides = [1, 1]} : vector<8x256xf32> to vector<8x32xf32>
    %240 = arith.mulf %238, %239 : vector<8x32xf32>
    %241 = arith.addf %237, %240 : vector<8x32xf32>
    %242 = vector.extract_strided_slice %228 {offsets = [0, 96], sizes = [8, 32], strides = [1, 1]} : vector<8x256xf32> to vector<8x32xf32>
    %243 = math.tanh %235 : vector<8x32xf32>
    %244 = arith.mulf %242, %243 : vector<8x32xf32>
    %245 = vector.extract_strided_slice %228 {offsets = [0, 224], sizes = [8, 32], strides = [1, 1]} : vector<8x256xf32> to vector<8x32xf32>
    %246 = math.tanh %241 : vector<8x32xf32>
    %247 = arith.mulf %245, %246 : vector<8x32xf32>
    %c48_78 = arith.constant 48 : index
    %c0_79 = arith.constant 0 : index
    %248 = vector.load %arg15[%c48_78, %c0_79] : memref<64x64xf32, #tpu.memory_space<vmem>>, vector<8x32xf32>
    tpu.vector_store %arg15[%c48_78, %c0_79], %244 {strides = array<i32>} : memref<64x64xf32, #tpu.memory_space<vmem>>, vector<8x32xf32>,
    %c8_80 = arith.constant 8 : index
    %c32_81 = arith.constant 32 : index
    %249 = vector.load %arg15[%c8_80, %c32_81] : memref<64x64xf32, #tpu.memory_space<vmem>>, vector<8x32xf32>
    tpu.vector_store %arg15[%c8_80, %c32_81], %247 {strides = array<i32>} : memref<64x64xf32, #tpu.memory_space<vmem>>, vector<8x32xf32>,
    %250 = tpu.concatenate %244, %247 in 1 : vector<8x32xf32>, vector<8x32xf32> -> vector<8x64xf32>
    %251 = arith.truncf %250 : vector<8x64xf32> to vector<8x64xbf16>
    %c56_82 = arith.constant 56 : index
    %c0_83 = arith.constant 0 : index
    %252 = vector.load %arg14[%c56_82, %c0_83] : memref<64x256xf32, #tpu.memory_space<vmem>>, vector<8x256xf32>
    %cst_84 = arith.constant dense<0.000000e+00> : vector<8x256xf32>
    %253 = tpu.matmul %251, %28, %cst_84 {dimension_numbers = #tpu.dot_dimension_numbers<[1], [0], [0], [1], [0, 0, 1, 1], [], []>} : vector<8x64xbf16>, vector<64x256xbf16>, vector<8x256xf32> -> vector<8x256xf32>
    %254 = arith.addf %252, %253 : vector<8x256xf32>
    %255 = arith.negf %254 : vector<8x256xf32>
    %256 = math.exp %255 : vector<8x256xf32>
    %cst_85 = arith.constant 1.000000e+00 : f32
    %257 = vector.broadcast %cst_85 : f32 to vector<8x256xf32>
    %258 = arith.addf %257, %256 : vector<8x256xf32>
    %259 = arith.divf %257, %258 : vector<8x256xf32>
    %260 = math.tanh %254 : vector<8x256xf32>
    %261 = vector.extract_strided_slice %259 {offsets = [0, 32], sizes = [8, 32], strides = [1, 1]} : vector<8x256xf32> to vector<8x32xf32>
    %262 = arith.mulf %261, %235 : vector<8x32xf32>
    %263 = vector.extract_strided_slice %259 {offsets = [0, 0], sizes = [8, 32], strides = [1, 1]} : vector<8x256xf32> to vector<8x32xf32>
    %264 = vector.extract_strided_slice %260 {offsets = [0, 64], sizes = [8, 32], strides = [1, 1]} : vector<8x256xf32> to vector<8x32xf32>
    %265 = arith.mulf %263, %264 : vector<8x32xf32>
    %266 = arith.addf %262, %265 : vector<8x32xf32>
    %267 = vector.extract_strided_slice %259 {offsets = [0, 160], sizes = [8, 32], strides = [1, 1]} : vector<8x256xf32> to vector<8x32xf32>
    %268 = arith.mulf %267, %241 : vector<8x32xf32>
    %269 = vector.extract_strided_slice %259 {offsets = [0, 128], sizes = [8, 32], strides = [1, 1]} : vector<8x256xf32> to vector<8x32xf32>
    %270 = vector.extract_strided_slice %260 {offsets = [0, 192], sizes = [8, 32], strides = [1, 1]} : vector<8x256xf32> to vector<8x32xf32>
    %271 = arith.mulf %269, %270 : vector<8x32xf32>
    %272 = arith.addf %268, %271 : vector<8x32xf32>
    %273 = vector.extract_strided_slice %259 {offsets = [0, 96], sizes = [8, 32], strides = [1, 1]} : vector<8x256xf32> to vector<8x32xf32>
    %274 = math.tanh %266 : vector<8x32xf32>
    %275 = arith.mulf %273, %274 : vector<8x32xf32>
    %276 = vector.extract_strided_slice %259 {offsets = [0, 224], sizes = [8, 32], strides = [1, 1]} : vector<8x256xf32> to vector<8x32xf32>
    %277 = math.tanh %272 : vector<8x32xf32>
    %278 = arith.mulf %276, %277 : vector<8x32xf32>
    %c56_86 = arith.constant 56 : index
    %c0_87 = arith.constant 0 : index
    %279 = vector.load %arg15[%c56_86, %c0_87] : memref<64x64xf32, #tpu.memory_space<vmem>>, vector<8x32xf32>
    tpu.vector_store %arg15[%c56_86, %c0_87], %275 {strides = array<i32>} : memref<64x64xf32, #tpu.memory_space<vmem>>, vector<8x32xf32>,
    %c0_88 = arith.constant 0 : index
    %c32_89 = arith.constant 32 : index
    %280 = vector.load %arg15[%c0_88, %c32_89] : memref<64x64xf32, #tpu.memory_space<vmem>>, vector<8x32xf32>
    tpu.vector_store %arg15[%c0_88, %c32_89], %278 {strides = array<i32>} : memref<64x64xf32, #tpu.memory_space<vmem>>, vector<8x32xf32>,
    %c0_90 = arith.constant 0 : index
    %c0_91 = arith.constant 0 : index
    %281 = vector.load %arg15[%c0_90, %c0_91] : memref<64x64xf32, #tpu.memory_space<vmem>>, vector<64x64xf32>
    %282 = arith.truncf %281 : vector<64x64xf32> to vector<64x64xbf16>
    %c0_92 = arith.constant 0 : index
    %c0_93 = arith.constant 0 : index
    %283 = vector.load %arg8[%c0_92, %c0_93] : memref<1x128xf32, #tpu.memory_space<vmem>>, vector<1x128xf32>
    %c0_94 = arith.constant 0 : index
    %c0_95 = arith.constant 0 : index
    %284 = vector.load %arg6[%c0_94, %c0_95] : memref<64x128xbf16, #tpu.memory_space<vmem>>, vector<64x128xbf16>
    %cst_96 = arith.constant dense<0.000000e+00> : vector<64x128xf32>
    %285 = tpu.matmul %282, %284, %cst_96 {dimension_numbers = #tpu.dot_dimension_numbers<[1], [0], [0], [1], [0, 0, 1, 1], [], []>} : vector<64x64xbf16>, vector<64x128xbf16>, vector<64x128xf32> -> vector<64x128xf32>
    %286 = vector.broadcast %283 : vector<1x128xf32> to vector<64x128xf32>
    %287 = arith.addf %286, %285 : vector<64x128xf32>
    %c0_97 = arith.constant 0 : index
    %c0_98 = arith.constant 0 : index
    %288 = vector.load %arg9[%c0_97, %c0_98] : memref<1x128xf32, #tpu.memory_space<vmem>>, vector<1x128xf32>
    %c0_99 = arith.constant 0 : index
    %c0_100 = arith.constant 0 : index
    %289 = vector.load %arg7[%c0_99, %c0_100] : memref<64x128xbf16, #tpu.memory_space<vmem>>, vector<64x128xbf16>
    %cst_101 = arith.constant dense<0.000000e+00> : vector<64x128xf32>
    %290 = tpu.matmul %282, %289, %cst_101 {dimension_numbers = #tpu.dot_dimension_numbers<[1], [0], [0], [1], [0, 0, 1, 1], [], []>} : vector<64x64xbf16>, vector<64x128xbf16>, vector<64x128xf32> -> vector<64x128xf32>
    %291 = vector.broadcast %288 : vector<1x128xf32> to vector<64x128xf32>
    %292 = arith.addf %291, %290 : vector<64x128xf32>
    %c0_102 = arith.constant 0 : index
    %c0_103 = arith.constant 0 : index
    %293 = vector.load %arg14[%c0_102, %c0_103] : memref<64x256xf32, #tpu.memory_space<vmem>>, vector<64x128xf32>
    tpu.vector_store %arg14[%c0_102, %c0_103], %287 {strides = array<i32>} : memref<64x256xf32, #tpu.memory_space<vmem>>, vector<64x128xf32>,
    %294 = vector.extract_strided_slice %292 {offsets = [0, 0], sizes = [8, 128], strides = [1, 1]} : vector<64x128xf32> to vector<8x128xf32>
    %c56_104 = arith.constant 56 : index
    %c128_105 = arith.constant 128 : index
    %295 = vector.load %arg14[%c56_104, %c128_105] : memref<64x256xf32, #tpu.memory_space<vmem>>, vector<8x128xf32>
    tpu.vector_store %arg14[%c56_104, %c128_105], %294 {strides = array<i32>} : memref<64x256xf32, #tpu.memory_space<vmem>>, vector<8x128xf32>,
    %296 = vector.extract_strided_slice %292 {offsets = [8, 0], sizes = [8, 128], strides = [1, 1]} : vector<64x128xf32> to vector<8x128xf32>
    %c48_106 = arith.constant 48 : index
    %c128_107 = arith.constant 128 : index
    %297 = vector.load %arg14[%c48_106, %c128_107] : memref<64x256xf32, #tpu.memory_space<vmem>>, vector<8x128xf32>
    tpu.vector_store %arg14[%c48_106, %c128_107], %296 {strides = array<i32>} : memref<64x256xf32, #tpu.memory_space<vmem>>, vector<8x128xf32>,
    %298 = vector.extract_strided_slice %292 {offsets = [16, 0], sizes = [8, 128], strides = [1, 1]} : vector<64x128xf32> to vector<8x128xf32>
    %c40_108 = arith.constant 40 : index
    %c128_109 = arith.constant 128 : index
    %299 = vector.load %arg14[%c40_108, %c128_109] : memref<64x256xf32, #tpu.memory_space<vmem>>, vector<8x128xf32>
    tpu.vector_store %arg14[%c40_108, %c128_109], %298 {strides = array<i32>} : memref<64x256xf32, #tpu.memory_space<vmem>>, vector<8x128xf32>,
    %300 = vector.extract_strided_slice %292 {offsets = [24, 0], sizes = [8, 128], strides = [1, 1]} : vector<64x128xf32> to vector<8x128xf32>
    %c32_110 = arith.constant 32 : index
    %c128_111 = arith.constant 128 : index
    %301 = vector.load %arg14[%c32_110, %c128_111] : memref<64x256xf32, #tpu.memory_space<vmem>>, vector<8x128xf32>
    tpu.vector_store %arg14[%c32_110, %c128_111], %300 {strides = array<i32>} : memref<64x256xf32, #tpu.memory_space<vmem>>, vector<8x128xf32>,
    %302 = vector.extract_strided_slice %292 {offsets = [32, 0], sizes = [8, 128], strides = [1, 1]} : vector<64x128xf32> to vector<8x128xf32>
    %c24_112 = arith.constant 24 : index
    %c128_113 = arith.constant 128 : index
    %303 = vector.load %arg14[%c24_112, %c128_113] : memref<64x256xf32, #tpu.memory_space<vmem>>, vector<8x128xf32>
    tpu.vector_store %arg14[%c24_112, %c128_113], %302 {strides = array<i32>} : memref<64x256xf32, #tpu.memory_space<vmem>>, vector<8x128xf32>,
    %304 = vector.extract_strided_slice %292 {offsets = [40, 0], sizes = [8, 128], strides = [1, 1]} : vector<64x128xf32> to vector<8x128xf32>
    %c16_114 = arith.constant 16 : index
    %c128_115 = arith.constant 128 : index
    %305 = vector.load %arg14[%c16_114, %c128_115] : memref<64x256xf32, #tpu.memory_space<vmem>>, vector<8x128xf32>
    tpu.vector_store %arg14[%c16_114, %c128_115], %304 {strides = array<i32>} : memref<64x256xf32, #tpu.memory_space<vmem>>, vector<8x128xf32>,
    %306 = vector.extract_strided_slice %292 {offsets = [48, 0], sizes = [8, 128], strides = [1, 1]} : vector<64x128xf32> to vector<8x128xf32>
    %c8_116 = arith.constant 8 : index
    %c128_117 = arith.constant 128 : index
    %307 = vector.load %arg14[%c8_116, %c128_117] : memref<64x256xf32, #tpu.memory_space<vmem>>, vector<8x128xf32>
    tpu.vector_store %arg14[%c8_116, %c128_117], %306 {strides = array<i32>} : memref<64x256xf32, #tpu.memory_space<vmem>>, vector<8x128xf32>,
    %308 = vector.extract_strided_slice %292 {offsets = [56, 0], sizes = [8, 128], strides = [1, 1]} : vector<64x128xf32> to vector<8x128xf32>
    %c0_118 = arith.constant 0 : index
    %c128_119 = arith.constant 128 : index
    %309 = vector.load %arg14[%c0_118, %c128_119] : memref<64x256xf32, #tpu.memory_space<vmem>>, vector<8x128xf32>
    tpu.vector_store %arg14[%c0_118, %c128_119], %308 {strides = array<i32>} : memref<64x256xf32, #tpu.memory_space<vmem>>, vector<8x128xf32>,
    %c0_120 = arith.constant 0 : index
    %c0_121 = arith.constant 0 : index
    %310 = vector.load %arg10[%c0_120, %c0_121] : memref<64x256xbf16, #tpu.memory_space<vmem>>, vector<64x256xbf16>
    %cst_122 = arith.constant 0.000000e+00 : f32
    %311 = vector.broadcast %cst_122 : f32 to vector<8x32xf32>
    %cst_123 = arith.constant 0.000000e+00 : f32
    %312 = vector.broadcast %cst_123 : f32 to vector<8x32xf32>
    %cst_124 = arith.constant 0.000000e+00 : f32
    %313 = vector.broadcast %cst_124 : f32 to vector<8x32xf32>
    %cst_125 = arith.constant 0.000000e+00 : f32
    %314 = vector.broadcast %cst_125 : f32 to vector<8x32xf32>
    %315 = tpu.concatenate %311, %312 in 1 : vector<8x32xf32>, vector<8x32xf32> -> vector<8x64xf32>
    %316 = arith.truncf %315 : vector<8x64xf32> to vector<8x64xbf16>
    %c0_126 = arith.constant 0 : index
    %c0_127 = arith.constant 0 : index
    %317 = vector.load %arg14[%c0_126, %c0_127] : memref<64x256xf32, #tpu.memory_space<vmem>>, vector<8x256xf32>
    %cst_128 = arith.constant dense<0.000000e+00> : vector<8x256xf32>
    %318 = tpu.matmul %316, %310, %cst_128 {dimension_numbers = #tpu.dot_dimension_numbers<[1], [0], [0], [1], [0, 0, 1, 1], [], []>} : vector<8x64xbf16>, vector<64x256xbf16>, vector<8x256xf32> -> vector<8x256xf32>
    %319 = arith.addf %317, %318 : vector<8x256xf32>
    %320 = arith.negf %319 : vector<8x256xf32>
    %321 = math.exp %320 : vector<8x256xf32>
    %cst_129 = arith.constant 1.000000e+00 : f32
    %322 = vector.broadcast %cst_129 : f32 to vector<8x256xf32>
    %323 = arith.addf %322, %321 : vector<8x256xf32>
    %324 = arith.divf %322, %323 : vector<8x256xf32>
    %325 = math.tanh %319 : vector<8x256xf32>
    %326 = vector.extract_strided_slice %324 {offsets = [0, 32], sizes = [8, 32], strides = [1, 1]} : vector<8x256xf32> to vector<8x32xf32>
    %327 = arith.mulf %326, %313 : vector<8x32xf32>
    %328 = vector.extract_strided_slice %324 {offsets = [0, 0], sizes = [8, 32], strides = [1, 1]} : vector<8x256xf32> to vector<8x32xf32>
    %329 = vector.extract_strided_slice %325 {offsets = [0, 64], sizes = [8, 32], strides = [1, 1]} : vector<8x256xf32> to vector<8x32xf32>
    %330 = arith.mulf %328, %329 : vector<8x32xf32>
    %331 = arith.addf %327, %330 : vector<8x32xf32>
    %332 = vector.extract_strided_slice %324 {offsets = [0, 160], sizes = [8, 32], strides = [1, 1]} : vector<8x256xf32> to vector<8x32xf32>
    %333 = arith.mulf %332, %314 : vector<8x32xf32>
    %334 = vector.extract_strided_slice %324 {offsets = [0, 128], sizes = [8, 32], strides = [1, 1]} : vector<8x256xf32> to vector<8x32xf32>
    %335 = vector.extract_strided_slice %325 {offsets = [0, 192], sizes = [8, 32], strides = [1, 1]} : vector<8x256xf32> to vector<8x32xf32>
    %336 = arith.mulf %334, %335 : vector<8x32xf32>
    %337 = arith.addf %333, %336 : vector<8x32xf32>
    %338 = vector.extract_strided_slice %324 {offsets = [0, 96], sizes = [8, 32], strides = [1, 1]} : vector<8x256xf32> to vector<8x32xf32>
    %339 = math.tanh %331 : vector<8x32xf32>
    %340 = arith.mulf %338, %339 : vector<8x32xf32>
    %341 = vector.extract_strided_slice %324 {offsets = [0, 224], sizes = [8, 32], strides = [1, 1]} : vector<8x256xf32> to vector<8x32xf32>
    %342 = math.tanh %337 : vector<8x32xf32>
    %343 = arith.mulf %341, %342 : vector<8x32xf32>
    %344 = tpu.concatenate %340, %343 in 1 : vector<8x32xf32>, vector<8x32xf32> -> vector<8x64xf32>
    %345 = arith.truncf %344 : vector<8x64xf32> to vector<8x64xbf16>
    %c8_130 = arith.constant 8 : index
    %c0_131 = arith.constant 0 : index
    %346 = vector.load %arg14[%c8_130, %c0_131] : memref<64x256xf32, #tpu.memory_space<vmem>>, vector<8x256xf32>
    %cst_132 = arith.constant dense<0.000000e+00> : vector<8x256xf32>
    %347 = tpu.matmul %345, %310, %cst_132 {dimension_numbers = #tpu.dot_dimension_numbers<[1], [0], [0], [1], [0, 0, 1, 1], [], []>} : vector<8x64xbf16>, vector<64x256xbf16>, vector<8x256xf32> -> vector<8x256xf32>
    %348 = arith.addf %346, %347 : vector<8x256xf32>
    %349 = arith.negf %348 : vector<8x256xf32>
    %350 = math.exp %349 : vector<8x256xf32>
    %cst_133 = arith.constant 1.000000e+00 : f32
    %351 = vector.broadcast %cst_133 : f32 to vector<8x256xf32>
    %352 = arith.addf %351, %350 : vector<8x256xf32>
    %353 = arith.divf %351, %352 : vector<8x256xf32>
    %354 = math.tanh %348 : vector<8x256xf32>
    %355 = vector.extract_strided_slice %353 {offsets = [0, 32], sizes = [8, 32], strides = [1, 1]} : vector<8x256xf32> to vector<8x32xf32>
    %356 = arith.mulf %355, %331 : vector<8x32xf32>
    %357 = vector.extract_strided_slice %353 {offsets = [0, 0], sizes = [8, 32], strides = [1, 1]} : vector<8x256xf32> to vector<8x32xf32>
    %358 = vector.extract_strided_slice %354 {offsets = [0, 64], sizes = [8, 32], strides = [1, 1]} : vector<8x256xf32> to vector<8x32xf32>
    %359 = arith.mulf %357, %358 : vector<8x32xf32>
    %360 = arith.addf %356, %359 : vector<8x32xf32>
    %361 = vector.extract_strided_slice %353 {offsets = [0, 160], sizes = [8, 32], strides = [1, 1]} : vector<8x256xf32> to vector<8x32xf32>
    %362 = arith.mulf %361, %337 : vector<8x32xf32>
    %363 = vector.extract_strided_slice %353 {offsets = [0, 128], sizes = [8, 32], strides = [1, 1]} : vector<8x256xf32> to vector<8x32xf32>
    %364 = vector.extract_strided_slice %354 {offsets = [0, 192], sizes = [8, 32], strides = [1, 1]} : vector<8x256xf32> to vector<8x32xf32>
    %365 = arith.mulf %363, %364 : vector<8x32xf32>
    %366 = arith.addf %362, %365 : vector<8x32xf32>
    %367 = vector.extract_strided_slice %353 {offsets = [0, 96], sizes = [8, 32], strides = [1, 1]} : vector<8x256xf32> to vector<8x32xf32>
    %368 = math.tanh %360 : vector<8x32xf32>
    %369 = arith.mulf %367, %368 : vector<8x32xf32>
    %370 = vector.extract_strided_slice %353 {offsets = [0, 224], sizes = [8, 32], strides = [1, 1]} : vector<8x256xf32> to vector<8x32xf32>
    %371 = math.tanh %366 : vector<8x32xf32>
    %372 = arith.mulf %370, %371 : vector<8x32xf32>
    %373 = tpu.concatenate %369, %372 in 1 : vector<8x32xf32>, vector<8x32xf32> -> vector<8x64xf32>
    %374 = arith.truncf %373 : vector<8x64xf32> to vector<8x64xbf16>
    %c16_134 = arith.constant 16 : index
    %c0_135 = arith.constant 0 : index
    %375 = vector.load %arg14[%c16_134, %c0_135] : memref<64x256xf32, #tpu.memory_space<vmem>>, vector<8x256xf32>
    %cst_136 = arith.constant dense<0.000000e+00> : vector<8x256xf32>
    %376 = tpu.matmul %374, %310, %cst_136 {dimension_numbers = #tpu.dot_dimension_numbers<[1], [0], [0], [1], [0, 0, 1, 1], [], []>} : vector<8x64xbf16>, vector<64x256xbf16>, vector<8x256xf32> -> vector<8x256xf32>
    %377 = arith.addf %375, %376 : vector<8x256xf32>
    %378 = arith.negf %377 : vector<8x256xf32>
    %379 = math.exp %378 : vector<8x256xf32>
    %cst_137 = arith.constant 1.000000e+00 : f32
    %380 = vector.broadcast %cst_137 : f32 to vector<8x256xf32>
    %381 = arith.addf %380, %379 : vector<8x256xf32>
    %382 = arith.divf %380, %381 : vector<8x256xf32>
    %383 = math.tanh %377 : vector<8x256xf32>
    %384 = vector.extract_strided_slice %382 {offsets = [0, 32], sizes = [8, 32], strides = [1, 1]} : vector<8x256xf32> to vector<8x32xf32>
    %385 = arith.mulf %384, %360 : vector<8x32xf32>
    %386 = vector.extract_strided_slice %382 {offsets = [0, 0], sizes = [8, 32], strides = [1, 1]} : vector<8x256xf32> to vector<8x32xf32>
    %387 = vector.extract_strided_slice %383 {offsets = [0, 64], sizes = [8, 32], strides = [1, 1]} : vector<8x256xf32> to vector<8x32xf32>
    %388 = arith.mulf %386, %387 : vector<8x32xf32>
    %389 = arith.addf %385, %388 : vector<8x32xf32>
    %390 = vector.extract_strided_slice %382 {offsets = [0, 160], sizes = [8, 32], strides = [1, 1]} : vector<8x256xf32> to vector<8x32xf32>
    %391 = arith.mulf %390, %366 : vector<8x32xf32>
    %392 = vector.extract_strided_slice %382 {offsets = [0, 128], sizes = [8, 32], strides = [1, 1]} : vector<8x256xf32> to vector<8x32xf32>
    %393 = vector.extract_strided_slice %383 {offsets = [0, 192], sizes = [8, 32], strides = [1, 1]} : vector<8x256xf32> to vector<8x32xf32>
    %394 = arith.mulf %392, %393 : vector<8x32xf32>
    %395 = arith.addf %391, %394 : vector<8x32xf32>
    %396 = vector.extract_strided_slice %382 {offsets = [0, 96], sizes = [8, 32], strides = [1, 1]} : vector<8x256xf32> to vector<8x32xf32>
    %397 = math.tanh %389 : vector<8x32xf32>
    %398 = arith.mulf %396, %397 : vector<8x32xf32>
    %399 = vector.extract_strided_slice %382 {offsets = [0, 224], sizes = [8, 32], strides = [1, 1]} : vector<8x256xf32> to vector<8x32xf32>
    %400 = math.tanh %395 : vector<8x32xf32>
    %401 = arith.mulf %399, %400 : vector<8x32xf32>
    %402 = tpu.concatenate %398, %401 in 1 : vector<8x32xf32>, vector<8x32xf32> -> vector<8x64xf32>
    %403 = arith.truncf %402 : vector<8x64xf32> to vector<8x64xbf16>
    %c24_138 = arith.constant 24 : index
    %c0_139 = arith.constant 0 : index
    %404 = vector.load %arg14[%c24_138, %c0_139] : memref<64x256xf32, #tpu.memory_space<vmem>>, vector<8x256xf32>
    %cst_140 = arith.constant dense<0.000000e+00> : vector<8x256xf32>
    %405 = tpu.matmul %403, %310, %cst_140 {dimension_numbers = #tpu.dot_dimension_numbers<[1], [0], [0], [1], [0, 0, 1, 1], [], []>} : vector<8x64xbf16>, vector<64x256xbf16>, vector<8x256xf32> -> vector<8x256xf32>
    %406 = arith.addf %404, %405 : vector<8x256xf32>
    %407 = arith.negf %406 : vector<8x256xf32>
    %408 = math.exp %407 : vector<8x256xf32>
    %cst_141 = arith.constant 1.000000e+00 : f32
    %409 = vector.broadcast %cst_141 : f32 to vector<8x256xf32>
    %410 = arith.addf %409, %408 : vector<8x256xf32>
    %411 = arith.divf %409, %410 : vector<8x256xf32>
    %412 = math.tanh %406 : vector<8x256xf32>
    %413 = vector.extract_strided_slice %411 {offsets = [0, 32], sizes = [8, 32], strides = [1, 1]} : vector<8x256xf32> to vector<8x32xf32>
    %414 = arith.mulf %413, %389 : vector<8x32xf32>
    %415 = vector.extract_strided_slice %411 {offsets = [0, 0], sizes = [8, 32], strides = [1, 1]} : vector<8x256xf32> to vector<8x32xf32>
    %416 = vector.extract_strided_slice %412 {offsets = [0, 64], sizes = [8, 32], strides = [1, 1]} : vector<8x256xf32> to vector<8x32xf32>
    %417 = arith.mulf %415, %416 : vector<8x32xf32>
    %418 = arith.addf %414, %417 : vector<8x32xf32>
    %419 = vector.extract_strided_slice %411 {offsets = [0, 160], sizes = [8, 32], strides = [1, 1]} : vector<8x256xf32> to vector<8x32xf32>
    %420 = arith.mulf %419, %395 : vector<8x32xf32>
    %421 = vector.extract_strided_slice %411 {offsets = [0, 128], sizes = [8, 32], strides = [1, 1]} : vector<8x256xf32> to vector<8x32xf32>
    %422 = vector.extract_strided_slice %412 {offsets = [0, 192], sizes = [8, 32], strides = [1, 1]} : vector<8x256xf32> to vector<8x32xf32>
    %423 = arith.mulf %421, %422 : vector<8x32xf32>
    %424 = arith.addf %420, %423 : vector<8x32xf32>
    %425 = vector.extract_strided_slice %411 {offsets = [0, 96], sizes = [8, 32], strides = [1, 1]} : vector<8x256xf32> to vector<8x32xf32>
    %426 = math.tanh %418 : vector<8x32xf32>
    %427 = arith.mulf %425, %426 : vector<8x32xf32>
    %428 = vector.extract_strided_slice %411 {offsets = [0, 224], sizes = [8, 32], strides = [1, 1]} : vector<8x256xf32> to vector<8x32xf32>
    %429 = math.tanh %424 : vector<8x32xf32>
    %430 = arith.mulf %428, %429 : vector<8x32xf32>
    %431 = tpu.concatenate %427, %430 in 1 : vector<8x32xf32>, vector<8x32xf32> -> vector<8x64xf32>
    %432 = arith.truncf %431 : vector<8x64xf32> to vector<8x64xbf16>
    %c32_142 = arith.constant 32 : index
    %c0_143 = arith.constant 0 : index
    %433 = vector.load %arg14[%c32_142, %c0_143] : memref<64x256xf32, #tpu.memory_space<vmem>>, vector<8x256xf32>
    %cst_144 = arith.constant dense<0.000000e+00> : vector<8x256xf32>
    %434 = tpu.matmul %432, %310, %cst_144 {dimension_numbers = #tpu.dot_dimension_numbers<[1], [0], [0], [1], [0, 0, 1, 1], [], []>} : vector<8x64xbf16>, vector<64x256xbf16>, vector<8x256xf32> -> vector<8x256xf32>
    %435 = arith.addf %433, %434 : vector<8x256xf32>
    %436 = arith.negf %435 : vector<8x256xf32>
    %437 = math.exp %436 : vector<8x256xf32>
    %cst_145 = arith.constant 1.000000e+00 : f32
    %438 = vector.broadcast %cst_145 : f32 to vector<8x256xf32>
    %439 = arith.addf %438, %437 : vector<8x256xf32>
    %440 = arith.divf %438, %439 : vector<8x256xf32>
    %441 = math.tanh %435 : vector<8x256xf32>
    %442 = vector.extract_strided_slice %440 {offsets = [0, 32], sizes = [8, 32], strides = [1, 1]} : vector<8x256xf32> to vector<8x32xf32>
    %443 = arith.mulf %442, %418 : vector<8x32xf32>
    %444 = vector.extract_strided_slice %440 {offsets = [0, 0], sizes = [8, 32], strides = [1, 1]} : vector<8x256xf32> to vector<8x32xf32>
    %445 = vector.extract_strided_slice %441 {offsets = [0, 64], sizes = [8, 32], strides = [1, 1]} : vector<8x256xf32> to vector<8x32xf32>
    %446 = arith.mulf %444, %445 : vector<8x32xf32>
    %447 = arith.addf %443, %446 : vector<8x32xf32>
    %448 = vector.extract_strided_slice %440 {offsets = [0, 160], sizes = [8, 32], strides = [1, 1]} : vector<8x256xf32> to vector<8x32xf32>
    %449 = arith.mulf %448, %424 : vector<8x32xf32>
    %450 = vector.extract_strided_slice %440 {offsets = [0, 128], sizes = [8, 32], strides = [1, 1]} : vector<8x256xf32> to vector<8x32xf32>
    %451 = vector.extract_strided_slice %441 {offsets = [0, 192], sizes = [8, 32], strides = [1, 1]} : vector<8x256xf32> to vector<8x32xf32>
    %452 = arith.mulf %450, %451 : vector<8x32xf32>
    %453 = arith.addf %449, %452 : vector<8x32xf32>
    %454 = vector.extract_strided_slice %440 {offsets = [0, 96], sizes = [8, 32], strides = [1, 1]} : vector<8x256xf32> to vector<8x32xf32>
    %455 = math.tanh %447 : vector<8x32xf32>
    %456 = arith.mulf %454, %455 : vector<8x32xf32>
    %457 = vector.extract_strided_slice %440 {offsets = [0, 224], sizes = [8, 32], strides = [1, 1]} : vector<8x256xf32> to vector<8x32xf32>
    %458 = math.tanh %453 : vector<8x32xf32>
    %459 = arith.mulf %457, %458 : vector<8x32xf32>
    %460 = tpu.concatenate %456, %459 in 1 : vector<8x32xf32>, vector<8x32xf32> -> vector<8x64xf32>
    %461 = arith.truncf %460 : vector<8x64xf32> to vector<8x64xbf16>
    %c40_146 = arith.constant 40 : index
    %c0_147 = arith.constant 0 : index
    %462 = vector.load %arg14[%c40_146, %c0_147] : memref<64x256xf32, #tpu.memory_space<vmem>>, vector<8x256xf32>
    %cst_148 = arith.constant dense<0.000000e+00> : vector<8x256xf32>
    %463 = tpu.matmul %461, %310, %cst_148 {dimension_numbers = #tpu.dot_dimension_numbers<[1], [0], [0], [1], [0, 0, 1, 1], [], []>} : vector<8x64xbf16>, vector<64x256xbf16>, vector<8x256xf32> -> vector<8x256xf32>
    %464 = arith.addf %462, %463 : vector<8x256xf32>
    %465 = arith.negf %464 : vector<8x256xf32>
    %466 = math.exp %465 : vector<8x256xf32>
    %cst_149 = arith.constant 1.000000e+00 : f32
    %467 = vector.broadcast %cst_149 : f32 to vector<8x256xf32>
    %468 = arith.addf %467, %466 : vector<8x256xf32>
    %469 = arith.divf %467, %468 : vector<8x256xf32>
    %470 = math.tanh %464 : vector<8x256xf32>
    %471 = vector.extract_strided_slice %469 {offsets = [0, 32], sizes = [8, 32], strides = [1, 1]} : vector<8x256xf32> to vector<8x32xf32>
    %472 = arith.mulf %471, %447 : vector<8x32xf32>
    %473 = vector.extract_strided_slice %469 {offsets = [0, 0], sizes = [8, 32], strides = [1, 1]} : vector<8x256xf32> to vector<8x32xf32>
    %474 = vector.extract_strided_slice %470 {offsets = [0, 64], sizes = [8, 32], strides = [1, 1]} : vector<8x256xf32> to vector<8x32xf32>
    %475 = arith.mulf %473, %474 : vector<8x32xf32>
    %476 = arith.addf %472, %475 : vector<8x32xf32>
    %477 = vector.extract_strided_slice %469 {offsets = [0, 160], sizes = [8, 32], strides = [1, 1]} : vector<8x256xf32> to vector<8x32xf32>
    %478 = arith.mulf %477, %453 : vector<8x32xf32>
    %479 = vector.extract_strided_slice %469 {offsets = [0, 128], sizes = [8, 32], strides = [1, 1]} : vector<8x256xf32> to vector<8x32xf32>
    %480 = vector.extract_strided_slice %470 {offsets = [0, 192], sizes = [8, 32], strides = [1, 1]} : vector<8x256xf32> to vector<8x32xf32>
    %481 = arith.mulf %479, %480 : vector<8x32xf32>
    %482 = arith.addf %478, %481 : vector<8x32xf32>
    %483 = vector.extract_strided_slice %469 {offsets = [0, 96], sizes = [8, 32], strides = [1, 1]} : vector<8x256xf32> to vector<8x32xf32>
    %484 = math.tanh %476 : vector<8x32xf32>
    %485 = arith.mulf %483, %484 : vector<8x32xf32>
    %486 = vector.extract_strided_slice %469 {offsets = [0, 224], sizes = [8, 32], strides = [1, 1]} : vector<8x256xf32> to vector<8x32xf32>
    %487 = math.tanh %482 : vector<8x32xf32>
    %488 = arith.mulf %486, %487 : vector<8x32xf32>
    %489 = tpu.concatenate %485, %488 in 1 : vector<8x32xf32>, vector<8x32xf32> -> vector<8x64xf32>
    %490 = arith.truncf %489 : vector<8x64xf32> to vector<8x64xbf16>
    %c48_150 = arith.constant 48 : index
    %c0_151 = arith.constant 0 : index
    %491 = vector.load %arg14[%c48_150, %c0_151] : memref<64x256xf32, #tpu.memory_space<vmem>>, vector<8x256xf32>
    %cst_152 = arith.constant dense<0.000000e+00> : vector<8x256xf32>
    %492 = tpu.matmul %490, %310, %cst_152 {dimension_numbers = #tpu.dot_dimension_numbers<[1], [0], [0], [1], [0, 0, 1, 1], [], []>} : vector<8x64xbf16>, vector<64x256xbf16>, vector<8x256xf32> -> vector<8x256xf32>
    %493 = arith.addf %491, %492 : vector<8x256xf32>
    %494 = arith.negf %493 : vector<8x256xf32>
    %495 = math.exp %494 : vector<8x256xf32>
    %cst_153 = arith.constant 1.000000e+00 : f32
    %496 = vector.broadcast %cst_153 : f32 to vector<8x256xf32>
    %497 = arith.addf %496, %495 : vector<8x256xf32>
    %498 = arith.divf %496, %497 : vector<8x256xf32>
    %499 = math.tanh %493 : vector<8x256xf32>
    %500 = vector.extract_strided_slice %498 {offsets = [0, 32], sizes = [8, 32], strides = [1, 1]} : vector<8x256xf32> to vector<8x32xf32>
    %501 = arith.mulf %500, %476 : vector<8x32xf32>
    %502 = vector.extract_strided_slice %498 {offsets = [0, 0], sizes = [8, 32], strides = [1, 1]} : vector<8x256xf32> to vector<8x32xf32>
    %503 = vector.extract_strided_slice %499 {offsets = [0, 64], sizes = [8, 32], strides = [1, 1]} : vector<8x256xf32> to vector<8x32xf32>
    %504 = arith.mulf %502, %503 : vector<8x32xf32>
    %505 = arith.addf %501, %504 : vector<8x32xf32>
    %506 = vector.extract_strided_slice %498 {offsets = [0, 160], sizes = [8, 32], strides = [1, 1]} : vector<8x256xf32> to vector<8x32xf32>
    %507 = arith.mulf %506, %482 : vector<8x32xf32>
    %508 = vector.extract_strided_slice %498 {offsets = [0, 128], sizes = [8, 32], strides = [1, 1]} : vector<8x256xf32> to vector<8x32xf32>
    %509 = vector.extract_strided_slice %499 {offsets = [0, 192], sizes = [8, 32], strides = [1, 1]} : vector<8x256xf32> to vector<8x32xf32>
    %510 = arith.mulf %508, %509 : vector<8x32xf32>
    %511 = arith.addf %507, %510 : vector<8x32xf32>
    %512 = vector.extract_strided_slice %498 {offsets = [0, 96], sizes = [8, 32], strides = [1, 1]} : vector<8x256xf32> to vector<8x32xf32>
    %513 = math.tanh %505 : vector<8x32xf32>
    %514 = arith.mulf %512, %513 : vector<8x32xf32>
    %515 = vector.extract_strided_slice %498 {offsets = [0, 224], sizes = [8, 32], strides = [1, 1]} : vector<8x256xf32> to vector<8x32xf32>
    %516 = math.tanh %511 : vector<8x32xf32>
    %517 = arith.mulf %515, %516 : vector<8x32xf32>
    %518 = tpu.concatenate %514, %517 in 1 : vector<8x32xf32>, vector<8x32xf32> -> vector<8x64xf32>
    %519 = arith.truncf %518 : vector<8x64xf32> to vector<8x64xbf16>
    %c56_154 = arith.constant 56 : index
    %c0_155 = arith.constant 0 : index
    %520 = vector.load %arg14[%c56_154, %c0_155] : memref<64x256xf32, #tpu.memory_space<vmem>>, vector<8x256xf32>
    %cst_156 = arith.constant dense<0.000000e+00> : vector<8x256xf32>
    %521 = tpu.matmul %519, %310, %cst_156 {dimension_numbers = #tpu.dot_dimension_numbers<[1], [0], [0], [1], [0, 0, 1, 1], [], []>} : vector<8x64xbf16>, vector<64x256xbf16>, vector<8x256xf32> -> vector<8x256xf32>
    %522 = arith.addf %520, %521 : vector<8x256xf32>
    %523 = arith.negf %522 : vector<8x256xf32>
    %524 = math.exp %523 : vector<8x256xf32>
    %cst_157 = arith.constant 1.000000e+00 : f32
    %525 = vector.broadcast %cst_157 : f32 to vector<8x256xf32>
    %526 = arith.addf %525, %524 : vector<8x256xf32>
    %527 = arith.divf %525, %526 : vector<8x256xf32>
    %528 = math.tanh %522 : vector<8x256xf32>
    %529 = vector.extract_strided_slice %527 {offsets = [0, 32], sizes = [8, 32], strides = [1, 1]} : vector<8x256xf32> to vector<8x32xf32>
    %530 = arith.mulf %529, %505 : vector<8x32xf32>
    %531 = vector.extract_strided_slice %527 {offsets = [0, 0], sizes = [8, 32], strides = [1, 1]} : vector<8x256xf32> to vector<8x32xf32>
    %532 = vector.extract_strided_slice %528 {offsets = [0, 64], sizes = [8, 32], strides = [1, 1]} : vector<8x256xf32> to vector<8x32xf32>
    %533 = arith.mulf %531, %532 : vector<8x32xf32>
    %534 = arith.addf %530, %533 : vector<8x32xf32>
    %535 = vector.extract_strided_slice %527 {offsets = [0, 160], sizes = [8, 32], strides = [1, 1]} : vector<8x256xf32> to vector<8x32xf32>
    %536 = arith.mulf %535, %511 : vector<8x32xf32>
    %537 = vector.extract_strided_slice %527 {offsets = [0, 128], sizes = [8, 32], strides = [1, 1]} : vector<8x256xf32> to vector<8x32xf32>
    %538 = vector.extract_strided_slice %528 {offsets = [0, 192], sizes = [8, 32], strides = [1, 1]} : vector<8x256xf32> to vector<8x32xf32>
    %539 = arith.mulf %537, %538 : vector<8x32xf32>
    %540 = arith.addf %536, %539 : vector<8x32xf32>
    %541 = vector.extract_strided_slice %527 {offsets = [0, 96], sizes = [8, 32], strides = [1, 1]} : vector<8x256xf32> to vector<8x32xf32>
    %542 = math.tanh %534 : vector<8x32xf32>
    %543 = arith.mulf %541, %542 : vector<8x32xf32>
    %544 = vector.extract_strided_slice %527 {offsets = [0, 224], sizes = [8, 32], strides = [1, 1]} : vector<8x256xf32> to vector<8x32xf32>
    %545 = math.tanh %540 : vector<8x32xf32>
    %546 = arith.mulf %544, %545 : vector<8x32xf32>
    %547 = tpu.concatenate %543, %546 in 1 : vector<8x32xf32>, vector<8x32xf32> -> vector<8x64xf32>
    %548 = arith.truncf %547 : vector<8x64xf32> to vector<8x64xbf16>
    %c0_158 = arith.constant 0 : index
    %c0_159 = arith.constant 0 : index
    %549 = vector.load %arg11[%c0_158, %c0_159] : memref<64x4xbf16, #tpu.memory_space<vmem>>, vector<64x4xbf16>
    %cst_160 = arith.constant dense<0.000000e+00> : vector<8x4xf32>
    %550 = tpu.matmul %548, %549, %cst_160 {dimension_numbers = #tpu.dot_dimension_numbers<[1], [0], [0], [1], [0, 0, 1, 1], [], []>} : vector<8x64xbf16>, vector<64x4xbf16>, vector<8x4xf32> -> vector<8x4xf32>
    %c0_161 = arith.constant 0 : index
    %c0_162 = arith.constant 0 : index
    %551 = vector.load %arg12[%c0_161, %c0_162] : memref<1x4xf32, #tpu.memory_space<vmem>>, vector<1x4xf32>
    %552 = vector.broadcast %551 : vector<1x4xf32> to vector<8x4xf32>
    %553 = arith.addf %550, %552 : vector<8x4xf32>
    %c0_163 = arith.constant 0 : index
    %c0_164 = arith.constant 0 : index
    %554 = vector.load %arg13[%c0_163, %c0_164] : memref<8x4xf32, #tpu.memory_space<vmem>>, vector<8x4xf32>
    tpu.vector_store %arg13[%c0_163, %c0_164], %553 {strides = array<i32>} : memref<8x4xf32, #tpu.memory_space<vmem>>, vector<8x4xf32>,
    return
  }
}

</mosaic_0001>

<llo_original>
// kernel: _lambda_.1
$region0: #{_lambda_.1}
  #allocation0 [shape = 'u32[]', space=smem, size = 0x4, offset = 0x4, fixed_abs, tag = 'smem constant byte address 0x4 - core index']
  #allocation1 [shape = 'u32[144,128]{1,0:T(1,128)}', space=vmem, size = 0x12000, scoped, tag = 'internal scratch']
  #allocation2 [shape = 'f32[64,256]{1,0:T(8,128)}', space=vmem, size = 0x10000, scoped, tag = 'scratch operand']
  #allocation3 [shape = 'f32[64,64]{1,0:T(8,128)}', space=vmem, size = 0x8000, scoped, tag = 'scratch operand']
  #allocation4 [shape = 'f32[64,64]{1,0:T(8,128)}', space=vmem, size = 0x8000, scoped, tag = 'scratch operand']
  %s0 = inlined_call_operand.vmem [shape: bf16[64,16], index: 0, kind: input, shape index: {}]
  %s1 = inlined_call_operand.vmem [shape: bf16[16,128], index: 1, kind: input, shape index: {}]
  %s2 = inlined_call_operand.vmem [shape: bf16[16,128], index: 2, kind: input, shape index: {}]
  %s3 = inlined_call_operand.vmem [shape: f32[1,128], index: 3, kind: input, shape index: {}]
  %s4 = inlined_call_operand.vmem [shape: f32[1,128], index: 4, kind: input, shape index: {}]
  %s5 = inlined_call_operand.vmem [shape: bf16[64,256], index: 5, kind: input, shape index: {}]
  %s6 = inlined_call_operand.vmem [shape: bf16[64,128], index: 6, kind: input, shape index: {}]
  %s7 = inlined_call_operand.vmem [shape: bf16[64,128], index: 7, kind: input, shape index: {}]
  %s8 = inlined_call_operand.vmem [shape: f32[1,128], index: 8, kind: input, shape index: {}]
  %s9 = inlined_call_operand.vmem [shape: f32[1,128], index: 9, kind: input, shape index: {}]
  %s10 = inlined_call_operand.vmem [shape: bf16[64,256], index: 10, kind: input, shape index: {}]
  %s11 = inlined_call_operand.vmem [shape: bf16[64,4], index: 11, kind: input, shape index: {}]
  %s12 = inlined_call_operand.vmem [shape: f32[1,4], index: 12, kind: input, shape index: {}]
  %s13 = inlined_call_operand.vmem [shape: f32[8,4], index: 13, kind: output, shape index: {}]
  %s14 = sld [smem:[#allocation0]]
  $region62: #{_lambda_.1} parent=0
    _
  %s16 = ssub.s32 1, %s14
  %s17 = scalar_select 0, %s16, %s14
  // Predicated region
  $region2: #{_lambda_.1} parent=0 // pred_check
    _
  $region3: #{_lambda_.1} parent=0 // pred_check_branch
    %19 = sbr.rel (0) target = $region5
  $region4: #{_lambda_.1} parent=0 // pred_region
    _
  $region5: #{_lambda_.1} parent=0 // pred_fallthru
    _
  // Predicated region
  $region6: #{_lambda_.1} parent=0 // pred_check
    _
  $region7: #{_lambda_.1} parent=0 // pred_check_branch
    %21 = sbr.rel (0) target = $region9
  $region8: #{_lambda_.1} parent=0 // pred_region
    _
  $region9: #{_lambda_.1} parent=0 // pred_fallthru
    _
  // Predicated region
  $region10: #{_lambda_.1} parent=0 // pred_check
    _
  $region11: #{_lambda_.1} parent=0 // pred_check_branch
    %23 = sbr.rel (0) target = $region13
  $region12: #{_lambda_.1} parent=0 // pred_region
    _
  $region13: #{_lambda_.1} parent=0 // pred_fallthru
    _
  // Predicated region
  $region14: #{_lambda_.1} parent=0 // pred_check
    _
  $region15: #{_lambda_.1} parent=0 // pred_check_branch
    %25 = sbr.rel (0) target = $region17
  $region16: #{_lambda_.1} parent=0 // pred_region
    _
  $region17: #{_lambda_.1} parent=0 // pred_fallthru
    _
  // Predicated region
  $region18: #{_lambda_.1} parent=0 // pred_check
    _
  $region19: #{_lambda_.1} parent=0 // pred_check_branch
    %27 = sbr.rel (0) target = $region21
  $region20: #{_lambda_.1} parent=0 // pred_region
    _
  $region21: #{_lambda_.1} parent=0 // pred_fallthru
    _
  // Predicated region
  $region22: #{_lambda_.1} parent=0 // pred_check
    _
  $region23: #{_lambda_.1} parent=0 // pred_check_branch
    %29 = sbr.rel (0) target = $region25
  $region24: #{_lambda_.1} parent=0 // pred_region
    _
  $region25: #{_lambda_.1} parent=0 // pred_fallthru
    _
  // Predicated region
  $region26: #{_lambda_.1} parent=0 // pred_check
    _
  $region27: #{_lambda_.1} parent=0 // pred_check_branch
    %31 = sbr.rel (0) target = $region29
  $region28: #{_lambda_.1} parent=0 // pred_region
    _
  $region29: #{_lambda_.1} parent=0 // pred_fallthru
    _
  // Predicated region
  $region30: #{_lambda_.1} parent=0 // pred_check
    _
  $region31: #{_lambda_.1} parent=0 // pred_check_branch
    %33 = sbr.rel (0) target = $region33
  $region32: #{_lambda_.1} parent=0 // pred_region
    _
  $region33: #{_lambda_.1} parent=0 // pred_fallthru
    _
  // Predicated region
  $region34: #{_lambda_.1} parent=0 // pred_check
    _
  $region35: #{_lambda_.1} parent=0 // pred_check_branch
    %35 = sbr.rel (0) target = $region37
  $region36: #{_lambda_.1} parent=0 // pred_region
    _
  $region37: #{_lambda_.1} parent=0 // pred_fallthru
    _
  // Predicated region
  $region38: #{_lambda_.1} parent=0 // pred_check
    _
  $region39: #{_lambda_.1} parent=0 // pred_check_branch
    %37 = sbr.rel (0) target = $region41
  $region40: #{_lambda_.1} parent=0 // pred_region
    _
  $region41: #{_lambda_.1} parent=0 // pred_fallthru
    _
  // Predicated region
  $region42: #{_lambda_.1} parent=0 // pred_check
    _
  $region43: #{_lambda_.1} parent=0 // pred_check_branch
    %39 = sbr.rel (0) target = $region45
  $region44: #{_lambda_.1} parent=0 // pred_region
    _
  $region45: #{_lambda_.1} parent=0 // pred_fallthru
    _
  // Predicated region
  $region46: #{_lambda_.1} parent=0 // pred_check
    _
  $region47: #{_lambda_.1} parent=0 // pred_check_branch
    %41 = sbr.rel (0) target = $region49
  $region48: #{_lambda_.1} parent=0 // pred_region
    _
  $region49: #{_lambda_.1} parent=0 // pred_fallthru
    _
  // Predicated region
  $region50: #{_lambda_.1} parent=0 // pred_check
    _
  $region51: #{_lambda_.1} parent=0 // pred_check_branch
    %43 = sbr.rel (0) target = $region53
  $region52: #{_lambda_.1} parent=0 // pred_region
    _
  $region53: #{_lambda_.1} parent=0 // pred_fallthru
    _
  %v45 = vld [vmem:[%s0] sm:$0xf]
  %v46 = vld [vmem:[%s0 + $0x4] sm:$0xf]
  %v47 = vld [vmem:[%s0 + $0x8] sm:$0xf]
  %v48 = vld [vmem:[%s0 + $0xc] sm:$0xf]
  %v49 = vld [vmem:[%s0 + $0x10] sm:$0xf]
  %v50 = vld [vmem:[%s0 + $0x14] sm:$0xf]
  %v51 = vld [vmem:[%s0 + $0x18] sm:$0xf]
  %v52 = vld [vmem:[%s0 + $0x1c] sm:$0xf]
  %v53 = vld [vmem:[%s3] sm:$0x1]
  %v54 = vld [vmem:[%s1] sm:$0xf]
  %v55 = vld [vmem:[%s1 + $0x4] sm:$0xf]
  %v64 = vunpack.c.l.b16 %v45
  %v65 = vunpack.c.l.b16 %v46
  %v66 = vunpack.c.l.b16 %v47
  %v67 = vunpack.c.l.b16 %v48
  %v68 = vunpack.c.l.b16 %v49
  %v69 = vunpack.c.l.b16 %v50
  %v70 = vunpack.c.l.b16 %v51
  %v71 = vunpack.c.l.b16 %v52
  %v72 = vpack.c.b16 %v65, %v64
  %v73 = vpack.c.b16 %v67, %v66
  %v74 = vpack.c.b16 %v69, %v68
  %v75 = vpack.c.b16 %v71, %v70
  %v78 = vunpack.c.l.b16 %v54
  %v79 = vunpack.c.l.b16 %v55
  %v80 = vpack.c.b16 %v79, %v78
  %vm82 = vcmask 130048
  %v84 = vsel %vm82, %v72, 0
  %v87 = vsel %vm82, %v73, 0
  %v90 = vsel %vm82, %v74, 0
  %v93 = vsel %vm82, %v75, 0
  %95 = vmatprep.subr.bf16.mxu0 0
  %96 = vmatpush1.bf16.msra.mxu0 %v80
  %97 = vmatprep.subr.bf16.mxu0 0
  %98 = vmatpush1.bf16.msra.mxu0 0
  %99 = vmatprep.subr.bf16.mxu0 0
  %100 = vmatpush1.bf16.msra.mxu0 0
  %101 = vmatprep.subr.bf16.mxu0 0
  %102 = vmatpush1.bf16.msra.mxu0 0
  %103 = vmatprep.subr.bf16.mxu0 0
  %104 = vmatpush1.bf16.msra.mxu0 0
  %105 = vmatprep.subr.bf16.mxu0 0
  %106 = vmatpush1.bf16.msra.mxu0 0
  %107 = vmatprep.subr.bf16.mxu0 0
  %108 = vmatpush1.bf16.msra.mxu0 0
  %109 = vmatprep.subr.bf16.mxu0 0
  %110 = vmatpush1.bf16.msra.mxu0 0
  %111 = vmatprep.subr.bf16.mxu0 0
  %112 = vmatpush1.bf16.msra.mxu0 0
  %113 = vmatprep.subr.bf16.mxu0 0
  %114 = vmatpush1.bf16.msra.mxu0 0
  %115 = vmatprep.subr.bf16.mxu0 0
  %116 = vmatpush1.bf16.msra.mxu0 0
  %117 = vmatprep.subr.bf16.mxu0 0
  %118 = vmatpush1.bf16.msra.mxu0 0
  %119 = vmatprep.subr.bf16.mxu0 0
  %120 = vmatpush1.bf16.msra.mxu0 0
  %121 = vmatprep.subr.bf16.mxu0 0
  %122 = vmatpush1.bf16.msra.mxu0 0
  %123 = vmatprep.subr.bf16.mxu0 0
  %124 = vmatpush1.bf16.msra.mxu0 0
  %125 = vmatprep.subr.bf16.mxu0 0
  %126 = vmatpush1.bf16.msra.mxu0 0
  %127 = vmatprep.mubr.bf16.mxu0 0
  %128 = vmatmul.mubr.bf16.gmra.mrb[0].mxu0 %v84
  %v129 = vpop.f32.mrb[0].mxu0
  %v130 = vadd.f32 0.0, %v129
  %v131 = vpop.f32.mrb[0].mxu0
  %v132 = vpop.f32.mrb[0].mxu0
  %v133 = vadd.f32 0.0, %v132
  %v134 = vpop.f32.mrb[0].mxu0
  %135 = vmatprep.mubr.bf16.mxu0 0
  %136 = vmatmul.mubr.bf16.gmra.mrb[0].mxu0 %v87
  %v137 = vpop.f32.mrb[0].mxu0
  %v138 = vadd.f32 0.0, %v137
  %v139 = vpop.f32.mrb[0].mxu0
  %v140 = vpop.f32.mrb[0].mxu0
  %v141 = vadd.f32 0.0, %v140
  %v142 = vpop.f32.mrb[0].mxu0
  %143 = vmatprep.mubr.bf16.mxu0 0
  %144 = vmatmul.mubr.bf16.gmra.mrb[0].mxu0 %v90
  %v145 = vpop.f32.mrb[0].mxu0
  %v146 = vadd.f32 0.0, %v145
  %v147 = vpop.f32.mrb[0].mxu0
  %v148 = vpop.f32.mrb[0].mxu0
  %v149 = vadd.f32 0.0, %v148
  %v150 = vpop.f32.mrb[0].mxu0
  %151 = vmatprep.mubr.bf16.mxu0 0
  %152 = vmatmul.mubr.bf16.gmra.mrb[0].mxu0 %v93
  %v153 = vpop.f32.mrb[0].mxu0
  %v154 = vadd.f32 0.0, %v153
  %v155 = vpop.f32.mrb[0].mxu0
  %v156 = vpop.f32.mrb[0].mxu0
  %v157 = vadd.f32 0.0, %v156
  %v158 = vpop.f32.mrb[0].mxu0
  %159 = vdwg.mxu0
  %v161 = vlaneseq
  %v162 = vshrl.u32 %v161, 7
  %v163 = vsub.s32 0, %v162
  %v164 = vrot.slane %v53, %v163
  %v166 = vadd.f32 %v164, %v130
  %v167 = vadd.f32 %v164, %v133
  %v168 = vadd.f32 %v164, %v138
  %v169 = vadd.f32 %v164, %v141
  %v170 = vadd.f32 %v164, %v146
  %v171 = vadd.f32 %v164, %v149
  %v172 = vadd.f32 %v164, %v154
  %v173 = vadd.f32 %v164, %v157
  %v174 = vld [vmem:[%s4] sm:$0x1]
  %v175 = vld [vmem:[%s2] sm:$0xf]
  %v176 = vld [vmem:[%s2 + $0x4] sm:$0xf]
  %v179 = vunpack.c.l.b16 %v175
  %v180 = vunpack.c.l.b16 %v176
  %v181 = vpack.c.b16 %v180, %v179
  %183 = vmatprep.subr.bf16.mxu0 0
  %184 = vmatpush1.bf16.msra.mxu0 %v181
  %185 = vmatprep.subr.bf16.mxu0 0
  %186 = vmatpush1.bf16.msra.mxu0 0
  %187 = vmatprep.subr.bf16.mxu0 0
  %188 = vmatpush1.bf16.msra.mxu0 0
  %189 = vmatprep.subr.bf16.mxu0 0
  %190 = vmatpush1.bf16.msra.mxu0 0
  %191 = vmatprep.subr.bf16.mxu0 0
  %192 = vmatpush1.bf16.msra.mxu0 0
  %193 = vmatprep.subr.bf16.mxu0 0
  %194 = vmatpush1.bf16.msra.mxu0 0
  %195 = vmatprep.subr.bf16.mxu0 0
  %196 = vmatpush1.bf16.msra.mxu0 0
  %197 = vmatprep.subr.bf16.mxu0 0
  %198 = vmatpush1.bf16.msra.mxu0 0
  %199 = vmatprep.subr.bf16.mxu0 0
  %200 = vmatpush1.bf16.msra.mxu0 0
  %201 = vmatprep.subr.bf16.mxu0 0
  %202 = vmatpush1.bf16.msra.mxu0 0
  %203 = vmatprep.subr.bf16.mxu0 0
  %204 = vmatpush1.bf16.msra.mxu0 0
  %205 = vmatprep.subr.bf16.mxu0 0
  %206 = vmatpush1.bf16.msra.mxu0 0
  %207 = vmatprep.subr.bf16.mxu0 0
  %208 = vmatpush1.bf16.msra.mxu0 0
  %209 = vmatprep.subr.bf16.mxu0 0
  %210 = vmatpush1.bf16.msra.mxu0 0
  %211 = vmatprep.subr.bf16.mxu0 0
  %212 = vmatpush1.bf16.msra.mxu0 0
  %213 = vmatprep.subr.bf16.mxu0 0
  %214 = vmatpush1.bf16.msra.mxu0 0
  %215 = vmatprep.mubr.bf16.mxu0 0
  %216 = vmatmul.mubr.bf16.gmra.mrb[0].mxu0 %v84
  %v217 = vpop.f32.mrb[0].mxu0
  %v218 = vadd.f32 0.0, %v217
  %v219 = vpop.f32.mrb[0].mxu0
  %v220 = vpop.f32.mrb[0].mxu0
  %v221 = vadd.f32 0.0, %v220
  %v222 = vpop.f32.mrb[0].mxu0
  %223 = vmatprep.mubr.bf16.mxu0 0
  %224 = vmatmul.mubr.bf16.gmra.mrb[0].mxu0 %v87
  %v225 = vpop.f32.mrb[0].mxu0
  %v226 = vadd.f32 0.0, %v225
  %v227 = vpop.f32.mrb[0].mxu0
  %v228 = vpop.f32.mrb[0].mxu0
  %v229 = vadd.f32 0.0, %v228
  %v230 = vpop.f32.mrb[0].mxu0
  %231 = vmatprep.mubr.bf16.mxu0 0
  %232 = vmatmul.mubr.bf16.gmra.mrb[0].mxu0 %v90
  %v233 = vpop.f32.mrb[0].mxu0
  %v234 = vadd.f32 0.0, %v233
  %v235 = vpop.f32.mrb[0].mxu0
  %v236 = vpop.f32.mrb[0].mxu0
  %v237 = vadd.f32 0.0, %v236
  %v238 = vpop.f32.mrb[0].mxu0
  %239 = vmatprep.mubr.bf16.mxu0 0
  %240 = vmatmul.mubr.bf16.gmra.mrb[0].mxu0 %v93
  %v241 = vpop.f32.mrb[0].mxu0
  %v242 = vadd.f32 0.0, %v241
  %v243 = vpop.f32.mrb[0].mxu0
  %v244 = vpop.f32.mrb[0].mxu0
  %v245 = vadd.f32 0.0, %v244
  %v246 = vpop.f32.mrb[0].mxu0
  %247 = vdwg.mxu0
  %v249 = vlaneseq
  %v250 = vshrl.u32 %v249, 7
  %v251 = vsub.s32 0, %v250
  %v252 = vrot.slane %v174, %v251
  %v254 = vadd.f32 %v252, %v218
  %v255 = vadd.f32 %v252, %v221
  %v256 = vadd.f32 %v252, %v226
  %v257 = vadd.f32 %v252, %v229
  %v258 = vadd.f32 %v252, %v234
  %v259 = vadd.f32 %v252, %v237
  %v260 = vadd.f32 %v252, %v242
  %v261 = vadd.f32 %v252, %v245
  %262 = vst [vmem:[#allocation2] sm:$0xff] %v166
  %263 = vst [vmem:[#allocation2 + $0x10] sm:$0xff] %v167
  %264 = vst [vmem:[#allocation2 + $0x20] sm:$0xff] %v168
  %265 = vst [vmem:[#allocation2 + $0x30] sm:$0xff] %v169
  %266 = vst [vmem:[#allocation2 + $0x40] sm:$0xff] %v170
  %267 = vst [vmem:[#allocation2 + $0x50] sm:$0xff] %v171
  %268 = vst [vmem:[#allocation2 + $0x60] sm:$0xff] %v172
  %269 = vst [vmem:[#allocation2 + $0x70] sm:$0xff] %v173
  %270 = vst [vmem:[#allocation2 + $0x78] sm:$0xff] %v254
  %271 = vst [vmem:[#allocation2 + $0x68] sm:$0xff] %v255
  %272 = vst [vmem:[#allocation2 + $0x58] sm:$0xff] %v256
  %273 = vst [vmem:[#allocation2 + $0x48] sm:$0xff] %v257
  %274 = vst [vmem:[#allocation2 + $0x38] sm:$0xff] %v258
  %275 = vst [vmem:[#allocation2 + $0x28] sm:$0xff] %v259
  %276 = vst [vmem:[#allocation2 + $0x18] sm:$0xff] %v260
  %277 = vst [vmem:[#allocation2 + $0x8] sm:$0xff] %v261
  %v278 = vld [vmem:[%s5] sm:$0xff]
  %v279 = vld [vmem:[%s5 + $0x8] sm:$0xff]
  %v280 = vld [vmem:[%s5 + $0x10] sm:$0xff]
  %v281 = vld [vmem:[%s5 + $0x18] sm:$0xff]
  %v282 = vld [vmem:[%s5 + $0x20] sm:$0xff]
  %v283 = vld [vmem:[%s5 + $0x28] sm:$0xff]
  %v284 = vld [vmem:[%s5 + $0x30] sm:$0xff]
  %v285 = vld [vmem:[%s5 + $0x38] sm:$0xff]
  %v286 = vpack.c.bf16 0.0, 0.0
  %v287 = vld [vmem:[#allocation2] sm:$0xff]
  %v288 = vld [vmem:[#allocation2 + $0x8] sm:$0xff]
  %v297 = vunpack.c.l.b16 %v278
  %v298 = vunpack.c.h.b16 %v278
  %v299 = vunpack.c.l.b16 %v279
  %v300 = vunpack.c.h.b16 %v279
  %v301 = vunpack.c.l.b16 %v280
  %v302 = vunpack.c.h.b16 %v280
  %v303 = vunpack.c.l.b16 %v281
  %v304 = vunpack.c.h.b16 %v281
  %v305 = vunpack.c.l.b16 %v282
  %v306 = vunpack.c.h.b16 %v282
  %v307 = vunpack.c.l.b16 %v283
  %v308 = vunpack.c.h.b16 %v283
  %v309 = vunpack.c.l.b16 %v284
  %v310 = vunpack.c.h.b16 %v284
  %v311 = vunpack.c.l.b16 %v285
  %v312 = vunpack.c.h.b16 %v285
  %v313 = vpack.c.b16 %v299, %v297
  %v314 = vpack.c.b16 %v300, %v298
  %v315 = vpack.c.b16 %v303, %v301
  %v316 = vpack.c.b16 %v304, %v302
  %v317 = vpack.c.b16 %v307, %v305
  %v318 = vpack.c.b16 %v308, %v306
  %v319 = vpack.c.b16 %v311, %v309
  %v320 = vpack.c.b16 %v312, %v310
  %vm329 = vcmask 523264
  %v331 = vsel %vm329, %v286, 0
  %333 = vmatprep.subr.bf16.mxu0 %v314
  %334 = vmatpush1.bf16.msra.mxu0 %v313
  %335 = vmatprep.subr.bf16.mxu0 %v316
  %336 = vmatpush1.bf16.msra.mxu0 %v315
  %337 = vmatprep.subr.bf16.mxu0 %v318
  %338 = vmatpush1.bf16.msra.mxu0 %v317
  %339 = vmatprep.subr.bf16.mxu0 %v320
  %340 = vmatpush1.bf16.msra.mxu0 %v319
  %341 = vmatprep.subr.bf16.mxu0 0
  %342 = vmatpush1.bf16.msra.mxu0 0
  %343 = vmatprep.subr.bf16.mxu0 0
  %344 = vmatpush1.bf16.msra.mxu0 0
  %345 = vmatprep.subr.bf16.mxu0 0
  %346 = vmatpush1.bf16.msra.mxu0 0
  %347 = vmatprep.subr.bf16.mxu0 0
  %348 = vmatpush1.bf16.msra.mxu0 0
  %349 = vmatprep.subr.bf16.mxu0 0
  %350 = vmatpush1.bf16.msra.mxu0 0
  %351 = vmatprep.subr.bf16.mxu0 0
  %352 = vmatpush1.bf16.msra.mxu0 0
  %353 = vmatprep.subr.bf16.mxu0 0
  %354 = vmatpush1.bf16.msra.mxu0 0
  %355 = vmatprep.subr.bf16.mxu0 0
  %356 = vmatpush1.bf16.msra.mxu0 0
  %357 = vmatprep.subr.bf16.mxu0 0
  %358 = vmatpush1.bf16.msra.mxu0 0
  %359 = vmatprep.subr.bf16.mxu0 0
  %360 = vmatpush1.bf16.msra.mxu0 0
  %361 = vmatprep.subr.bf16.mxu0 0
  %362 = vmatpush1.bf16.msra.mxu0 0
  %363 = vmatprep.subr.bf16.mxu0 0
  %364 = vmatpush1.bf16.msra.mxu0 0
  %365 = vmatprep.mubr.bf16.mxu0 0
  %366 = vmatmul.mubr.bf16.gmra.mrb[0].mxu0 %v331
  %v367 = vpop.f32.mrb[0].mxu0
  %v368 = vadd.f32 0.0, %v367
  %v369 = vpop.f32.mrb[0].mxu0
  %v370 = vadd.f32 0.0, %v369
  %v371 = vpop.f32.mrb[0].mxu0
  %v372 = vpop.f32.mrb[0].mxu0
  %373 = vdwg.mxu0
  %v374 = vadd.f32 %v287, %v368
  %v375 = vadd.f32 %v288, %v370
  %v376 = vxor.u32 %v374, 2147483648
  %v377 = vxor.u32 %v375, 2147483648
  %v378 = vmul.f32 %v376, 1.442695
  %v379 = vpow.pop %v378
  %v380 = vmul.f32 %v377, 1.442695
  %v381 = vpow.pop %v380
  %v382 = vadd.f32 %v379, 1.0
  %v383 = vadd.f32 %v381, 1.0
  %v384 = vrcp.pop %v382
  %v385 = vmul.f32 1.0, %v384
  %v386 = vrcp.pop %v383
  %v387 = vmul.f32 1.0, %v386
  %v388 = vtanh.pop %v374
  %v389 = vtanh.pop %v375
  %v390 = vmul.f32 %v385, 0.0
  %392 = vrot.lane.b32.xlu0 %v388, 64
  %v393 = vpop.permute.xlu0 %392
  %v395 = vmul.f32 %v385, %v393
  %397 = vrot.lane.b32.xlu0 %v395, 32
  %v398 = vpop.permute.xlu0 %397
  %v400 = vadd.f32 %v390, %v398
  %v401 = vmul.f32 %v387, 0.0
  %403 = vrot.lane.b32.xlu0 %v389, 64
  %v404 = vpop.permute.xlu0 %403
  %v406 = vmul.f32 %v387, %v404
  %408 = vrot.lane.b32.xlu0 %v406, 32
  %v409 = vpop.permute.xlu0 %408
  %v411 = vadd.f32 %v401, %v409
  %v412 = vtanh.pop %v400
  %414 = vrot.lane.b32.xlu0 %v412, 64
  %v415 = vpop.permute.xlu0 %414
  %v417 = vmul.f32 %v385, %v415
  %v418 = vtanh.pop %v411
  %420 = vrot.lane.b32.xlu0 %v418, 64
  %v421 = vpop.permute.xlu0 %420
  %v423 = vmul.f32 %v387, %v421
  %425 = vrot.lane.b32.xlu0 %v417, 32
  %v426 = vpop.permute.xlu0 %425
  %vm428 = vcmask 261120
  %429 = vst.msk [vmem:[#allocation3] sm:$0xff] %vm428, %v426
  %431 = vrot.lane.b32.xlu0 %v423, 64
  %v432 = vpop.permute.xlu0 %431
  %vm434 = vcmask 523520
  %435 = vst.msk [vmem:[#allocation3 + $0x38] sm:$0xff] %vm434, %v432
  %v436 = vsel %vm428, %v426, %v432
  %v437 = vpack.c.bf16 %v436, %v436
  %v438 = vld [vmem:[#allocation2 + $0x10] sm:$0xff]
  %v439 = vld [vmem:[#allocation2 + $0x18] sm:$0xff]
  %v441 = vsel %vm329, %v437, 0
  %443 = vmatprep.subr.bf16.mxu0 %v314
  %444 = vmatpush1.bf16.msra.mxu0 %v313
  %445 = vmatprep.subr.bf16.mxu0 %v316
  %446 = vmatpush1.bf16.msra.mxu0 %v315
  %447 = vmatprep.subr.bf16.mxu0 %v318
  %448 = vmatpush1.bf16.msra.mxu0 %v317
  %449 = vmatprep.subr.bf16.mxu0 %v320
  %450 = vmatpush1.bf16.msra.mxu0 %v319
  %451 = vmatprep.subr.bf16.mxu0 0
  %452 = vmatpush1.bf16.msra.mxu0 0
  %453 = vmatprep.subr.bf16.mxu0 0
  %454 = vmatpush1.bf16.msra.mxu0 0
  %455 = vmatprep.subr.bf16.mxu0 0
  %456 = vmatpush1.bf16.msra.mxu0 0
  %457 = vmatprep.subr.bf16.mxu0 0
  %458 = vmatpush1.bf16.msra.mxu0 0
  %459 = vmatprep.subr.bf16.mxu0 0
  %460 = vmatpush1.bf16.msra.mxu0 0
  %461 = vmatprep.subr.bf16.mxu0 0
  %462 = vmatpush1.bf16.msra.mxu0 0
  %463 = vmatprep.subr.bf16.mxu0 0
  %464 = vmatpush1.bf16.msra.mxu0 0
  %465 = vmatprep.subr.bf16.mxu0 0
  %466 = vmatpush1.bf16.msra.mxu0 0
  %467 = vmatprep.subr.bf16.mxu0 0
  %468 = vmatpush1.bf16.msra.mxu0 0
  %469 = vmatprep.subr.bf16.mxu0 0
  %470 = vmatpush1.bf16.msra.mxu0 0
  %471 = vmatprep.subr.bf16.mxu0 0
  %472 = vmatpush1.bf16.msra.mxu0 0
  %473 = vmatprep.subr.bf16.mxu0 0
  %474 = vmatpush1.bf16.msra.mxu0 0
  %475 = vmatprep.mubr.bf16.mxu0 0
  %476 = vmatmul.mubr.bf16.gmra.mrb[0].mxu0 %v441
  %v477 = vpop.f32.mrb[0].mxu0
  %v478 = vadd.f32 0.0, %v477
  %v479 = vpop.f32.mrb[0].mxu0
  %v480 = vadd.f32 0.0, %v479
  %v481 = vpop.f32.mrb[0].mxu0
  %v482 = vpop.f32.mrb[0].mxu0
  %483 = vdwg.mxu0
  %v484 = vadd.f32 %v438, %v478
  %v485 = vadd.f32 %v439, %v480
  %v486 = vxor.u32 %v484, 2147483648
  %v487 = vxor.u32 %v485, 2147483648
  %v488 = vmul.f32 %v486, 1.442695
  %v489 = vpow.pop %v488
  %v490 = vmul.f32 %v487, 1.442695
  %v491 = vpow.pop %v490
  %v492 = vadd.f32 %v489, 1.0
  %v493 = vadd.f32 %v491, 1.0
  %v494 = vrcp.pop %v492
  %v495 = vmul.f32 1.0, %v494
  %v496 = vrcp.pop %v493
  %v497 = vmul.f32 1.0, %v496
  %v498 = vtanh.pop %v484
  %v499 = vtanh.pop %v485
  %v500 = vmul.f32 %v495, %v400
  %502 = vrot.lane.b32.xlu0 %v498, 64
  %v503 = vpop.permute.xlu0 %502
  %v505 = vmul.f32 %v495, %v503
  %507 = vrot.lane.b32.xlu0 %v505, 32
  %v508 = vpop.permute.xlu0 %507
  %v510 = vadd.f32 %v500, %v508
  %v511 = vmul.f32 %v497, %v411
  %513 = vrot.lane.b32.xlu0 %v499, 64
  %v514 = vpop.permute.xlu0 %513
  %v516 = vmul.f32 %v497, %v514
  %518 = vrot.lane.b32.xlu0 %v516, 32
  %v519 = vpop.permute.xlu0 %518
  %v521 = vadd.f32 %v511, %v519
  %v522 = vtanh.pop %v510
  %524 = vrot.lane.b32.xlu0 %v522, 64
  %v525 = vpop.permute.xlu0 %524
  %v527 = vmul.f32 %v495, %v525
  %v528 = vtanh.pop %v521
  %530 = vrot.lane.b32.xlu0 %v528, 64
  %v531 = vpop.permute.xlu0 %530
  %v533 = vmul.f32 %v497, %v531
  %535 = vrot.lane.b32.xlu0 %v527, 32
  %v536 = vpop.permute.xlu0 %535
  %538 = vst.msk [vmem:[#allocation3 + $0x8] sm:$0xff] %vm428, %v536
  %540 = vrot.lane.b32.xlu0 %v533, 64
  %v541 = vpop.permute.xlu0 %540
  %543 = vst.msk [vmem:[#allocation3 + $0x30] sm:$0xff] %vm434, %v541
  %v544 = vsel %vm428, %v536, %v541
  %v545 = vpack.c.bf16 %v544, %v544
  %v546 = vld [vmem:[#allocation2 + $0x20] sm:$0xff]
  %v547 = vld [vmem:[#allocation2 + $0x28] sm:$0xff]
  %v549 = vsel %vm329, %v545, 0
  %551 = vmatprep.subr.bf16.mxu0 %v314
  %552 = vmatpush1.bf16.msra.mxu0 %v313
  %553 = vmatprep.subr.bf16.mxu0 %v316
  %554 = vmatpush1.bf16.msra.mxu0 %v315
  %555 = vmatprep.subr.bf16.mxu0 %v318
  %556 = vmatpush1.bf16.msra.mxu0 %v317
  %557 = vmatprep.subr.bf16.mxu0 %v320
  %558 = vmatpush1.bf16.msra.mxu0 %v319
  %559 = vmatprep.subr.bf16.mxu0 0
  %560 = vmatpush1.bf16.msra.mxu0 0
  %561 = vmatprep.subr.bf16.mxu0 0
  %562 = vmatpush1.bf16.msra.mxu0 0
  %563 = vmatprep.subr.bf16.mxu0 0
  %564 = vmatpush1.bf16.msra.mxu0 0
  %565 = vmatprep.subr.bf16.mxu0 0
  %566 = vmatpush1.bf16.msra.mxu0 0
  %567 = vmatprep.subr.bf16.mxu0 0
  %568 = vmatpush1.bf16.msra.mxu0 0
  %569 = vmatprep.subr.bf16.mxu0 0
  %570 = vmatpush1.bf16.msra.mxu0 0
  %571 = vmatprep.subr.bf16.mxu0 0
  %572 = vmatpush1.bf16.msra.mxu0 0
  %573 = vmatprep.subr.bf16.mxu0 0
  %574 = vmatpush1.bf16.msra.mxu0 0
  %575 = vmatprep.subr.bf16.mxu0 0
  %576 = vmatpush1.bf16.msra.mxu0 0
  %577 = vmatprep.subr.bf16.mxu0 0
  %578 = vmatpush1.bf16.msra.mxu0 0
  %579 = vmatprep.subr.bf16.mxu0 0
  %580 = vmatpush1.bf16.msra.mxu0 0
  %581 = vmatprep.subr.bf16.mxu0 0
  %582 = vmatpush1.bf16.msra.mxu0 0
  %583 = vmatprep.mubr.bf16.mxu0 0
  %584 = vmatmul.mubr.bf16.gmra.mrb[0].mxu0 %v549
  %v585 = vpop.f32.mrb[0].mxu0
  %v586 = vadd.f32 0.0, %v585
  %v587 = vpop.f32.mrb[0].mxu0
  %v588 = vadd.f32 0.0, %v587
  %v589 = vpop.f32.mrb[0].mxu0
  %v590 = vpop.f32.mrb[0].mxu0
  %591 = vdwg.mxu0
  %v592 = vadd.f32 %v546, %v586
  %v593 = vadd.f32 %v547, %v588
  %v594 = vxor.u32 %v592, 2147483648
  %v595 = vxor.u32 %v593, 2147483648
  %v596 = vmul.f32 %v594, 1.442695
  %v597 = vpow.pop %v596
  %v598 = vmul.f32 %v595, 1.442695
  %v599 = vpow.pop %v598
  %v600 = vadd.f32 %v597, 1.0
  %v601 = vadd.f32 %v599, 1.0
  %v602 = vrcp.pop %v600
  %v603 = vmul.f32 1.0, %v602
  %v604 = vrcp.pop %v601
  %v605 = vmul.f32 1.0, %v604
  %v606 = vtanh.pop %v592
  %v607 = vtanh.pop %v593
  %v608 = vmul.f32 %v603, %v510
  %610 = vrot.lane.b32.xlu0 %v606, 64
  %v611 = vpop.permute.xlu0 %610
  %v613 = vmul.f32 %v603, %v611
  %615 = vrot.lane.b32.xlu0 %v613, 32
  %v616 = vpop.permute.xlu0 %615
  %v618 = vadd.f32 %v608, %v616
  %v619 = vmul.f32 %v605, %v521
  %621 = vrot.lane.b32.xlu0 %v607, 64
  %v622 = vpop.permute.xlu0 %621
  %v624 = vmul.f32 %v605, %v622
  %626 = vrot.lane.b32.xlu0 %v624, 32
  %v627 = vpop.permute.xlu0 %626
  %v629 = vadd.f32 %v619, %v627
  %v630 = vtanh.pop %v618
  %632 = vrot.lane.b32.xlu0 %v630, 64
  %v633 = vpop.permute.xlu0 %632
  %v635 = vmul.f32 %v603, %v633
  %v636 = vtanh.pop %v629
  %638 = vrot.lane.b32.xlu0 %v636, 64
  %v639 = vpop.permute.xlu0 %638
  %v641 = vmul.f32 %v605, %v639
  %643 = vrot.lane.b32.xlu0 %v635, 32
  %v644 = vpop.permute.xlu0 %643
  %646 = vst.msk [vmem:[#allocation3 + $0x10] sm:$0xff] %vm428, %v644
  %648 = vrot.lane.b32.xlu0 %v641, 64
  %v649 = vpop.permute.xlu0 %648
  %651 = vst.msk [vmem:[#allocation3 + $0x28] sm:$0xff] %vm434, %v649
  %v652 = vsel %vm428, %v644, %v649
  %v653 = vpack.c.bf16 %v652, %v652
  %v654 = vld [vmem:[#allocation2 + $0x30] sm:$0xff]
  %v655 = vld [vmem:[#allocation2 + $0x38] sm:$0xff]
  %v657 = vsel %vm329, %v653, 0
  %659 = vmatprep.subr.bf16.mxu0 %v314
  %660 = vmatpush1.bf16.msra.mxu0 %v313
  %661 = vmatprep.subr.bf16.mxu0 %v316
  %662 = vmatpush1.bf16.msra.mxu0 %v315
  %663 = vmatprep.subr.bf16.mxu0 %v318
  %664 = vmatpush1.bf16.msra.mxu0 %v317
  %665 = vmatprep.subr.bf16.mxu0 %v320
  %666 = vmatpush1.bf16.msra.mxu0 %v319
  %667 = vmatprep.subr.bf16.mxu0 0
  %668 = vmatpush1.bf16.msra.mxu0 0
  %669 = vmatprep.subr.bf16.mxu0 0
  %670 = vmatpush1.bf16.msra.mxu0 0
  %671 = vmatprep.subr.bf16.mxu0 0
  %672 = vmatpush1.bf16.msra.mxu0 0
  %673 = vmatprep.subr.bf16.mxu0 0
  %674 = vmatpush1.bf16.msra.mxu0 0
  %675 = vmatprep.subr.bf16.mxu0 0
  %676 = vmatpush1.bf16.msra.mxu0 0
  %677 = vmatprep.subr.bf16.mxu0 0
  %678 = vmatpush1.bf16.msra.mxu0 0
  %679 = vmatprep.subr.bf16.mxu0 0
  %680 = vmatpush1.bf16.msra.mxu0 0
  %681 = vmatprep.subr.bf16.mxu0 0
  %682 = vmatpush1.bf16.msra.mxu0 0
  %683 = vmatprep.subr.bf16.mxu0 0
  %684 = vmatpush1.bf16.msra.mxu0 0
  %685 = vmatprep.subr.bf16.mxu0 0
  %686 = vmatpush1.bf16.msra.mxu0 0
  %687 = vmatprep.subr.bf16.mxu0 0
  %688 = vmatpush1.bf16.msra.mxu0 0
  %689 = vmatprep.subr.bf16.mxu0 0
  %690 = vmatpush1.bf16.msra.mxu0 0
  %691 = vmatprep.mubr.bf16.mxu0 0
  %692 = vmatmul.mubr.bf16.gmra.mrb[0].mxu0 %v657
  %v693 = vpop.f32.mrb[0].mxu0
  %v694 = vadd.f32 0.0, %v693
  %v695 = vpop.f32.mrb[0].mxu0
  %v696 = vadd.f32 0.0, %v695
  %v697 = vpop.f32.mrb[0].mxu0
  %v698 = vpop.f32.mrb[0].mxu0
  %699 = vdwg.mxu0
  %v700 = vadd.f32 %v654, %v694
  %v701 = vadd.f32 %v655, %v696
  %v702 = vxor.u32 %v700, 2147483648
  %v703 = vxor.u32 %v701, 2147483648
  %v704 = vmul.f32 %v702, 1.442695
  %v705 = vpow.pop %v704
  %v706 = vmul.f32 %v703, 1.442695
  %v707 = vpow.pop %v706
  %v708 = vadd.f32 %v705, 1.0
  %v709 = vadd.f32 %v707, 1.0
  %v710 = vrcp.pop %v708
  %v711 = vmul.f32 1.0, %v710
  %v712 = vrcp.pop %v709
  %v713 = vmul.f32 1.0, %v712
  %v714 = vtanh.pop %v700
  %v715 = vtanh.pop %v701
  %v716 = vmul.f32 %v711, %v618
  %718 = vrot.lane.b32.xlu0 %v714, 64
  %v719 = vpop.permute.xlu0 %718
  %v721 = vmul.f32 %v711, %v719
  %723 = vrot.lane.b32.xlu0 %v721, 32
  %v724 = vpop.permute.xlu0 %723
  %v726 = vadd.f32 %v716, %v724
  %v727 = vmul.f32 %v713, %v629
  %729 = vrot.lane.b32.xlu0 %v715, 64
  %v730 = vpop.permute.xlu0 %729
  %v732 = vmul.f32 %v713, %v730
  %734 = vrot.lane.b32.xlu0 %v732, 32
  %v735 = vpop.permute.xlu0 %734
  %v737 = vadd.f32 %v727, %v735
  %v738 = vtanh.pop %v726
  %740 = vrot.lane.b32.xlu0 %v738, 64
  %v741 = vpop.permute.xlu0 %740
  %v743 = vmul.f32 %v711, %v741
  %v744 = vtanh.pop %v737
  %746 = vrot.lane.b32.xlu0 %v744, 64
  %v747 = vpop.permute.xlu0 %746
  %v749 = vmul.f32 %v713, %v747
  %751 = vrot.lane.b32.xlu0 %v743, 32
  %v752 = vpop.permute.xlu0 %751
  %754 = vst.msk [vmem:[#allocation3 + $0x18] sm:$0xff] %vm428, %v752
  %756 = vrot.lane.b32.xlu0 %v749, 64
  %v757 = vpop.permute.xlu0 %756
  %759 = vst.msk [vmem:[#allocation3 + $0x20] sm:$0xff] %vm434, %v757
  %v760 = vsel %vm428, %v752, %v757
  %v761 = vpack.c.bf16 %v760, %v760
  %v762 = vld [vmem:[#allocation2 + $0x40] sm:$0xff]
  %v763 = vld [vmem:[#allocation2 + $0x48] sm:$0xff]
  %v765 = vsel %vm329, %v761, 0
  %767 = vmatprep.subr.bf16.mxu0 %v314
  %768 = vmatpush1.bf16.msra.mxu0 %v313
  %769 = vmatprep.subr.bf16.mxu0 %v316
  %770 = vmatpush1.bf16.msra.mxu0 %v315
  %771 = vmatprep.subr.bf16.mxu0 %v318
  %772 = vmatpush1.bf16.msra.mxu0 %v317
  %773 = vmatprep.subr.bf16.mxu0 %v320
  %774 = vmatpush1.bf16.msra.mxu0 %v319
  %775 = vmatprep.subr.bf16.mxu0 0
  %776 = vmatpush1.bf16.msra.mxu0 0
  %777 = vmatprep.subr.bf16.mxu0 0
  %778 = vmatpush1.bf16.msra.mxu0 0
  %779 = vmatprep.subr.bf16.mxu0 0
  %780 = vmatpush1.bf16.msra.mxu0 0
  %781 = vmatprep.subr.bf16.mxu0 0
  %782 = vmatpush1.bf16.msra.mxu0 0
  %783 = vmatprep.subr.bf16.mxu0 0
  %784 = vmatpush1.bf16.msra.mxu0 0
  %785 = vmatprep.subr.bf16.mxu0 0
  %786 = vmatpush1.bf16.msra.mxu0 0
  %787 = vmatprep.subr.bf16.mxu0 0
  %788 = vmatpush1.bf16.msra.mxu0 0
  %789 = vmatprep.subr.bf16.mxu0 0
  %790 = vmatpush1.bf16.msra.mxu0 0
  %791 = vmatprep.subr.bf16.mxu0 0
  %792 = vmatpush1.bf16.msra.mxu0 0
  %793 = vmatprep.subr.bf16.mxu0 0
  %794 = vmatpush1.bf16.msra.mxu0 0
  %795 = vmatprep.subr.bf16.mxu0 0
  %796 = vmatpush1.bf16.msra.mxu0 0
  %797 = vmatprep.subr.bf16.mxu0 0
  %798 = vmatpush1.bf16.msra.mxu0 0
  %799 = vmatprep.mubr.bf16.mxu0 0
  %800 = vmatmul.mubr.bf16.gmra.mrb[0].mxu0 %v765
  %v801 = vpop.f32.mrb[0].mxu0
  %v802 = vadd.f32 0.0, %v801
  %v803 = vpop.f32.mrb[0].mxu0
  %v804 = vadd.f32 0.0, %v803
  %v805 = vpop.f32.mrb[0].mxu0
  %v806 = vpop.f32.mrb[0].mxu0
  %807 = vdwg.mxu0
  %v808 = vadd.f32 %v762, %v802
  %v809 = vadd.f32 %v763, %v804
  %v810 = vxor.u32 %v808, 2147483648
  %v811 = vxor.u32 %v809, 2147483648
  %v812 = vmul.f32 %v810, 1.442695
  %v813 = vpow.pop %v812
  %v814 = vmul.f32 %v811, 1.442695
  %v815 = vpow.pop %v814
  %v816 = vadd.f32 %v813, 1.0
  %v817 = vadd.f32 %v815, 1.0
  %v818 = vrcp.pop %v816
  %v819 = vmul.f32 1.0, %v818
  %v820 = vrcp.pop %v817
  %v821 = vmul.f32 1.0, %v820
  %v822 = vtanh.pop %v808
  %v823 = vtanh.pop %v809
  %v824 = vmul.f32 %v819, %v726
  %826 = vrot.lane.b32.xlu0 %v822, 64
  %v827 = vpop.permute.xlu0 %826
  %v829 = vmul.f32 %v819, %v827
  %831 = vrot.lane.b32.xlu0 %v829, 32
  %v832 = vpop.permute.xlu0 %831
  %v834 = vadd.f32 %v824, %v832
  %v835 = vmul.f32 %v821, %v737
  %837 = vrot.lane.b32.xlu0 %v823, 64
  %v838 = vpop.permute.xlu0 %837
  %v840 = vmul.f32 %v821, %v838
  %842 = vrot.lane.b32.xlu0 %v840, 32
  %v843 = vpop.permute.xlu0 %842
  %v845 = vadd.f32 %v835, %v843
  %v846 = vtanh.pop %v834
  %848 = vrot.lane.b32.xlu0 %v846, 64
  %v849 = vpop.permute.xlu0 %848
  %v851 = vmul.f32 %v819, %v849
  %v852 = vtanh.pop %v845
  %854 = vrot.lane.b32.xlu0 %v852, 64
  %v855 = vpop.permute.xlu0 %854
  %v857 = vmul.f32 %v821, %v855
  %859 = vrot.lane.b32.xlu0 %v851, 32
  %v860 = vpop.permute.xlu0 %859
  %862 = vst.msk [vmem:[#allocation3 + $0x20] sm:$0xff] %vm428, %v860
  %864 = vrot.lane.b32.xlu0 %v857, 64
  %v865 = vpop.permute.xlu0 %864
  %867 = vst.msk [vmem:[#allocation3 + $0x18] sm:$0xff] %vm434, %v865
  %v868 = vsel %vm428, %v860, %v865
  %v869 = vpack.c.bf16 %v868, %v868
  %v870 = vld [vmem:[#allocation2 + $0x50] sm:$0xff]
  %v871 = vld [vmem:[#allocation2 + $0x58] sm:$0xff]
  %v873 = vsel %vm329, %v869, 0
  %875 = vmatprep.subr.bf16.mxu0 %v314
  %876 = vmatpush1.bf16.msra.mxu0 %v313
  %877 = vmatprep.subr.bf16.mxu0 %v316
  %878 = vmatpush1.bf16.msra.mxu0 %v315
  %879 = vmatprep.subr.bf16.mxu0 %v318
  %880 = vmatpush1.bf16.msra.mxu0 %v317
  %881 = vmatprep.subr.bf16.mxu0 %v320
  %882 = vmatpush1.bf16.msra.mxu0 %v319
  %883 = vmatprep.subr.bf16.mxu0 0
  %884 = vmatpush1.bf16.msra.mxu0 0
  %885 = vmatprep.subr.bf16.mxu0 0
  %886 = vmatpush1.bf16.msra.mxu0 0
  %887 = vmatprep.subr.bf16.mxu0 0
  %888 = vmatpush1.bf16.msra.mxu0 0
  %889 = vmatprep.subr.bf16.mxu0 0
  %890 = vmatpush1.bf16.msra.mxu0 0
  %891 = vmatprep.subr.bf16.mxu0 0
  %892 = vmatpush1.bf16.msra.mxu0 0
  %893 = vmatprep.subr.bf16.mxu0 0
  %894 = vmatpush1.bf16.msra.mxu0 0
  %895 = vmatprep.subr.bf16.mxu0 0
  %896 = vmatpush1.bf16.msra.mxu0 0
  %897 = vmatprep.subr.bf16.mxu0 0
  %898 = vmatpush1.bf16.msra.mxu0 0
  %899 = vmatprep.subr.bf16.mxu0 0
  %900 = vmatpush1.bf16.msra.mxu0 0
  %901 = vmatprep.subr.bf16.mxu0 0
  %902 = vmatpush1.bf16.msra.mxu0 0
  %903 = vmatprep.subr.bf16.mxu0 0
  %904 = vmatpush1.bf16.msra.mxu0 0
  %905 = vmatprep.subr.bf16.mxu0 0
  %906 = vmatpush1.bf16.msra.mxu0 0
  %907 = vmatprep.mubr.bf16.mxu0 0
  %908 = vmatmul.mubr.bf16.gmra.mrb[0].mxu0 %v873
  %v909 = vpop.f32.mrb[0].mxu0
  %v910 = vadd.f32 0.0, %v909
  %v911 = vpop.f32.mrb[0].mxu0
  %v912 = vadd.f32 0.0, %v911
  %v913 = vpop.f32.mrb[0].mxu0
  %v914 = vpop.f32.mrb[0].mxu0
  %915 = vdwg.mxu0
  %v916 = vadd.f32 %v870, %v910
  %v917 = vadd.f32 %v871, %v912
  %v918 = vxor.u32 %v916, 2147483648
  %v919 = vxor.u32 %v917, 2147483648
  %v920 = vmul.f32 %v918, 1.442695
  %v921 = vpow.pop %v920
  %v922 = vmul.f32 %v919, 1.442695
  %v923 = vpow.pop %v922
  %v924 = vadd.f32 %v921, 1.0
  %v925 = vadd.f32 %v923, 1.0
  %v926 = vrcp.pop %v924
  %v927 = vmul.f32 1.0, %v926
  %v928 = vrcp.pop %v925
  %v929 = vmul.f32 1.0, %v928
  %v930 = vtanh.pop %v916
  %v931 = vtanh.pop %v917
  %v932 = vmul.f32 %v927, %v834
  %934 = vrot.lane.b32.xlu0 %v930, 64
  %v935 = vpop.permute.xlu0 %934
  %v937 = vmul.f32 %v927, %v935
  %939 = vrot.lane.b32.xlu0 %v937, 32
  %v940 = vpop.permute.xlu0 %939
  %v942 = vadd.f32 %v932, %v940
  %v943 = vmul.f32 %v929, %v845
  %945 = vrot.lane.b32.xlu0 %v931, 64
  %v946 = vpop.permute.xlu0 %945
  %v948 = vmul.f32 %v929, %v946
  %950 = vrot.lane.b32.xlu0 %v948, 32
  %v951 = vpop.permute.xlu0 %950
  %v953 = vadd.f32 %v943, %v951
  %v954 = vtanh.pop %v942
  %956 = vrot.lane.b32.xlu0 %v954, 64
  %v957 = vpop.permute.xlu0 %956
  %v959 = vmul.f32 %v927, %v957
  %v960 = vtanh.pop %v953
  %962 = vrot.lane.b32.xlu0 %v960, 64
  %v963 = vpop.permute.xlu0 %962
  %v965 = vmul.f32 %v929, %v963
  %967 = vrot.lane.b32.xlu0 %v959, 32
  %v968 = vpop.permute.xlu0 %967
  %970 = vst.msk [vmem:[#allocation3 + $0x28] sm:$0xff] %vm428, %v968
  %972 = vrot.lane.b32.xlu0 %v965, 64
  %v973 = vpop.permute.xlu0 %972
  %975 = vst.msk [vmem:[#allocation3 + $0x10] sm:$0xff] %vm434, %v973
  %v976 = vsel %vm428, %v968, %v973
  %v977 = vpack.c.bf16 %v976, %v976
  %v978 = vld [vmem:[#allocation2 + $0x60] sm:$0xff]
  %v979 = vld [vmem:[#allocation2 + $0x68] sm:$0xff]
  %v981 = vsel %vm329, %v977, 0
  %983 = vmatprep.subr.bf16.mxu0 %v314
  %984 = vmatpush1.bf16.msra.mxu0 %v313
  %985 = vmatprep.subr.bf16.mxu0 %v316
  %986 = vmatpush1.bf16.msra.mxu0 %v315
  %987 = vmatprep.subr.bf16.mxu0 %v318
  %988 = vmatpush1.bf16.msra.mxu0 %v317
  %989 = vmatprep.subr.bf16.mxu0 %v320
  %990 = vmatpush1.bf16.msra.mxu0 %v319
  %991 = vmatprep.subr.bf16.mxu0 0
  %992 = vmatpush1.bf16.msra.mxu0 0
  %993 = vmatprep.subr.bf16.mxu0 0
  %994 = vmatpush1.bf16.msra.mxu0 0
  %995 = vmatprep.subr.bf16.mxu0 0
  %996 = vmatpush1.bf16.msra.mxu0 0
  %997 = vmatprep.subr.bf16.mxu0 0
  %998 = vmatpush1.bf16.msra.mxu0 0
  %999 = vmatprep.subr.bf16.mxu0 0
  %1000 = vmatpush1.bf16.msra.mxu0 0
  %1001 = vmatprep.subr.bf16.mxu0 0
  %1002 = vmatpush1.bf16.msra.mxu0 0
  %1003 = vmatprep.subr.bf16.mxu0 0
  %1004 = vmatpush1.bf16.msra.mxu0 0
  %1005 = vmatprep.subr.bf16.mxu0 0
  %1006 = vmatpush1.bf16.msra.mxu0 0
  %1007 = vmatprep.subr.bf16.mxu0 0
  %1008 = vmatpush1.bf16.msra.mxu0 0
  %1009 = vmatprep.subr.bf16.mxu0 0
  %1010 = vmatpush1.bf16.msra.mxu0 0
  %1011 = vmatprep.subr.bf16.mxu0 0
  %1012 = vmatpush1.bf16.msra.mxu0 0
  %1013 = vmatprep.subr.bf16.mxu0 0
  %1014 = vmatpush1.bf16.msra.mxu0 0
  %1015 = vmatprep.mubr.bf16.mxu0 0
  %1016 = vmatmul.mubr.bf16.gmra.mrb[0].mxu0 %v981
  %v1017 = vpop.f32.mrb[0].mxu0
  %v1018 = vadd.f32 0.0, %v1017
  %v1019 = vpop.f32.mrb[0].mxu0
  %v1020 = vadd.f32 0.0, %v1019
  %v1021 = vpop.f32.mrb[0].mxu0
  %v1022 = vpop.f32.mrb[0].mxu0
  %1023 = vdwg.mxu0
  %v1024 = vadd.f32 %v978, %v1018
  %v1025 = vadd.f32 %v979, %v1020
  %v1026 = vxor.u32 %v1024, 2147483648
  %v1027 = vxor.u32 %v1025, 2147483648
  %v1028 = vmul.f32 %v1026, 1.442695
  %v1029 = vpow.pop %v1028
  %v1030 = vmul.f32 %v1027, 1.442695
  %v1031 = vpow.pop %v1030
  %v1032 = vadd.f32 %v1029, 1.0
  %v1033 = vadd.f32 %v1031, 1.0
  %v1034 = vrcp.pop %v1032
  %v1035 = vmul.f32 1.0, %v1034
  %v1036 = vrcp.pop %v1033
  %v1037 = vmul.f32 1.0, %v1036
  %v1038 = vtanh.pop %v1024
  %v1039 = vtanh.pop %v1025
  %v1040 = vmul.f32 %v1035, %v942
  %1042 = vrot.lane.b32.xlu0 %v1038, 64
  %v1043 = vpop.permute.xlu0 %1042
  %v1045 = vmul.f32 %v1035, %v1043
  %1047 = vrot.lane.b32.xlu0 %v1045, 32
  %v1048 = vpop.permute.xlu0 %1047
  %v1050 = vadd.f32 %v1040, %v1048
  %v1051 = vmul.f32 %v1037, %v953
  %1053 = vrot.lane.b32.xlu0 %v1039, 64
  %v1054 = vpop.permute.xlu0 %1053
  %v1056 = vmul.f32 %v1037, %v1054
  %1058 = vrot.lane.b32.xlu0 %v1056, 32
  %v1059 = vpop.permute.xlu0 %1058
  %v1061 = vadd.f32 %v1051, %v1059
  %v1062 = vtanh.pop %v1050
  %1064 = vrot.lane.b32.xlu0 %v1062, 64
  %v1065 = vpop.permute.xlu0 %1064
  %v1067 = vmul.f32 %v1035, %v1065
  %v1068 = vtanh.pop %v1061
  %1070 = vrot.lane.b32.xlu0 %v1068, 64
  %v1071 = vpop.permute.xlu0 %1070
  %v1073 = vmul.f32 %v1037, %v1071
  %1075 = vrot.lane.b32.xlu0 %v1067, 32
  %v1076 = vpop.permute.xlu0 %1075
  %1078 = vst.msk [vmem:[#allocation3 + $0x30] sm:$0xff] %vm428, %v1076
  %1080 = vrot.lane.b32.xlu0 %v1073, 64
  %v1081 = vpop.permute.xlu0 %1080
  %1083 = vst.msk [vmem:[#allocation3 + $0x8] sm:$0xff] %vm434, %v1081
  %v1084 = vsel %vm428, %v1076, %v1081
  %v1085 = vpack.c.bf16 %v1084, %v1084
  %v1086 = vld [vmem:[#allocation2 + $0x70] sm:$0xff]
  %v1087 = vld [vmem:[#allocation2 + $0x78] sm:$0xff]
  %v1089 = vsel %vm329, %v1085, 0
  %1091 = vmatprep.subr.bf16.mxu0 %v314
  %1092 = vmatpush1.bf16.msra.mxu0 %v313
  %1093 = vmatprep.subr.bf16.mxu0 %v316
  %1094 = vmatpush1.bf16.msra.mxu0 %v315
  %1095 = vmatprep.subr.bf16.mxu0 %v318
  %1096 = vmatpush1.bf16.msra.mxu0 %v317
  %1097 = vmatprep.subr.bf16.mxu0 %v320
  %1098 = vmatpush1.bf16.msra.mxu0 %v319
  %1099 = vmatprep.subr.bf16.mxu0 0
  %1100 = vmatpush1.bf16.msra.mxu0 0
  %1101 = vmatprep.subr.bf16.mxu0 0
  %1102 = vmatpush1.bf16.msra.mxu0 0
  %1103 = vmatprep.subr.bf16.mxu0 0
  %1104 = vmatpush1.bf16.msra.mxu0 0
  %1105 = vmatprep.subr.bf16.mxu0 0
  %1106 = vmatpush1.bf16.msra.mxu0 0
  %1107 = vmatprep.subr.bf16.mxu0 0
  %1108 = vmatpush1.bf16.msra.mxu0 0
  %1109 = vmatprep.subr.bf16.mxu0 0
  %1110 = vmatpush1.bf16.msra.mxu0 0
  %1111 = vmatprep.subr.bf16.mxu0 0
  %1112 = vmatpush1.bf16.msra.mxu0 0
  %1113 = vmatprep.subr.bf16.mxu0 0
  %1114 = vmatpush1.bf16.msra.mxu0 0
  %1115 = vmatprep.subr.bf16.mxu0 0
  %1116 = vmatpush1.bf16.msra.mxu0 0
  %1117 = vmatprep.subr.bf16.mxu0 0
  %1118 = vmatpush1.bf16.msra.mxu0 0
  %1119 = vmatprep.subr.bf16.mxu0 0
  %1120 = vmatpush1.bf16.msra.mxu0 0
  %1121 = vmatprep.subr.bf16.mxu0 0
  %1122 = vmatpush1.bf16.msra.mxu0 0
  %1123 = vmatprep.mubr.bf16.mxu0 0
  %1124 = vmatmul.mubr.bf16.gmra.mrb[0].mxu0 %v1089
  %v1125 = vpop.f32.mrb[0].mxu0
  %v1126 = vadd.f32 0.0, %v1125
  %v1127 = vpop.f32.mrb[0].mxu0
  %v1128 = vadd.f32 0.0, %v1127
  %v1129 = vpop.f32.mrb[0].mxu0
  %v1130 = vpop.f32.mrb[0].mxu0
  %1131 = vdwg.mxu0
  %v1132 = vadd.f32 %v1086, %v1126
  %v1133 = vadd.f32 %v1087, %v1128
  %v1134 = vxor.u32 %v1132, 2147483648
  %v1135 = vxor.u32 %v1133, 2147483648
  %v1136 = vmul.f32 %v1134, 1.442695
  %v1137 = vpow.pop %v1136
  %v1138 = vmul.f32 %v1135, 1.442695
  %v1139 = vpow.pop %v1138
  %v1140 = vadd.f32 %v1137, 1.0
  %v1141 = vadd.f32 %v1139, 1.0
  %v1142 = vrcp.pop %v1140
  %v1143 = vmul.f32 1.0, %v1142
  %v1144 = vrcp.pop %v1141
  %v1145 = vmul.f32 1.0, %v1144
  %v1146 = vtanh.pop %v1132
  %v1147 = vtanh.pop %v1133
  %v1148 = vmul.f32 %v1143, %v1050
  %1150 = vrot.lane.b32.xlu0 %v1146, 64
  %v1151 = vpop.permute.xlu0 %1150
  %v1153 = vmul.f32 %v1143, %v1151
  %1155 = vrot.lane.b32.xlu0 %v1153, 32
  %v1156 = vpop.permute.xlu0 %1155
  %v1158 = vadd.f32 %v1148, %v1156
  %v1159 = vmul.f32 %v1145, %v1061
  %1161 = vrot.lane.b32.xlu0 %v1147, 64
  %v1162 = vpop.permute.xlu0 %1161
  %v1164 = vmul.f32 %v1145, %v1162
  %1166 = vrot.lane.b32.xlu0 %v1164, 32
  %v1167 = vpop.permute.xlu0 %1166
  %v1169 = vadd.f32 %v1159, %v1167
  %v1170 = vtanh.pop %v1158
  %1172 = vrot.lane.b32.xlu0 %v1170, 64
  %v1173 = vpop.permute.xlu0 %1172
  %v1175 = vmul.f32 %v1143, %v1173
  %v1176 = vtanh.pop %v1169
  %1178 = vrot.lane.b32.xlu0 %v1176, 64
  %v1179 = vpop.permute.xlu0 %1178
  %v1181 = vmul.f32 %v1145, %v1179
  %1183 = vrot.lane.b32.xlu0 %v1175, 32
  %v1184 = vpop.permute.xlu0 %1183
  %1186 = vst.msk [vmem:[#allocation3 + $0x38] sm:$0xff] %vm428, %v1184
  %1188 = vrot.lane.b32.xlu0 %v1181, 64
  %v1189 = vpop.permute.xlu0 %1188
  %1191 = vst.msk [vmem:[#allocation3] sm:$0xff] %vm434, %v1189
  %v1192 = vld [vmem:[#allocation3] sm:$0xff]
  %v1193 = vld [vmem:[#allocation3 + $0x8] sm:$0xff]
  %v1194 = vld [vmem:[#allocation3 + $0x10] sm:$0xff]
  %v1195 = vld [vmem:[#allocation3 + $0x18] sm:$0xff]
  %v1196 = vld [vmem:[#allocation3 + $0x20] sm:$0xff]
  %v1197 = vld [vmem:[#allocation3 + $0x28] sm:$0xff]
  %v1198 = vld [vmem:[#allocation3 + $0x30] sm:$0xff]
  %v1199 = vld [vmem:[#allocation3 + $0x38] sm:$0xff]
  %v1200 = vpack.c.bf16 %v1193, %v1192
  %v1201 = vpack.c.bf16 %v1195, %v1194
  %v1202 = vpack.c.bf16 %v1197, %v1196
  %v1203 = vpack.c.bf16 %v1199, %v1198
  %v1204 = vld [vmem:[%s8] sm:$0x1]
  %v1205 = vld [vmem:[%s6] sm:$0xf]
  %v1206 = vld [vmem:[%s6 + $0x4] sm:$0xf]
  %v1207 = vld [vmem:[%s6 + $0x8] sm:$0xf]
  %v1208 = vld [vmem:[%s6 + $0xc] sm:$0xf]
  %v1209 = vld [vmem:[%s6 + $0x10] sm:$0xf]
  %v1210 = vld [vmem:[%s6 + $0x14] sm:$0xf]
  %v1211 = vld [vmem:[%s6 + $0x18] sm:$0xf]
  %v1212 = vld [vmem:[%s6 + $0x1c] sm:$0xf]
  %v1221 = vunpack.c.l.b16 %v1205
  %v1222 = vunpack.c.l.b16 %v1206
  %v1223 = vunpack.c.l.b16 %v1207
  %v1224 = vunpack.c.l.b16 %v1208
  %v1225 = vunpack.c.l.b16 %v1209
  %v1226 = vunpack.c.l.b16 %v1210
  %v1227 = vunpack.c.l.b16 %v1211
  %v1228 = vunpack.c.l.b16 %v1212
  %v1229 = vpack.c.b16 %v1222, %v1221
  %v1230 = vpack.c.b16 %v1224, %v1223
  %v1231 = vpack.c.b16 %v1226, %v1225
  %v1232 = vpack.c.b16 %v1228, %v1227
  %v1238 = vsel %vm329, %v1200, 0
  %v1241 = vsel %vm329, %v1201, 0
  %v1244 = vsel %vm329, %v1202, 0
  %v1247 = vsel %vm329, %v1203, 0
  %1249 = vmatprep.subr.bf16.mxu0 0
  %1250 = vmatpush1.bf16.msra.mxu0 %v1229
  %1251 = vmatprep.subr.bf16.mxu0 0
  %1252 = vmatpush1.bf16.msra.mxu0 %v1230
  %1253 = vmatprep.subr.bf16.mxu0 0
  %1254 = vmatpush1.bf16.msra.mxu0 %v1231
  %1255 = vmatprep.subr.bf16.mxu0 0
  %1256 = vmatpush1.bf16.msra.mxu0 %v1232
  %1257 = vmatprep.subr.bf16.mxu0 0
  %1258 = vmatpush1.bf16.msra.mxu0 0
  %1259 = vmatprep.subr.bf16.mxu0 0
  %1260 = vmatpush1.bf16.msra.mxu0 0
  %1261 = vmatprep.subr.bf16.mxu0 0
  %1262 = vmatpush1.bf16.msra.mxu0 0
  %1263 = vmatprep.subr.bf16.mxu0 0
  %1264 = vmatpush1.bf16.msra.mxu0 0
  %1265 = vmatprep.subr.bf16.mxu0 0
  %1266 = vmatpush1.bf16.msra.mxu0 0
  %1267 = vmatprep.subr.bf16.mxu0 0
  %1268 = vmatpush1.bf16.msra.mxu0 0
  %1269 = vmatprep.subr.bf16.mxu0 0
  %1270 = vmatpush1.bf16.msra.mxu0 0
  %1271 = vmatprep.subr.bf16.mxu0 0
  %1272 = vmatpush1.bf16.msra.mxu0 0
  %1273 = vmatprep.subr.bf16.mxu0 0
  %1274 = vmatpush1.bf16.msra.mxu0 0
  %1275 = vmatprep.subr.bf16.mxu0 0
  %1276 = vmatpush1.bf16.msra.mxu0 0
  %1277 = vmatprep.subr.bf16.mxu0 0
  %1278 = vmatpush1.bf16.msra.mxu0 0
  %1279 = vmatprep.subr.bf16.mxu0 0
  %1280 = vmatpush1.bf16.msra.mxu0 0
  %1281 = vmatprep.mubr.bf16.mxu0 0
  %1282 = vmatmul.mubr.bf16.gmra.mrb[0].mxu0 %v1238
  %v1283 = vpop.f32.mrb[0].mxu0
  %v1284 = vadd.f32 0.0, %v1283
  %v1285 = vpop.f32.mrb[0].mxu0
  %v1286 = vpop.f32.mrb[0].mxu0
  %v1287 = vadd.f32 0.0, %v1286
  %v1288 = vpop.f32.mrb[0].mxu0
  %1289 = vmatprep.mubr.bf16.mxu0 0
  %1290 = vmatmul.mubr.bf16.gmra.mrb[0].mxu0 %v1241
  %v1291 = vpop.f32.mrb[0].mxu0
  %v1292 = vadd.f32 0.0, %v1291
  %v1293 = vpop.f32.mrb[0].mxu0
  %v1294 = vpop.f32.mrb[0].mxu0
  %v1295 = vadd.f32 0.0, %v1294
  %v1296 = vpop.f32.mrb[0].mxu0
  %1297 = vmatprep.mubr.bf16.mxu0 0
  %1298 = vmatmul.mubr.bf16.gmra.mrb[0].mxu0 %v1244
  %v1299 = vpop.f32.mrb[0].mxu0
  %v1300 = vadd.f32 0.0, %v1299
  %v1301 = vpop.f32.mrb[0].mxu0
  %v1302 = vpop.f32.mrb[0].mxu0
  %v1303 = vadd.f32 0.0, %v1302
  %v1304 = vpop.f32.mrb[0].mxu0
  %1305 = vmatprep.mubr.bf16.mxu0 0
  %1306 = vmatmul.mubr.bf16.gmra.mrb[0].mxu0 %v1247
  %v1307 = vpop.f32.mrb[0].mxu0
  %v1308 = vadd.f32 0.0, %v1307
  %v1309 = vpop.f32.mrb[0].mxu0
  %v1310 = vpop.f32.mrb[0].mxu0
  %v1311 = vadd.f32 0.0, %v1310
  %v1312 = vpop.f32.mrb[0].mxu0
  %1313 = vdwg.mxu0
  %v1315 = vlaneseq
  %v1316 = vshrl.u32 %v1315, 7
  %v1317 = vsub.s32 0, %v1316
  %v1318 = vrot.slane %v1204, %v1317
  %v1320 = vadd.f32 %v1318, %v1284
  %v1321 = vadd.f32 %v1318, %v1287
  %v1322 = vadd.f32 %v1318, %v1292
  %v1323 = vadd.f32 %v1318, %v1295
  %v1324 = vadd.f32 %v1318, %v1300
  %v1325 = vadd.f32 %v1318, %v1303
  %v1326 = vadd.f32 %v1318, %v1308
  %v1327 = vadd.f32 %v1318, %v1311
  %v1328 = vld [vmem:[%s9] sm:$0x1]
  %v1329 = vld [vmem:[%s7] sm:$0xf]
  %v1330 = vld [vmem:[%s7 + $0x4] sm:$0xf]
  %v1331 = vld [vmem:[%s7 + $0x8] sm:$0xf]
  %v1332 = vld [vmem:[%s7 + $0xc] sm:$0xf]
  %v1333 = vld [vmem:[%s7 + $0x10] sm:$0xf]
  %v1334 = vld [vmem:[%s7 + $0x14] sm:$0xf]
  %v1335 = vld [vmem:[%s7 + $0x18] sm:$0xf]
  %v1336 = vld [vmem:[%s7 + $0x1c] sm:$0xf]
  %v1345 = vunpack.c.l.b16 %v1329
  %v1346 = vunpack.c.l.b16 %v1330
  %v1347 = vunpack.c.l.b16 %v1331
  %v1348 = vunpack.c.l.b16 %v1332
  %v1349 = vunpack.c.l.b16 %v1333
  %v1350 = vunpack.c.l.b16 %v1334
  %v1351 = vunpack.c.l.b16 %v1335
  %v1352 = vunpack.c.l.b16 %v1336
  %v1353 = vpack.c.b16 %v1346, %v1345
  %v1354 = vpack.c.b16 %v1348, %v1347
  %v1355 = vpack.c.b16 %v1350, %v1349
  %v1356 = vpack.c.b16 %v1352, %v1351
  %1361 = vmatprep.subr.bf16.mxu0 0
  %1362 = vmatpush1.bf16.msra.mxu0 %v1353
  %1363 = vmatprep.subr.bf16.mxu0 0
  %1364 = vmatpush1.bf16.msra.mxu0 %v1354
  %1365 = vmatprep.subr.bf16.mxu0 0
  %1366 = vmatpush1.bf16.msra.mxu0 %v1355
  %1367 = vmatprep.subr.bf16.mxu0 0
  %1368 = vmatpush1.bf16.msra.mxu0 %v1356
  %1369 = vmatprep.subr.bf16.mxu0 0
  %1370 = vmatpush1.bf16.msra.mxu0 0
  %1371 = vmatprep.subr.bf16.mxu0 0
  %1372 = vmatpush1.bf16.msra.mxu0 0
  %1373 = vmatprep.subr.bf16.mxu0 0
  %1374 = vmatpush1.bf16.msra.mxu0 0
  %1375 = vmatprep.subr.bf16.mxu0 0
  %1376 = vmatpush1.bf16.msra.mxu0 0
  %1377 = vmatprep.subr.bf16.mxu0 0
  %1378 = vmatpush1.bf16.msra.mxu0 0
  %1379 = vmatprep.subr.bf16.mxu0 0
  %1380 = vmatpush1.bf16.msra.mxu0 0
  %1381 = vmatprep.subr.bf16.mxu0 0
  %1382 = vmatpush1.bf16.msra.mxu0 0
  %1383 = vmatprep.subr.bf16.mxu0 0
  %1384 = vmatpush1.bf16.msra.mxu0 0
  %1385 = vmatprep.subr.bf16.mxu0 0
  %1386 = vmatpush1.bf16.msra.mxu0 0
  %1387 = vmatprep.subr.bf16.mxu0 0
  %1388 = vmatpush1.bf16.msra.mxu0 0
  %1389 = vmatprep.subr.bf16.mxu0 0
  %1390 = vmatpush1.bf16.msra.mxu0 0
  %1391 = vmatprep.subr.bf16.mxu0 0
  %1392 = vmatpush1.bf16.msra.mxu0 0
  %1393 = vmatprep.mubr.bf16.mxu0 0
  %1394 = vmatmul.mubr.bf16.gmra.mrb[0].mxu0 %v1238
  %v1395 = vpop.f32.mrb[0].mxu0
  %v1396 = vadd.f32 0.0, %v1395
  %v1397 = vpop.f32.mrb[0].mxu0
  %v1398 = vpop.f32.mrb[0].mxu0
  %v1399 = vadd.f32 0.0, %v1398
  %v1400 = vpop.f32.mrb[0].mxu0
  %1401 = vmatprep.mubr.bf16.mxu0 0
  %1402 = vmatmul.mubr.bf16.gmra.mrb[0].mxu0 %v1241
  %v1403 = vpop.f32.mrb[0].mxu0
  %v1404 = vadd.f32 0.0, %v1403
  %v1405 = vpop.f32.mrb[0].mxu0
  %v1406 = vpop.f32.mrb[0].mxu0
  %v1407 = vadd.f32 0.0, %v1406
  %v1408 = vpop.f32.mrb[0].mxu0
  %1409 = vmatprep.mubr.bf16.mxu0 0
  %1410 = vmatmul.mubr.bf16.gmra.mrb[0].mxu0 %v1244
  %v1411 = vpop.f32.mrb[0].mxu0
  %v1412 = vadd.f32 0.0, %v1411
  %v1413 = vpop.f32.mrb[0].mxu0
  %v1414 = vpop.f32.mrb[0].mxu0
  %v1415 = vadd.f32 0.0, %v1414
  %v1416 = vpop.f32.mrb[0].mxu0
  %1417 = vmatprep.mubr.bf16.mxu0 0
  %1418 = vmatmul.mubr.bf16.gmra.mrb[0].mxu0 %v1247
  %v1419 = vpop.f32.mrb[0].mxu0
  %v1420 = vadd.f32 0.0, %v1419
  %v1421 = vpop.f32.mrb[0].mxu0
  %v1422 = vpop.f32.mrb[0].mxu0
  %v1423 = vadd.f32 0.0, %v1422
  %v1424 = vpop.f32.mrb[0].mxu0
  %1425 = vdwg.mxu0
  %v1427 = vlaneseq
  %v1428 = vshrl.u32 %v1427, 7
  %v1429 = vsub.s32 0, %v1428
  %v1430 = vrot.slane %v1328, %v1429
  %v1432 = vadd.f32 %v1430, %v1396
  %v1433 = vadd.f32 %v1430, %v1399
  %v1434 = vadd.f32 %v1430, %v1404
  %v1435 = vadd.f32 %v1430, %v1407
  %v1436 = vadd.f32 %v1430, %v1412
  %v1437 = vadd.f32 %v1430, %v1415
  %v1438 = vadd.f32 %v1430, %v1420
  %v1439 = vadd.f32 %v1430, %v1423
  %1440 = vst [vmem:[#allocation2] sm:$0xff] %v1320
  %1441 = vst [vmem:[#allocation2 + $0x10] sm:$0xff] %v1321
  %1442 = vst [vmem:[#allocation2 + $0x20] sm:$0xff] %v1322
  %1443 = vst [vmem:[#allocation2 + $0x30] sm:$0xff] %v1323
  %1444 = vst [vmem:[#allocation2 + $0x40] sm:$0xff] %v1324
  %1445 = vst [vmem:[#allocation2 + $0x50] sm:$0xff] %v1325
  %1446 = vst [vmem:[#allocation2 + $0x60] sm:$0xff] %v1326
  %1447 = vst [vmem:[#allocation2 + $0x70] sm:$0xff] %v1327
  %1448 = vst [vmem:[#allocation2 + $0x78] sm:$0xff] %v1432
  %1449 = vst [vmem:[#allocation2 + $0x68] sm:$0xff] %v1433
  %1450 = vst [vmem:[#allocation2 + $0x58] sm:$0xff] %v1434
  %1451 = vst [vmem:[#allocation2 + $0x48] sm:$0xff] %v1435
  %1452 = vst [vmem:[#allocation2 + $0x38] sm:$0xff] %v1436
  %1453 = vst [vmem:[#allocation2 + $0x28] sm:$0xff] %v1437
  %1454 = vst [vmem:[#allocation2 + $0x18] sm:$0xff] %v1438
  %1455 = vst [vmem:[#allocation2 + $0x8] sm:$0xff] %v1439
  %v1456 = vld [vmem:[%s10] sm:$0xff]
  %v1457 = vld [vmem:[%s10 + $0x8] sm:$0xff]
  %v1458 = vld [vmem:[%s10 + $0x10] sm:$0xff]
  %v1459 = vld [vmem:[%s10 + $0x18] sm:$0xff]
  %v1460 = vld [vmem:[%s10 + $0x20] sm:$0xff]
  %v1461 = vld [vmem:[%s10 + $0x28] sm:$0xff]
  %v1462 = vld [vmem:[%s10 + $0x30] sm:$0xff]
  %v1463 = vld [vmem:[%s10 + $0x38] sm:$0xff]
  %v1464 = vld [vmem:[#allocation2] sm:$0xff]
  %v1465 = vld [vmem:[#allocation2 + $0x8] sm:$0xff]
  %v1474 = vunpack.c.l.b16 %v1456
  %v1475 = vunpack.c.h.b16 %v1456
  %v1476 = vunpack.c.l.b16 %v1457
  %v1477 = vunpack.c.h.b16 %v1457
  %v1478 = vunpack.c.l.b16 %v1458
  %v1479 = vunpack.c.h.b16 %v1458
  %v1480 = vunpack.c.l.b16 %v1459
  %v1481 = vunpack.c.h.b16 %v1459
  %v1482 = vunpack.c.l.b16 %v1460
  %v1483 = vunpack.c.h.b16 %v1460
  %v1484 = vunpack.c.l.b16 %v1461
  %v1485 = vunpack.c.h.b16 %v1461
  %v1486 = vunpack.c.l.b16 %v1462
  %v1487 = vunpack.c.h.b16 %v1462
  %v1488 = vunpack.c.l.b16 %v1463
  %v1489 = vunpack.c.h.b16 %v1463
  %v1490 = vpack.c.b16 %v1476, %v1474
  %v1491 = vpack.c.b16 %v1477, %v1475
  %v1492 = vpack.c.b16 %v1480, %v1478
  %v1493 = vpack.c.b16 %v1481, %v1479
  %v1494 = vpack.c.b16 %v1484, %v1482
  %v1495 = vpack.c.b16 %v1485, %v1483
  %v1496 = vpack.c.b16 %v1488, %v1486
  %v1497 = vpack.c.b16 %v1489, %v1487
  %1506 = vmatprep.subr.bf16.mxu0 %v1491
  %1507 = vmatpush1.bf16.msra.mxu0 %v1490
  %1508 = vmatprep.subr.bf16.mxu0 %v1493
  %1509 = vmatpush1.bf16.msra.mxu0 %v1492
  %1510 = vmatprep.subr.bf16.mxu0 %v1495
  %1511 = vmatpush1.bf16.msra.mxu0 %v1494
  %1512 = vmatprep.subr.bf16.mxu0 %v1497
  %1513 = vmatpush1.bf16.msra.mxu0 %v1496
  %1514 = vmatprep.subr.bf16.mxu0 0
  %1515 = vmatpush1.bf16.msra.mxu0 0
  %1516 = vmatprep.subr.bf16.mxu0 0
  %1517 = vmatpush1.bf16.msra.mxu0 0
  %1518 = vmatprep.subr.bf16.mxu0 0
  %1519 = vmatpush1.bf16.msra.mxu0 0
  %1520 = vmatprep.subr.bf16.mxu0 0
  %1521 = vmatpush1.bf16.msra.mxu0 0
  %1522 = vmatprep.subr.bf16.mxu0 0
  %1523 = vmatpush1.bf16.msra.mxu0 0
  %1524 = vmatprep.subr.bf16.mxu0 0
  %1525 = vmatpush1.bf16.msra.mxu0 0
  %1526 = vmatprep.subr.bf16.mxu0 0
  %1527 = vmatpush1.bf16.msra.mxu0 0
  %1528 = vmatprep.subr.bf16.mxu0 0
  %1529 = vmatpush1.bf16.msra.mxu0 0
  %1530 = vmatprep.subr.bf16.mxu0 0
  %1531 = vmatpush1.bf16.msra.mxu0 0
  %1532 = vmatprep.subr.bf16.mxu0 0
  %1533 = vmatpush1.bf16.msra.mxu0 0
  %1534 = vmatprep.subr.bf16.mxu0 0
  %1535 = vmatpush1.bf16.msra.mxu0 0
  %1536 = vmatprep.subr.bf16.mxu0 0
  %1537 = vmatpush1.bf16.msra.mxu0 0
  %1538 = vmatprep.mubr.bf16.mxu0 0
  %1539 = vmatmul.mubr.bf16.gmra.mrb[0].mxu0 %v331
  %v1540 = vpop.f32.mrb[0].mxu0
  %v1541 = vadd.f32 0.0, %v1540
  %v1542 = vpop.f32.mrb[0].mxu0
  %v1543 = vadd.f32 0.0, %v1542
  %v1544 = vpop.f32.mrb[0].mxu0
  %v1545 = vpop.f32.mrb[0].mxu0
  %1546 = vdwg.mxu0
  %v1547 = vadd.f32 %v1464, %v1541
  %v1548 = vadd.f32 %v1465, %v1543
  %v1549 = vxor.u32 %v1547, 2147483648
  %v1550 = vxor.u32 %v1548, 2147483648
  %v1551 = vmul.f32 %v1549, 1.442695
  %v1552 = vpow.pop %v1551
  %v1553 = vmul.f32 %v1550, 1.442695
  %v1554 = vpow.pop %v1553
  %v1555 = vadd.f32 %v1552, 1.0
  %v1556 = vadd.f32 %v1554, 1.0
  %v1557 = vrcp.pop %v1555
  %v1558 = vmul.f32 1.0, %v1557
  %v1559 = vrcp.pop %v1556
  %v1560 = vmul.f32 1.0, %v1559
  %v1561 = vtanh.pop %v1547
  %v1562 = vtanh.pop %v1548
  %v1563 = vmul.f32 %v1558, 0.0
  %1565 = vrot.lane.b32.xlu0 %v1561, 64
  %v1566 = vpop.permute.xlu0 %1565
  %v1568 = vmul.f32 %v1558, %v1566
  %1570 = vrot.lane.b32.xlu0 %v1568, 32
  %v1571 = vpop.permute.xlu0 %1570
  %v1573 = vadd.f32 %v1563, %v1571
  %v1574 = vmul.f32 %v1560, 0.0
  %1576 = vrot.lane.b32.xlu0 %v1562, 64
  %v1577 = vpop.permute.xlu0 %1576
  %v1579 = vmul.f32 %v1560, %v1577
  %1581 = vrot.lane.b32.xlu0 %v1579, 32
  %v1582 = vpop.permute.xlu0 %1581
  %v1584 = vadd.f32 %v1574, %v1582
  %v1585 = vtanh.pop %v1573
  %1587 = vrot.lane.b32.xlu0 %v1585, 64
  %v1588 = vpop.permute.xlu0 %1587
  %v1590 = vmul.f32 %v1558, %v1588
  %v1591 = vtanh.pop %v1584
  %1593 = vrot.lane.b32.xlu0 %v1591, 64
  %v1594 = vpop.permute.xlu0 %1593
  %v1596 = vmul.f32 %v1560, %v1594
  %1598 = vrot.lane.b32.xlu0 %v1590, 32
  %v1599 = vpop.permute.xlu0 %1598
  %1602 = vrot.lane.b32.xlu0 %v1596, 64
  %v1603 = vpop.permute.xlu0 %1602
  %v1605 = vsel %vm428, %v1599, %v1603
  %v1606 = vpack.c.bf16 %v1605, %v1605
  %v1607 = vld [vmem:[#allocation2 + $0x10] sm:$0xff]
  %v1608 = vld [vmem:[#allocation2 + $0x18] sm:$0xff]
  %v1610 = vsel %vm329, %v1606, 0
  %1612 = vmatprep.subr.bf16.mxu0 %v1491
  %1613 = vmatpush1.bf16.msra.mxu0 %v1490
  %1614 = vmatprep.subr.bf16.mxu0 %v1493
  %1615 = vmatpush1.bf16.msra.mxu0 %v1492
  %1616 = vmatprep.subr.bf16.mxu0 %v1495
  %1617 = vmatpush1.bf16.msra.mxu0 %v1494
  %1618 = vmatprep.subr.bf16.mxu0 %v1497
  %1619 = vmatpush1.bf16.msra.mxu0 %v1496
  %1620 = vmatprep.subr.bf16.mxu0 0
  %1621 = vmatpush1.bf16.msra.mxu0 0
  %1622 = vmatprep.subr.bf16.mxu0 0
  %1623 = vmatpush1.bf16.msra.mxu0 0
  %1624 = vmatprep.subr.bf16.mxu0 0
  %1625 = vmatpush1.bf16.msra.mxu0 0
  %1626 = vmatprep.subr.bf16.mxu0 0
  %1627 = vmatpush1.bf16.msra.mxu0 0
  %1628 = vmatprep.subr.bf16.mxu0 0
  %1629 = vmatpush1.bf16.msra.mxu0 0
  %1630 = vmatprep.subr.bf16.mxu0 0
  %1631 = vmatpush1.bf16.msra.mxu0 0
  %1632 = vmatprep.subr.bf16.mxu0 0
  %1633 = vmatpush1.bf16.msra.mxu0 0
  %1634 = vmatprep.subr.bf16.mxu0 0
  %1635 = vmatpush1.bf16.msra.mxu0 0
  %1636 = vmatprep.subr.bf16.mxu0 0
  %1637 = vmatpush1.bf16.msra.mxu0 0
  %1638 = vmatprep.subr.bf16.mxu0 0
  %1639 = vmatpush1.bf16.msra.mxu0 0
  %1640 = vmatprep.subr.bf16.mxu0 0
  %1641 = vmatpush1.bf16.msra.mxu0 0
  %1642 = vmatprep.subr.bf16.mxu0 0
  %1643 = vmatpush1.bf16.msra.mxu0 0
  %1644 = vmatprep.mubr.bf16.mxu0 0
  %1645 = vmatmul.mubr.bf16.gmra.mrb[0].mxu0 %v1610
  %v1646 = vpop.f32.mrb[0].mxu0
  %v1647 = vadd.f32 0.0, %v1646
  %v1648 = vpop.f32.mrb[0].mxu0
  %v1649 = vadd.f32 0.0, %v1648
  %v1650 = vpop.f32.mrb[0].mxu0
  %v1651 = vpop.f32.mrb[0].mxu0
  %1652 = vdwg.mxu0
  %v1653 = vadd.f32 %v1607, %v1647
  %v1654 = vadd.f32 %v1608, %v1649
  %v1655 = vxor.u32 %v1653, 2147483648
  %v1656 = vxor.u32 %v1654, 2147483648
  %v1657 = vmul.f32 %v1655, 1.442695
  %v1658 = vpow.pop %v1657
  %v1659 = vmul.f32 %v1656, 1.442695
  %v1660 = vpow.pop %v1659
  %v1661 = vadd.f32 %v1658, 1.0
  %v1662 = vadd.f32 %v1660, 1.0
  %v1663 = vrcp.pop %v1661
  %v1664 = vmul.f32 1.0, %v1663
  %v1665 = vrcp.pop %v1662
  %v1666 = vmul.f32 1.0, %v1665
  %v1667 = vtanh.pop %v1653
  %v1668 = vtanh.pop %v1654
  %v1669 = vmul.f32 %v1664, %v1573
  %1671 = vrot.lane.b32.xlu0 %v1667, 64
  %v1672 = vpop.permute.xlu0 %1671
  %v1674 = vmul.f32 %v1664, %v1672
  %1676 = vrot.lane.b32.xlu0 %v1674, 32
  %v1677 = vpop.permute.xlu0 %1676
  %v1679 = vadd.f32 %v1669, %v1677
  %v1680 = vmul.f32 %v1666, %v1584
  %1682 = vrot.lane.b32.xlu0 %v1668, 64
  %v1683 = vpop.permute.xlu0 %1682
  %v1685 = vmul.f32 %v1666, %v1683
  %1687 = vrot.lane.b32.xlu0 %v1685, 32
  %v1688 = vpop.permute.xlu0 %1687
  %v1690 = vadd.f32 %v1680, %v1688
  %v1691 = vtanh.pop %v1679
  %1693 = vrot.lane.b32.xlu0 %v1691, 64
  %v1694 = vpop.permute.xlu0 %1693
  %v1696 = vmul.f32 %v1664, %v1694
  %v1697 = vtanh.pop %v1690
  %1699 = vrot.lane.b32.xlu0 %v1697, 64
  %v1700 = vpop.permute.xlu0 %1699
  %v1702 = vmul.f32 %v1666, %v1700
  %1704 = vrot.lane.b32.xlu0 %v1696, 32
  %v1705 = vpop.permute.xlu0 %1704
  %1708 = vrot.lane.b32.xlu0 %v1702, 64
  %v1709 = vpop.permute.xlu0 %1708
  %v1711 = vsel %vm428, %v1705, %v1709
  %v1712 = vpack.c.bf16 %v1711, %v1711
  %v1713 = vld [vmem:[#allocation2 + $0x20] sm:$0xff]
  %v1714 = vld [vmem:[#allocation2 + $0x28] sm:$0xff]
  %v1716 = vsel %vm329, %v1712, 0
  %1718 = vmatprep.subr.bf16.mxu0 %v1491
  %1719 = vmatpush1.bf16.msra.mxu0 %v1490
  %1720 = vmatprep.subr.bf16.mxu0 %v1493
  %1721 = vmatpush1.bf16.msra.mxu0 %v1492
  %1722 = vmatprep.subr.bf16.mxu0 %v1495
  %1723 = vmatpush1.bf16.msra.mxu0 %v1494
  %1724 = vmatprep.subr.bf16.mxu0 %v1497
  %1725 = vmatpush1.bf16.msra.mxu0 %v1496
  %1726 = vmatprep.subr.bf16.mxu0 0
  %1727 = vmatpush1.bf16.msra.mxu0 0
  %1728 = vmatprep.subr.bf16.mxu0 0
  %1729 = vmatpush1.bf16.msra.mxu0 0
  %1730 = vmatprep.subr.bf16.mxu0 0
  %1731 = vmatpush1.bf16.msra.mxu0 0
  %1732 = vmatprep.subr.bf16.mxu0 0
  %1733 = vmatpush1.bf16.msra.mxu0 0
  %1734 = vmatprep.subr.bf16.mxu0 0
  %1735 = vmatpush1.bf16.msra.mxu0 0
  %1736 = vmatprep.subr.bf16.mxu0 0
  %1737 = vmatpush1.bf16.msra.mxu0 0
  %1738 = vmatprep.subr.bf16.mxu0 0
  %1739 = vmatpush1.bf16.msra.mxu0 0
  %1740 = vmatprep.subr.bf16.mxu0 0
  %1741 = vmatpush1.bf16.msra.mxu0 0
  %1742 = vmatprep.subr.bf16.mxu0 0
  %1743 = vmatpush1.bf16.msra.mxu0 0
  %1744 = vmatprep.subr.bf16.mxu0 0
  %1745 = vmatpush1.bf16.msra.mxu0 0
  %1746 = vmatprep.subr.bf16.mxu0 0
  %1747 = vmatpush1.bf16.msra.mxu0 0
  %1748 = vmatprep.subr.bf16.mxu0 0
  %1749 = vmatpush1.bf16.msra.mxu0 0
  %1750 = vmatprep.mubr.bf16.mxu0 0
  %1751 = vmatmul.mubr.bf16.gmra.mrb[0].mxu0 %v1716
  %v1752 = vpop.f32.mrb[0].mxu0
  %v1753 = vadd.f32 0.0, %v1752
  %v1754 = vpop.f32.mrb[0].mxu0
  %v1755 = vadd.f32 0.0, %v1754
  %v1756 = vpop.f32.mrb[0].mxu0
  %v1757 = vpop.f32.mrb[0].mxu0
  %1758 = vdwg.mxu0
  %v1759 = vadd.f32 %v1713, %v1753
  %v1760 = vadd.f32 %v1714, %v1755
  %v1761 = vxor.u32 %v1759, 2147483648
  %v1762 = vxor.u32 %v1760, 2147483648
  %v1763 = vmul.f32 %v1761, 1.442695
  %v1764 = vpow.pop %v1763
  %v1765 = vmul.f32 %v1762, 1.442695
  %v1766 = vpow.pop %v1765
  %v1767 = vadd.f32 %v1764, 1.0
  %v1768 = vadd.f32 %v1766, 1.0
  %v1769 = vrcp.pop %v1767
  %v1770 = vmul.f32 1.0, %v1769
  %v1771 = vrcp.pop %v1768
  %v1772 = vmul.f32 1.0, %v1771
  %v1773 = vtanh.pop %v1759
  %v1774 = vtanh.pop %v1760
  %v1775 = vmul.f32 %v1770, %v1679
  %1777 = vrot.lane.b32.xlu0 %v1773, 64
  %v1778 = vpop.permute.xlu0 %1777
  %v1780 = vmul.f32 %v1770, %v1778
  %1782 = vrot.lane.b32.xlu0 %v1780, 32
  %v1783 = vpop.permute.xlu0 %1782
  %v1785 = vadd.f32 %v1775, %v1783
  %v1786 = vmul.f32 %v1772, %v1690
  %1788 = vrot.lane.b32.xlu0 %v1774, 64
  %v1789 = vpop.permute.xlu0 %1788
  %v1791 = vmul.f32 %v1772, %v1789
  %1793 = vrot.lane.b32.xlu0 %v1791, 32
  %v1794 = vpop.permute.xlu0 %1793
  %v1796 = vadd.f32 %v1786, %v1794
  %v1797 = vtanh.pop %v1785
  %1799 = vrot.lane.b32.xlu0 %v1797, 64
  %v1800 = vpop.permute.xlu0 %1799
  %v1802 = vmul.f32 %v1770, %v1800
  %v1803 = vtanh.pop %v1796
  %1805 = vrot.lane.b32.xlu0 %v1803, 64
  %v1806 = vpop.permute.xlu0 %1805
  %v1808 = vmul.f32 %v1772, %v1806
  %1810 = vrot.lane.b32.xlu0 %v1802, 32
  %v1811 = vpop.permute.xlu0 %1810
  %1814 = vrot.lane.b32.xlu0 %v1808, 64
  %v1815 = vpop.permute.xlu0 %1814
  %v1817 = vsel %vm428, %v1811, %v1815
  %v1818 = vpack.c.bf16 %v1817, %v1817
  %v1819 = vld [vmem:[#allocation2 + $0x30] sm:$0xff]
  %v1820 = vld [vmem:[#allocation2 + $0x38] sm:$0xff]
  %v1822 = vsel %vm329, %v1818, 0
  %1824 = vmatprep.subr.bf16.mxu0 %v1491
  %1825 = vmatpush1.bf16.msra.mxu0 %v1490
  %1826 = vmatprep.subr.bf16.mxu0 %v1493
  %1827 = vmatpush1.bf16.msra.mxu0 %v1492
  %1828 = vmatprep.subr.bf16.mxu0 %v1495
  %1829 = vmatpush1.bf16.msra.mxu0 %v1494
  %1830 = vmatprep.subr.bf16.mxu0 %v1497
  %1831 = vmatpush1.bf16.msra.mxu0 %v1496
  %1832 = vmatprep.subr.bf16.mxu0 0
  %1833 = vmatpush1.bf16.msra.mxu0 0
  %1834 = vmatprep.subr.bf16.mxu0 0
  %1835 = vmatpush1.bf16.msra.mxu0 0
  %1836 = vmatprep.subr.bf16.mxu0 0
  %1837 = vmatpush1.bf16.msra.mxu0 0
  %1838 = vmatprep.subr.bf16.mxu0 0
  %1839 = vmatpush1.bf16.msra.mxu0 0
  %1840 = vmatprep.subr.bf16.mxu0 0
  %1841 = vmatpush1.bf16.msra.mxu0 0
  %1842 = vmatprep.subr.bf16.mxu0 0
  %1843 = vmatpush1.bf16.msra.mxu0 0
  %1844 = vmatprep.subr.bf16.mxu0 0
  %1845 = vmatpush1.bf16.msra.mxu0 0
  %1846 = vmatprep.subr.bf16.mxu0 0
  %1847 = vmatpush1.bf16.msra.mxu0 0
  %1848 = vmatprep.subr.bf16.mxu0 0
  %1849 = vmatpush1.bf16.msra.mxu0 0
  %1850 = vmatprep.subr.bf16.mxu0 0
  %1851 = vmatpush1.bf16.msra.mxu0 0
  %1852 = vmatprep.subr.bf16.mxu0 0
  %1853 = vmatpush1.bf16.msra.mxu0 0
  %1854 = vmatprep.subr.bf16.mxu0 0
  %1855 = vmatpush1.bf16.msra.mxu0 0
  %1856 = vmatprep.mubr.bf16.mxu0 0
  %1857 = vmatmul.mubr.bf16.gmra.mrb[0].mxu0 %v1822
  %v1858 = vpop.f32.mrb[0].mxu0
  %v1859 = vadd.f32 0.0, %v1858
  %v1860 = vpop.f32.mrb[0].mxu0
  %v1861 = vadd.f32 0.0, %v1860
  %v1862 = vpop.f32.mrb[0].mxu0
  %v1863 = vpop.f32.mrb[0].mxu0
  %1864 = vdwg.mxu0
  %v1865 = vadd.f32 %v1819, %v1859
  %v1866 = vadd.f32 %v1820, %v1861
  %v1867 = vxor.u32 %v1865, 2147483648
  %v1868 = vxor.u32 %v1866, 2147483648
  %v1869 = vmul.f32 %v1867, 1.442695
  %v1870 = vpow.pop %v1869
  %v1871 = vmul.f32 %v1868, 1.442695
  %v1872 = vpow.pop %v1871
  %v1873 = vadd.f32 %v1870, 1.0
  %v1874 = vadd.f32 %v1872, 1.0
  %v1875 = vrcp.pop %v1873
  %v1876 = vmul.f32 1.0, %v1875
  %v1877 = vrcp.pop %v1874
  %v1878 = vmul.f32 1.0, %v1877
  %v1879 = vtanh.pop %v1865
  %v1880 = vtanh.pop %v1866
  %v1881 = vmul.f32 %v1876, %v1785
  %1883 = vrot.lane.b32.xlu0 %v1879, 64
  %v1884 = vpop.permute.xlu0 %1883
  %v1886 = vmul.f32 %v1876, %v1884
  %1888 = vrot.lane.b32.xlu0 %v1886, 32
  %v1889 = vpop.permute.xlu0 %1888
  %v1891 = vadd.f32 %v1881, %v1889
  %v1892 = vmul.f32 %v1878, %v1796
  %1894 = vrot.lane.b32.xlu0 %v1880, 64
  %v1895 = vpop.permute.xlu0 %1894
  %v1897 = vmul.f32 %v1878, %v1895
  %1899 = vrot.lane.b32.xlu0 %v1897, 32
  %v1900 = vpop.permute.xlu0 %1899
  %v1902 = vadd.f32 %v1892, %v1900
  %v1903 = vtanh.pop %v1891
  %1905 = vrot.lane.b32.xlu0 %v1903, 64
  %v1906 = vpop.permute.xlu0 %1905
  %v1908 = vmul.f32 %v1876, %v1906
  %v1909 = vtanh.pop %v1902
  %1911 = vrot.lane.b32.xlu0 %v1909, 64
  %v1912 = vpop.permute.xlu0 %1911
  %v1914 = vmul.f32 %v1878, %v1912
  %1916 = vrot.lane.b32.xlu0 %v1908, 32
  %v1917 = vpop.permute.xlu0 %1916
  %1920 = vrot.lane.b32.xlu0 %v1914, 64
  %v1921 = vpop.permute.xlu0 %1920
  %v1923 = vsel %vm428, %v1917, %v1921
  %v1924 = vpack.c.bf16 %v1923, %v1923
  %v1925 = vld [vmem:[#allocation2 + $0x40] sm:$0xff]
  %v1926 = vld [vmem:[#allocation2 + $0x48] sm:$0xff]
  %v1928 = vsel %vm329, %v1924, 0
  %1930 = vmatprep.subr.bf16.mxu0 %v1491
  %1931 = vmatpush1.bf16.msra.mxu0 %v1490
  %1932 = vmatprep.subr.bf16.mxu0 %v1493
  %1933 = vmatpush1.bf16.msra.mxu0 %v1492
  %1934 = vmatprep.subr.bf16.mxu0 %v1495
  %1935 = vmatpush1.bf16.msra.mxu0 %v1494
  %1936 = vmatprep.subr.bf16.mxu0 %v1497
  %1937 = vmatpush1.bf16.msra.mxu0 %v1496
  %1938 = vmatprep.subr.bf16.mxu0 0
  %1939 = vmatpush1.bf16.msra.mxu0 0
  %1940 = vmatprep.subr.bf16.mxu0 0
  %1941 = vmatpush1.bf16.msra.mxu0 0
  %1942 = vmatprep.subr.bf16.mxu0 0
  %1943 = vmatpush1.bf16.msra.mxu0 0
  %1944 = vmatprep.subr.bf16.mxu0 0
  %1945 = vmatpush1.bf16.msra.mxu0 0
  %1946 = vmatprep.subr.bf16.mxu0 0
  %1947 = vmatpush1.bf16.msra.mxu0 0
  %1948 = vmatprep.subr.bf16.mxu0 0
  %1949 = vmatpush1.bf16.msra.mxu0 0
  %1950 = vmatprep.subr.bf16.mxu0 0
  %1951 = vmatpush1.bf16.msra.mxu0 0
  %1952 = vmatprep.subr.bf16.mxu0 0
  %1953 = vmatpush1.bf16.msra.mxu0 0
  %1954 = vmatprep.subr.bf16.mxu0 0
  %1955 = vmatpush1.bf16.msra.mxu0 0
  %1956 = vmatprep.subr.bf16.mxu0 0
  %1957 = vmatpush1.bf16.msra.mxu0 0
  %1958 = vmatprep.subr.bf16.mxu0 0
  %1959 = vmatpush1.bf16.msra.mxu0 0
  %1960 = vmatprep.subr.bf16.mxu0 0
  %1961 = vmatpush1.bf16.msra.mxu0 0
  %1962 = vmatprep.mubr.bf16.mxu0 0
  %1963 = vmatmul.mubr.bf16.gmra.mrb[0].mxu0 %v1928
  %v1964 = vpop.f32.mrb[0].mxu0
  %v1965 = vadd.f32 0.0, %v1964
  %v1966 = vpop.f32.mrb[0].mxu0
  %v1967 = vadd.f32 0.0, %v1966
  %v1968 = vpop.f32.mrb[0].mxu0
  %v1969 = vpop.f32.mrb[0].mxu0
  %1970 = vdwg.mxu0
  %v1971 = vadd.f32 %v1925, %v1965
  %v1972 = vadd.f32 %v1926, %v1967
  %v1973 = vxor.u32 %v1971, 2147483648
  %v1974 = vxor.u32 %v1972, 2147483648
  %v1975 = vmul.f32 %v1973, 1.442695
  %v1976 = vpow.pop %v1975
  %v1977 = vmul.f32 %v1974, 1.442695
  %v1978 = vpow.pop %v1977
  %v1979 = vadd.f32 %v1976, 1.0
  %v1980 = vadd.f32 %v1978, 1.0
  %v1981 = vrcp.pop %v1979
  %v1982 = vmul.f32 1.0, %v1981
  %v1983 = vrcp.pop %v1980
  %v1984 = vmul.f32 1.0, %v1983
  %v1985 = vtanh.pop %v1971
  %v1986 = vtanh.pop %v1972
  %v1987 = vmul.f32 %v1982, %v1891
  %1989 = vrot.lane.b32.xlu0 %v1985, 64
  %v1990 = vpop.permute.xlu0 %1989
  %v1992 = vmul.f32 %v1982, %v1990
  %1994 = vrot.lane.b32.xlu0 %v1992, 32
  %v1995 = vpop.permute.xlu0 %1994
  %v1997 = vadd.f32 %v1987, %v1995
  %v1998 = vmul.f32 %v1984, %v1902
  %2000 = vrot.lane.b32.xlu0 %v1986, 64
  %v2001 = vpop.permute.xlu0 %2000
  %v2003 = vmul.f32 %v1984, %v2001
  %2005 = vrot.lane.b32.xlu0 %v2003, 32
  %v2006 = vpop.permute.xlu0 %2005
  %v2008 = vadd.f32 %v1998, %v2006
  %v2009 = vtanh.pop %v1997
  %2011 = vrot.lane.b32.xlu0 %v2009, 64
  %v2012 = vpop.permute.xlu0 %2011
  %v2014 = vmul.f32 %v1982, %v2012
  %v2015 = vtanh.pop %v2008
  %2017 = vrot.lane.b32.xlu0 %v2015, 64
  %v2018 = vpop.permute.xlu0 %2017
  %v2020 = vmul.f32 %v1984, %v2018
  %2022 = vrot.lane.b32.xlu0 %v2014, 32
  %v2023 = vpop.permute.xlu0 %2022
  %2026 = vrot.lane.b32.xlu0 %v2020, 64
  %v2027 = vpop.permute.xlu0 %2026
  %v2029 = vsel %vm428, %v2023, %v2027
  %v2030 = vpack.c.bf16 %v2029, %v2029
  %v2031 = vld [vmem:[#allocation2 + $0x50] sm:$0xff]
  %v2032 = vld [vmem:[#allocation2 + $0x58] sm:$0xff]
  %v2034 = vsel %vm329, %v2030, 0
  %2036 = vmatprep.subr.bf16.mxu0 %v1491
  %2037 = vmatpush1.bf16.msra.mxu0 %v1490
  %2038 = vmatprep.subr.bf16.mxu0 %v1493
  %2039 = vmatpush1.bf16.msra.mxu0 %v1492
  %2040 = vmatprep.subr.bf16.mxu0 %v1495
  %2041 = vmatpush1.bf16.msra.mxu0 %v1494
  %2042 = vmatprep.subr.bf16.mxu0 %v1497
  %2043 = vmatpush1.bf16.msra.mxu0 %v1496
  %2044 = vmatprep.subr.bf16.mxu0 0
  %2045 = vmatpush1.bf16.msra.mxu0 0
  %2046 = vmatprep.subr.bf16.mxu0 0
  %2047 = vmatpush1.bf16.msra.mxu0 0
  %2048 = vmatprep.subr.bf16.mxu0 0
  %2049 = vmatpush1.bf16.msra.mxu0 0
  %2050 = vmatprep.subr.bf16.mxu0 0
  %2051 = vmatpush1.bf16.msra.mxu0 0
  %2052 = vmatprep.subr.bf16.mxu0 0
  %2053 = vmatpush1.bf16.msra.mxu0 0
  %2054 = vmatprep.subr.bf16.mxu0 0
  %2055 = vmatpush1.bf16.msra.mxu0 0
  %2056 = vmatprep.subr.bf16.mxu0 0
  %2057 = vmatpush1.bf16.msra.mxu0 0
  %2058 = vmatprep.subr.bf16.mxu0 0
  %2059 = vmatpush1.bf16.msra.mxu0 0
  %2060 = vmatprep.subr.bf16.mxu0 0
  %2061 = vmatpush1.bf16.msra.mxu0 0
  %2062 = vmatprep.subr.bf16.mxu0 0
  %2063 = vmatpush1.bf16.msra.mxu0 0
  %2064 = vmatprep.subr.bf16.mxu0 0
  %2065 = vmatpush1.bf16.msra.mxu0 0
  %2066 = vmatprep.subr.bf16.mxu0 0
  %2067 = vmatpush1.bf16.msra.mxu0 0
  %2068 = vmatprep.mubr.bf16.mxu0 0
  %2069 = vmatmul.mubr.bf16.gmra.mrb[0].mxu0 %v2034
  %v2070 = vpop.f32.mrb[0].mxu0
  %v2071 = vadd.f32 0.0, %v2070
  %v2072 = vpop.f32.mrb[0].mxu0
  %v2073 = vadd.f32 0.0, %v2072
  %v2074 = vpop.f32.mrb[0].mxu0
  %v2075 = vpop.f32.mrb[0].mxu0
  %2076 = vdwg.mxu0
  %v2077 = vadd.f32 %v2031, %v2071
  %v2078 = vadd.f32 %v2032, %v2073
  %v2079 = vxor.u32 %v2077, 2147483648
  %v2080 = vxor.u32 %v2078, 2147483648
  %v2081 = vmul.f32 %v2079, 1.442695
  %v2082 = vpow.pop %v2081
  %v2083 = vmul.f32 %v2080, 1.442695
  %v2084 = vpow.pop %v2083
  %v2085 = vadd.f32 %v2082, 1.0
  %v2086 = vadd.f32 %v2084, 1.0
  %v2087 = vrcp.pop %v2085
  %v2088 = vmul.f32 1.0, %v2087
  %v2089 = vrcp.pop %v2086
  %v2090 = vmul.f32 1.0, %v2089
  %v2091 = vtanh.pop %v2077
  %v2092 = vtanh.pop %v2078
  %v2093 = vmul.f32 %v2088, %v1997
  %2095 = vrot.lane.b32.xlu0 %v2091, 64
  %v2096 = vpop.permute.xlu0 %2095
  %v2098 = vmul.f32 %v2088, %v2096
  %2100 = vrot.lane.b32.xlu0 %v2098, 32
  %v2101 = vpop.permute.xlu0 %2100
  %v2103 = vadd.f32 %v2093, %v2101
  %v2104 = vmul.f32 %v2090, %v2008
  %2106 = vrot.lane.b32.xlu0 %v2092, 64
  %v2107 = vpop.permute.xlu0 %2106
  %v2109 = vmul.f32 %v2090, %v2107
  %2111 = vrot.lane.b32.xlu0 %v2109, 32
  %v2112 = vpop.permute.xlu0 %2111
  %v2114 = vadd.f32 %v2104, %v2112
  %v2115 = vtanh.pop %v2103
  %2117 = vrot.lane.b32.xlu0 %v2115, 64
  %v2118 = vpop.permute.xlu0 %2117
  %v2120 = vmul.f32 %v2088, %v2118
  %v2121 = vtanh.pop %v2114
  %2123 = vrot.lane.b32.xlu0 %v2121, 64
  %v2124 = vpop.permute.xlu0 %2123
  %v2126 = vmul.f32 %v2090, %v2124
  %2128 = vrot.lane.b32.xlu0 %v2120, 32
  %v2129 = vpop.permute.xlu0 %2128
  %2132 = vrot.lane.b32.xlu0 %v2126, 64
  %v2133 = vpop.permute.xlu0 %2132
  %v2135 = vsel %vm428, %v2129, %v2133
  %v2136 = vpack.c.bf16 %v2135, %v2135
  %v2137 = vld [vmem:[#allocation2 + $0x60] sm:$0xff]
  %v2138 = vld [vmem:[#allocation2 + $0x68] sm:$0xff]
  %v2140 = vsel %vm329, %v2136, 0
  %2142 = vmatprep.subr.bf16.mxu0 %v1491
  %2143 = vmatpush1.bf16.msra.mxu0 %v1490
  %2144 = vmatprep.subr.bf16.mxu0 %v1493
  %2145 = vmatpush1.bf16.msra.mxu0 %v1492
  %2146 = vmatprep.subr.bf16.mxu0 %v1495
  %2147 = vmatpush1.bf16.msra.mxu0 %v1494
  %2148 = vmatprep.subr.bf16.mxu0 %v1497
  %2149 = vmatpush1.bf16.msra.mxu0 %v1496
  %2150 = vmatprep.subr.bf16.mxu0 0
  %2151 = vmatpush1.bf16.msra.mxu0 0
  %2152 = vmatprep.subr.bf16.mxu0 0
  %2153 = vmatpush1.bf16.msra.mxu0 0
  %2154 = vmatprep.subr.bf16.mxu0 0
  %2155 = vmatpush1.bf16.msra.mxu0 0
  %2156 = vmatprep.subr.bf16.mxu0 0
  %2157 = vmatpush1.bf16.msra.mxu0 0
  %2158 = vmatprep.subr.bf16.mxu0 0
  %2159 = vmatpush1.bf16.msra.mxu0 0
  %2160 = vmatprep.subr.bf16.mxu0 0
  %2161 = vmatpush1.bf16.msra.mxu0 0
  %2162 = vmatprep.subr.bf16.mxu0 0
  %2163 = vmatpush1.bf16.msra.mxu0 0
  %2164 = vmatprep.subr.bf16.mxu0 0
  %2165 = vmatpush1.bf16.msra.mxu0 0
  %2166 = vmatprep.subr.bf16.mxu0 0
  %2167 = vmatpush1.bf16.msra.mxu0 0
  %2168 = vmatprep.subr.bf16.mxu0 0
  %2169 = vmatpush1.bf16.msra.mxu0 0
  %2170 = vmatprep.subr.bf16.mxu0 0
  %2171 = vmatpush1.bf16.msra.mxu0 0
  %2172 = vmatprep.subr.bf16.mxu0 0
  %2173 = vmatpush1.bf16.msra.mxu0 0
  %2174 = vmatprep.mubr.bf16.mxu0 0
  %2175 = vmatmul.mubr.bf16.gmra.mrb[0].mxu0 %v2140
  %v2176 = vpop.f32.mrb[0].mxu0
  %v2177 = vadd.f32 0.0, %v2176
  %v2178 = vpop.f32.mrb[0].mxu0
  %v2179 = vadd.f32 0.0, %v2178
  %v2180 = vpop.f32.mrb[0].mxu0
  %v2181 = vpop.f32.mrb[0].mxu0
  %2182 = vdwg.mxu0
  %v2183 = vadd.f32 %v2137, %v2177
  %v2184 = vadd.f32 %v2138, %v2179
  %v2185 = vxor.u32 %v2183, 2147483648
  %v2186 = vxor.u32 %v2184, 2147483648
  %v2187 = vmul.f32 %v2185, 1.442695
  %v2188 = vpow.pop %v2187
  %v2189 = vmul.f32 %v2186, 1.442695
  %v2190 = vpow.pop %v2189
  %v2191 = vadd.f32 %v2188, 1.0
  %v2192 = vadd.f32 %v2190, 1.0
  %v2193 = vrcp.pop %v2191
  %v2194 = vmul.f32 1.0, %v2193
  %v2195 = vrcp.pop %v2192
  %v2196 = vmul.f32 1.0, %v2195
  %v2197 = vtanh.pop %v2183
  %v2198 = vtanh.pop %v2184
  %v2199 = vmul.f32 %v2194, %v2103
  %2201 = vrot.lane.b32.xlu0 %v2197, 64
  %v2202 = vpop.permute.xlu0 %2201
  %v2204 = vmul.f32 %v2194, %v2202
  %2206 = vrot.lane.b32.xlu0 %v2204, 32
  %v2207 = vpop.permute.xlu0 %2206
  %v2209 = vadd.f32 %v2199, %v2207
  %v2210 = vmul.f32 %v2196, %v2114
  %2212 = vrot.lane.b32.xlu0 %v2198, 64
  %v2213 = vpop.permute.xlu0 %2212
  %v2215 = vmul.f32 %v2196, %v2213
  %2217 = vrot.lane.b32.xlu0 %v2215, 32
  %v2218 = vpop.permute.xlu0 %2217
  %v2220 = vadd.f32 %v2210, %v2218
  %v2221 = vtanh.pop %v2209
  %2223 = vrot.lane.b32.xlu0 %v2221, 64
  %v2224 = vpop.permute.xlu0 %2223
  %v2226 = vmul.f32 %v2194, %v2224
  %v2227 = vtanh.pop %v2220
  %2229 = vrot.lane.b32.xlu0 %v2227, 64
  %v2230 = vpop.permute.xlu0 %2229
  %v2232 = vmul.f32 %v2196, %v2230
  %2234 = vrot.lane.b32.xlu0 %v2226, 32
  %v2235 = vpop.permute.xlu0 %2234
  %2238 = vrot.lane.b32.xlu0 %v2232, 64
  %v2239 = vpop.permute.xlu0 %2238
  %v2241 = vsel %vm428, %v2235, %v2239
  %v2242 = vpack.c.bf16 %v2241, %v2241
  %v2243 = vld [vmem:[#allocation2 + $0x70] sm:$0xff]
  %v2244 = vld [vmem:[#allocation2 + $0x78] sm:$0xff]
  %v2246 = vsel %vm329, %v2242, 0
  %2248 = vmatprep.subr.bf16.mxu0 %v1491
  %2249 = vmatpush1.bf16.msra.mxu0 %v1490
  %2250 = vmatprep.subr.bf16.mxu0 %v1493
  %2251 = vmatpush1.bf16.msra.mxu0 %v1492
  %2252 = vmatprep.subr.bf16.mxu0 %v1495
  %2253 = vmatpush1.bf16.msra.mxu0 %v1494
  %2254 = vmatprep.subr.bf16.mxu0 %v1497
  %2255 = vmatpush1.bf16.msra.mxu0 %v1496
  %2256 = vmatprep.subr.bf16.mxu0 0
  %2257 = vmatpush1.bf16.msra.mxu0 0
  %2258 = vmatprep.subr.bf16.mxu0 0
  %2259 = vmatpush1.bf16.msra.mxu0 0
  %2260 = vmatprep.subr.bf16.mxu0 0
  %2261 = vmatpush1.bf16.msra.mxu0 0
  %2262 = vmatprep.subr.bf16.mxu0 0
  %2263 = vmatpush1.bf16.msra.mxu0 0
  %2264 = vmatprep.subr.bf16.mxu0 0
  %2265 = vmatpush1.bf16.msra.mxu0 0
  %2266 = vmatprep.subr.bf16.mxu0 0
  %2267 = vmatpush1.bf16.msra.mxu0 0
  %2268 = vmatprep.subr.bf16.mxu0 0
  %2269 = vmatpush1.bf16.msra.mxu0 0
  %2270 = vmatprep.subr.bf16.mxu0 0
  %2271 = vmatpush1.bf16.msra.mxu0 0
  %2272 = vmatprep.subr.bf16.mxu0 0
  %2273 = vmatpush1.bf16.msra.mxu0 0
  %2274 = vmatprep.subr.bf16.mxu0 0
  %2275 = vmatpush1.bf16.msra.mxu0 0
  %2276 = vmatprep.subr.bf16.mxu0 0
  %2277 = vmatpush1.bf16.msra.mxu0 0
  %2278 = vmatprep.subr.bf16.mxu0 0
  %2279 = vmatpush1.bf16.msra.mxu0 0
  %2280 = vmatprep.mubr.bf16.mxu0 0
  %2281 = vmatmul.mubr.bf16.gmra.mrb[0].mxu0 %v2246
  %v2282 = vpop.f32.mrb[0].mxu0
  %v2283 = vadd.f32 0.0, %v2282
  %v2284 = vpop.f32.mrb[0].mxu0
  %v2285 = vadd.f32 0.0, %v2284
  %v2286 = vpop.f32.mrb[0].mxu0
  %v2287 = vpop.f32.mrb[0].mxu0
  %2288 = vdwg.mxu0
  %v2289 = vadd.f32 %v2243, %v2283
  %v2290 = vadd.f32 %v2244, %v2285
  %v2291 = vxor.u32 %v2289, 2147483648
  %v2292 = vxor.u32 %v2290, 2147483648
  %v2293 = vmul.f32 %v2291, 1.442695
  %v2294 = vpow.pop %v2293
  %v2295 = vmul.f32 %v2292, 1.442695
  %v2296 = vpow.pop %v2295
  %v2297 = vadd.f32 %v2294, 1.0
  %v2298 = vadd.f32 %v2296, 1.0
  %v2299 = vrcp.pop %v2297
  %v2300 = vmul.f32 1.0, %v2299
  %v2301 = vrcp.pop %v2298
  %v2302 = vmul.f32 1.0, %v2301
  %v2303 = vtanh.pop %v2289
  %v2304 = vtanh.pop %v2290
  %v2305 = vmul.f32 %v2300, %v2209
  %2307 = vrot.lane.b32.xlu0 %v2303, 64
  %v2308 = vpop.permute.xlu0 %2307
  %v2310 = vmul.f32 %v2300, %v2308
  %2312 = vrot.lane.b32.xlu0 %v2310, 32
  %v2313 = vpop.permute.xlu0 %2312
  %v2315 = vadd.f32 %v2305, %v2313
  %v2316 = vmul.f32 %v2302, %v2220
  %2318 = vrot.lane.b32.xlu0 %v2304, 64
  %v2319 = vpop.permute.xlu0 %2318
  %v2321 = vmul.f32 %v2302, %v2319
  %2323 = vrot.lane.b32.xlu0 %v2321, 32
  %v2324 = vpop.permute.xlu0 %2323
  %v2326 = vadd.f32 %v2316, %v2324
  %v2327 = vtanh.pop %v2315
  %2329 = vrot.lane.b32.xlu0 %v2327, 64
  %v2330 = vpop.permute.xlu0 %2329
  %v2332 = vmul.f32 %v2300, %v2330
  %v2333 = vtanh.pop %v2326
  %2335 = vrot.lane.b32.xlu0 %v2333, 64
  %v2336 = vpop.permute.xlu0 %2335
  %v2338 = vmul.f32 %v2302, %v2336
  %2340 = vrot.lane.b32.xlu0 %v2332, 32
  %v2341 = vpop.permute.xlu0 %2340
  %2344 = vrot.lane.b32.xlu0 %v2338, 64
  %v2345 = vpop.permute.xlu0 %2344
  %v2347 = vsel %vm428, %v2341, %v2345
  %v2348 = vpack.c.bf16 %v2347, %v2347
  %v2349 = vld [vmem:[%s11] sm:$0xf]
  %v2350 = vld [vmem:[%s11 + $0x4] sm:$0xf]
  %v2351 = vld [vmem:[%s11 + $0x8] sm:$0xf]
  %v2352 = vld [vmem:[%s11 + $0xc] sm:$0xf]
  %v2353 = vld [vmem:[%s11 + $0x10] sm:$0xf]
  %v2354 = vld [vmem:[%s11 + $0x14] sm:$0xf]
  %v2355 = vld [vmem:[%s11 + $0x18] sm:$0xf]
  %v2356 = vld [vmem:[%s11 + $0x1c] sm:$0xf]
  %v2357 = vld [vmem:[%s12] sm:$0x1]
  %v2359 = vlaneseq
  %v2360 = vshrl.u32 %v2359, 7
  %v2361 = vsub.s32 0, %v2360
  %v2362 = vrot.slane %v2357, %v2361
  %v2372 = vunpack.c.l.b16 %v2349
  %v2373 = vunpack.c.l.b16 %v2350
  %v2374 = vunpack.c.l.b16 %v2351
  %v2375 = vunpack.c.l.b16 %v2352
  %v2376 = vunpack.c.l.b16 %v2353
  %v2377 = vunpack.c.l.b16 %v2354
  %v2378 = vunpack.c.l.b16 %v2355
  %v2379 = vunpack.c.l.b16 %v2356
  %v2380 = vpack.c.b16 %v2373, %v2372
  %v2381 = vpack.c.b16 %v2375, %v2374
  %v2382 = vpack.c.b16 %v2377, %v2376
  %v2383 = vpack.c.b16 %v2379, %v2378
  %v2389 = vsel %vm329, %v2348, 0
  %2391 = vmatprep.subr.bf16.mxu0 0
  %2392 = vmatpush1.bf16.msra.mxu0 %v2380
  %2393 = vmatprep.subr.bf16.mxu0 0
  %2394 = vmatpush1.bf16.msra.mxu0 %v2381
  %2395 = vmatprep.subr.bf16.mxu0 0
  %2396 = vmatpush1.bf16.msra.mxu0 %v2382
  %2397 = vmatprep.subr.bf16.mxu0 0
  %2398 = vmatpush1.bf16.msra.mxu0 %v2383
  %2399 = vmatprep.subr.bf16.mxu0 0
  %2400 = vmatpush1.bf16.msra.mxu0 0
  %2401 = vmatprep.subr.bf16.mxu0 0
  %2402 = vmatpush1.bf16.msra.mxu0 0
  %2403 = vmatprep.subr.bf16.mxu0 0
  %2404 = vmatpush1.bf16.msra.mxu0 0
  %2405 = vmatprep.subr.bf16.mxu0 0
  %2406 = vmatpush1.bf16.msra.mxu0 0
  %2407 = vmatprep.subr.bf16.mxu0 0
  %2408 = vmatpush1.bf16.msra.mxu0 0
  %2409 = vmatprep.subr.bf16.mxu0 0
  %2410 = vmatpush1.bf16.msra.mxu0 0
  %2411 = vmatprep.subr.bf16.mxu0 0
  %2412 = vmatpush1.bf16.msra.mxu0 0
  %2413 = vmatprep.subr.bf16.mxu0 0
  %2414 = vmatpush1.bf16.msra.mxu0 0
  %2415 = vmatprep.subr.bf16.mxu0 0
  %2416 = vmatpush1.bf16.msra.mxu0 0
  %2417 = vmatprep.subr.bf16.mxu0 0
  %2418 = vmatpush1.bf16.msra.mxu0 0
  %2419 = vmatprep.subr.bf16.mxu0 0
  %2420 = vmatpush1.bf16.msra.mxu0 0
  %2421 = vmatprep.subr.bf16.mxu0 0
  %2422 = vmatpush1.bf16.msra.mxu0 0
  %2423 = vmatprep.mubr.bf16.mxu0 0
  %2424 = vmatmul.mubr.bf16.gmra.mrb[0].mxu0 %v2389
  %v2425 = vpop.f32.mrb[0].mxu0
  %v2426 = vadd.f32 %v2362, %v2425
  %v2427 = vpop.f32.mrb[0].mxu0
  %v2428 = vpop.f32.mrb[0].mxu0
  %v2429 = vpop.f32.mrb[0].mxu0
  %2430 = vdwg.mxu0
  %vm2431 = vcmask 31744
  %2432 = vst.msk [vmem:[%s13] sm:$0xff] %vm2431, %v2426
  // Predicated region
  $region54: #{_lambda_.1} parent=0 // pred_check
    _
  $region55: #{_lambda_.1} parent=0 // pred_check_branch
    %2434 = sbr.rel (0) target = $region57
  $region56: #{_lambda_.1} parent=0 // pred_region
    _
  $region57: #{_lambda_.1} parent=0 // pred_fallthru
    _
  // Predicated region
  $region58: #{_lambda_.1} parent=0 // pred_check
    _
  $region59: #{_lambda_.1} parent=0 // pred_check_branch
    %2436 = sbr.rel (0) target = $region61
  $region60: #{_lambda_.1} parent=0 // pred_region
    _
  $region61: #{_lambda_.1} parent=0 // pred_fallthru
    _

</llo_original>
